<compile_context>
chip_gen: v7x
topology: tpu7x:2x2x1
jax: 0.10.0
libtpu: 0.0.40
codegen_flags: <defaults>
</compile_context>

<pallas_src>
import functools

import jax
import jax.numpy as jnp
from jax import lax
from jax.experimental import pallas as pl
from jax.experimental.pallas import tpu as pltpu

# ---- small synthetic configuration (consistent with the module's forward) ----
EMBED = 128            # embedding_dim
HEADS = 4              # num_heads
HEAD_DIM = EMBED // HEADS
FF = 4 * EMBED         # feed-forward hidden
VOCAB = 256            # vocab_size
LAYERS = 2             # num_decoder_layers
SEQ = 8                # total sequence length (image patches + caption tokens)
BATCH = 2
IMAGE_PATCH_LEN = 3
MAX_LEN = 16           # positional-encoding table length (stand-in for 5000)
LN_EPS = 1e-5


# ----------------------------- fused Pallas kernel ----------------------------
def _fused_decoder_kernel(image_patch_len,
                          x_ref, pos_ref,
                          wqkv_ref, bqkv_ref, wo_ref, bo_ref,
                          w1_ref, b1_ref, w2_ref, b2_ref,
                          g1_ref, be1_ref, g2_ref, be2_ref,
                          pw_ref, pb_ref,
                          o_ref):
    """Whole forward for one batch element: pos-add -> L decoder layers ->
    caption slice -> vocab projection.  x_ref block: (1, S, E)."""
    S, E = pos_ref.shape
    H, G = HEADS, 3 * HEADS
    n_layers = wqkv_ref.shape[0]

    # ---- learnable positional encoding (fused, f32) ----
    x = x_ref[0] + pos_ref[...]                         # (S, E) f32

    # ---- causal mask: built once, reused by every layer ----
    row = lax.broadcasted_iota(jnp.int32, (S, S), 0)
    col = lax.broadcasted_iota(jnp.int32, (S, S), 1)
    causal = (col <= row)[None, :, :]                   # (1, S, S)

    for l in range(n_layers):                           # static unroll; weights VMEM-resident
        # ---- multi-head causal self-attention (head-batched, bf16 MXU) ----
        xb = x.astype(jnp.bfloat16)
        xg = jnp.broadcast_to(xb[None], (G, S, E))      # (3H, S, E)
        qkv = jnp.einsum('gse,ged->gsd', xg, wqkv_ref[l],
                         preferred_element_type=jnp.float32) + bqkv_ref[l]  # (3H,S,D) f32
        q = qkv[:H]                                     # q pre-scaled by 1/sqrt(D) in weights
        k = qkv[H:2 * H]
        v = qkv[2 * H:]

        s = jnp.einsum('hqd,hkd->hqk',
                       q.astype(jnp.bfloat16), k.astype(jnp.bfloat16),
                       preferred_element_type=jnp.float32)                  # (H,S,S) f32
        s = jnp.where(causal, s, -1e30)
        s = s - jnp.max(s, axis=-1, keepdims=True)
        p = jnp.exp(s)
        p = p * pl.reciprocal(jnp.sum(p, axis=-1, keepdims=True), approx=True)

        ctx = jnp.einsum('hqk,hkd->hqd',
                         p.astype(jnp.bfloat16), v.astype(jnp.bfloat16),
                         preferred_element_type=jnp.float32)                # (H,S,D) f32
        attn = jnp.einsum('hsd,hde->hse',
                          ctx.astype(jnp.bfloat16), wo_ref[l],
                          preferred_element_type=jnp.float32)               # (H,S,E) f32
        attn = jnp.sum(attn, axis=0) + bo_ref[l]                            # (S,E) f32

        # ---- add & norm 1 (f32, biased variance as in PyTorch LayerNorm) ----
        h1 = x + attn
        mu = jnp.mean(h1, axis=-1, keepdims=True)
        var = jnp.mean(jnp.square(h1 - mu), axis=-1, keepdims=True)
        h1 = (h1 - mu) * lax.rsqrt(var + LN_EPS) * g1_ref[l] + be1_ref[l]

        # ---- feed forward: Linear -> ReLU -> Linear (bf16 matmuls, f32 acc) ----
        ff = jnp.dot(h1.astype(jnp.bfloat16), w1_ref[l],
                     preferred_element_type=jnp.float32) + b1_ref[l]
        ff = jnp.maximum(ff, 0.0)
        ff = jnp.dot(ff.astype(jnp.bfloat16), w2_ref[l],
                     preferred_element_type=jnp.float32) + b2_ref[l]

        # ---- add & norm 2 (f32) ----
        h2 = h1 + ff
        mu2 = jnp.mean(h2, axis=-1, keepdims=True)
        var2 = jnp.mean(jnp.square(h2 - mu2), axis=-1, keepdims=True)
        x = (h2 - mu2) * lax.rsqrt(var2 + LN_EPS) * g2_ref[l] + be2_ref[l]

    # ---- caption-token slice + vocab projection (fused, lane-dense output) ----
    cap = x[image_patch_len:, :].astype(jnp.bfloat16)                       # (S_cap, E)
    o_ref[0] = jnp.dot(cap, pw_ref[...],
                       preferred_element_type=jnp.float32) + pb_ref[...]


# ----------------------------- wrapper ----------------------------------------
def _full_spec(a):
    # whole-array block, constant across the batch grid axis (fetched once;
    # double-buffering of ~1 MB of bf16 weights is well within VMEM)
    n = a.ndim
    return pl.BlockSpec(a.shape, lambda b, _n=n: (0,) * _n)


def image_caption_decoder(combined_embeddings, image_patch_len, kp):
    B, S, E = combined_embeddings.shape
    S_cap = S - image_patch_len
    V = kp["proj_w"].shape[-1]
    weights = (kp["wqkv"], kp["bqkv"], kp["wo"], kp["bo"],
               kp["w1"], kp["b1"], kp["w2"], kp["b2"],
               kp["g1"], kp["be1"], kp["g2"], kp["be2"],
               kp["proj_w"], kp["proj_b"])

    return pl.pallas_call(
        functools.partial(_fused_decoder_kernel, image_patch_len),
        out_shape=jax.ShapeDtypeStruct((B, S_cap, V), jnp.float32),
        grid_spec=pltpu.PrefetchScalarGridSpec(
            num_scalar_prefetch=0,
            grid=(B,),
            in_specs=[pl.BlockSpec((1, S, E), lambda b: (b, 0, 0)),
                      _full_spec(kp["pos"])]
                     + [_full_spec(w) for w in weights],
            out_specs=pl.BlockSpec((1, S_cap, V), lambda b: (b, 0, 0)),
        ),
        compiler_params=pltpu.CompilerParams(
            dimension_semantics=("parallel",)),   # one batch element per TC on v7x
    )(combined_embeddings, kp["pos"], *weights)


# ----------------------------- parameters --------------------------------------
def init_params(key):
    """PyTorch-convention f32 parameters (W: (out_features, in_features))."""
    def dense(k, out_f, in_f, scale=0.02):
        return scale * jax.random.normal(k, (out_f, in_f), jnp.float32)

    keys = jax.random.split(key, 2 + LAYERS)
    params = {
        "pos": 0.02 * jax.random.normal(keys[0], (MAX_LEN, EMBED), jnp.float32),
        "proj_w": dense(keys[1], VOCAB, EMBED),
        "proj_b": jnp.zeros((VOCAB,), jnp.float32),
        "layers": [],
    }
    for i in range(LAYERS):
        lk = jax.random.split(keys[2 + i], 4)
        layer = (
            dense(lk[0], 3 * EMBED, EMBED),          # in_proj_weight (3E, E)
            jnp.zeros((3 * EMBED,), jnp.float32),    # in_proj_bias
            dense(lk[1], EMBED, EMBED),              # out_proj.weight
            jnp.zeros((EMBED,), jnp.float32),        # out_proj.bias
            dense(lk[2], FF, EMBED),                 # linear1.weight (4E, E)
            jnp.zeros((FF,), jnp.float32),           # linear1.bias
            dense(lk[3], EMBED, FF),                 # linear2.weight (E, 4E)
            jnp.zeros((EMBED,), jnp.float32),        # linear2.bias
            jnp.ones((EMBED,), jnp.float32),         # norm1 gamma
            jnp.zeros((EMBED,), jnp.float32),        # norm1 beta
            jnp.ones((EMBED,), jnp.float32),         # norm2 gamma
            jnp.zeros((EMBED,), jnp.float32),        # norm2 beta
        )
        params["layers"].append(layer)
    return params


def prepare_kernel_params(params, seq_len):
    """One-time (outside jit) conversion into the fused-kernel layout:
    matmul weights pre-transposed to (in, out) / per-head batched and cast to
    bf16 (MXU-native); biases & LayerNorm params kept f32; stacked over layers;
    1/sqrt(head_dim) folded into the q projection weights and bias."""
    scale = HEAD_DIM ** -0.5
    E, H, D = EMBED, HEADS, HEAD_DIM

    wqkv_l, bqkv_l, wo_l, bo_l = [], [], [], []
    w1_l, b1_l, w2_l, b2_l = [], [], [], []
    g1_l, be1_l, g2_l, be2_l = [], [], [], []
    for (w_in, b_in, w_out, b_out, w1, b1, w2, b2, g1, be1, g2, be2) in params["layers"]:
        def heads(w_part):                     # (E_out=E, E_in=E) -> (H, E_in, D)
            return w_part.reshape(H, D, E).transpose(0, 2, 1)
        wq, wk, wv = w_in[:E], w_in[E:2 * E], w_in[2 * E:]
        bq, bk, bv = b_in[:E], b_in[E:2 * E], b_in[2 * E:]
        wqkv_l.append(jnp.concatenate(
            [heads(wq) * scale, heads(wk), heads(wv)], axis=0))            # (3H, E, D)
        bqkv_l.append(jnp.concatenate(
            [(bq * scale).reshape(H, 1, D), bk.reshape(H, 1, D),
             bv.reshape(H, 1, D)], axis=0))                                # (3H, 1, D)
        wo_l.append(w_out.T.reshape(H, D, E))                              # (H, D, E)
        bo_l.append(b_out[None, :])                                        # (1, E)
        w1_l.append(w1.T); b1_l.append(b1[None, :])                        # (E, FF)
        w2_l.append(w2.T); b2_l.append(b2[None, :])                        # (FF, E)
        g1_l.append(g1[None, :]); be1_l.append(be1[None, :])
        g2_l.append(g2[None, :]); be2_l.append(be2[None, :])

    bf16 = lambda xs: jnp.stack(xs).astype(jnp.bfloat16)
    f32 = lambda xs: jnp.stack(xs).astype(jnp.float32)
    return {
        "pos": params["pos"][:seq_len].astype(jnp.float32),                # (S, E)
        "wqkv": bf16(wqkv_l), "bqkv": f32(bqkv_l),
        "wo": bf16(wo_l), "bo": f32(bo_l),
        "w1": bf16(w1_l), "b1": f32(b1_l),
        "w2": bf16(w2_l), "b2": f32(b2_l),
        "g1": f32(g1_l), "be1": f32(be1_l),
        "g2": f32(g2_l), "be2": f32(be2_l),
        "proj_w": params["proj_w"].T.astype(jnp.bfloat16),                 # (E, V)
        "proj_b": params["proj_b"][None, :].astype(jnp.float32),           # (1, V)
    }


# ----------------------------- main ---------------------------------------------
if __name__ == "__main__":
    key = jax.random.PRNGKey(0)
    k_in, k_p = jax.random.split(key)
    combined_embeddings = jax.random.normal(k_in, (BATCH, SEQ, EMBED), jnp.float32)
    params = init_params(k_p)
    kparams = prepare_kernel_params(params, SEQ)   # one-time weight prep (outside jit)

    # TODO(synk): key_padding_mask path not implemented (forward uses padding_mask=None);
    # dropout is eval-mode identity.
    fwd = jax.jit(lambda x, kp: image_caption_decoder(x, IMAGE_PATCH_LEN, kp))
    logits = fwd(combined_embeddings, kparams)
    jax.block_until_ready(logits)
    assert logits.shape == (BATCH, SEQ - IMAGE_PATCH_LEN, VOCAB)
    assert bool(jnp.all(jnp.isfinite(logits)))
    print("KERNEL_OK")
</pallas_src>

<mosaic_0001>
module attributes {stable_mosaic.version = 11 : i64} {
  func.func @_fused_decoder_kernel(%arg0: i32, %arg1: memref<1x8x128xf32, #tpu.memory_space<vmem>>, %arg2: memref<8x128xf32, #tpu.memory_space<vmem>>, %arg3: memref<2x12x128x32xbf16, #tpu.memory_space<vmem>>, %arg4: memref<2x12x1x32xf32, #tpu.memory_space<vmem>>, %arg5: memref<2x4x32x128xbf16, #tpu.memory_space<vmem>>, %arg6: memref<2x1x128xf32, #tpu.memory_space<vmem>>, %arg7: memref<2x128x512xbf16, #tpu.memory_space<vmem>>, %arg8: memref<2x1x512xf32, #tpu.memory_space<vmem>>, %arg9: memref<2x512x128xbf16, #tpu.memory_space<vmem>>, %arg10: memref<2x1x128xf32, #tpu.memory_space<vmem>>, %arg11: memref<2x1x128xf32, #tpu.memory_space<vmem>>, %arg12: memref<2x1x128xf32, #tpu.memory_space<vmem>>, %arg13: memref<2x1x128xf32, #tpu.memory_space<vmem>>, %arg14: memref<2x1x128xf32, #tpu.memory_space<vmem>>, %arg15: memref<128x256xbf16, #tpu.memory_space<vmem>>, %arg16: memref<1x256xf32, #tpu.memory_space<vmem>>, %arg17: memref<1x5x256xf32, #tpu.memory_space<vmem>>) attributes {dimension_semantics = [#tpu.dimension_semantics<parallel>], iteration_bounds = array<i64: 2>, scalar_prefetch = 0 : i64, scratch_operands = 0 : i64, tpu.core_type = #tpu.core_type<tc>, window_params = [{transform_indices = @transform_0, window_bounds = array<i64: 1, 8, 128>}, {pipeline_mode = #tpu.pipeline_mode<synchronous>, transform_indices = @transform_1, window_bounds = array<i64: 8, 128>}, {pipeline_mode = #tpu.pipeline_mode<synchronous>, transform_indices = @transform_2, window_bounds = array<i64: 2, 12, 128, 32>}, {pipeline_mode = #tpu.pipeline_mode<synchronous>, transform_indices = @transform_3, window_bounds = array<i64: 2, 12, 1, 32>}, {pipeline_mode = #tpu.pipeline_mode<synchronous>, transform_indices = @transform_4, window_bounds = array<i64: 2, 4, 32, 128>}, {pipeline_mode = #tpu.pipeline_mode<synchronous>, transform_indices = @transform_5, window_bounds = array<i64: 2, 1, 128>}, {pipeline_mode = #tpu.pipeline_mode<synchronous>, transform_indices = @transform_6, window_bounds = array<i64: 2, 128, 512>}, {pipeline_mode = #tpu.pipeline_mode<synchronous>, transform_indices = @transform_7, window_bounds = array<i64: 2, 1, 512>}, {pipeline_mode = #tpu.pipeline_mode<synchronous>, transform_indices = @transform_8, window_bounds = array<i64: 2, 512, 128>}, {pipeline_mode = #tpu.pipeline_mode<synchronous>, transform_indices = @transform_9, window_bounds = array<i64: 2, 1, 128>}, {pipeline_mode = #tpu.pipeline_mode<synchronous>, transform_indices = @transform_10, window_bounds = array<i64: 2, 1, 128>}, {pipeline_mode = #tpu.pipeline_mode<synchronous>, transform_indices = @transform_11, window_bounds = array<i64: 2, 1, 128>}, {pipeline_mode = #tpu.pipeline_mode<synchronous>, transform_indices = @transform_12, window_bounds = array<i64: 2, 1, 128>}, {pipeline_mode = #tpu.pipeline_mode<synchronous>, transform_indices = @transform_13, window_bounds = array<i64: 2, 1, 128>}, {pipeline_mode = #tpu.pipeline_mode<synchronous>, transform_indices = @transform_14, window_bounds = array<i64: 128, 256>}, {pipeline_mode = #tpu.pipeline_mode<synchronous>, transform_indices = @transform_15, window_bounds = array<i64: 1, 256>}, {transform_indices = @transform_16, window_bounds = array<i64: 1, 5, 256>}]} {
    %c0 = arith.constant 0 : index
    %c0_0 = arith.constant 0 : index
    %c0_1 = arith.constant 0 : index
    %0 = vector.load %arg1[%c0, %c0_0, %c0_1] : memref<1x8x128xf32, #tpu.memory_space<vmem>>, vector<1x8x128xf32>
    %1 = vector.shape_cast %0 : vector<1x8x128xf32> to vector<8x128xf32>
    %c0_2 = arith.constant 0 : index
    %c0_3 = arith.constant 0 : index
    %2 = vector.load %arg2[%c0_2, %c0_3] : memref<8x128xf32, #tpu.memory_space<vmem>>, vector<8x128xf32>
    %3 = arith.addf %1, %2 : vector<8x128xf32>
    %4 = tpu.iota {dimensions = array<i32: 0>} : vector<8x8xi32>
    %5 = tpu.iota {dimensions = array<i32: 1>} : vector<8x8xi32>
    %6 = arith.cmpi sle, %5, %4 : vector<8x8xi32>
    %7 = vector.shape_cast %6 : vector<8x8xi1> to vector<1x8x8xi1>
    %8 = arith.truncf %3 : vector<8x128xf32> to vector<8x128xbf16>
    %9 = vector.shape_cast %8 : vector<8x128xbf16> to vector<1x8x128xbf16>
    %10 = vector.shape_cast %9 : vector<1x8x128xbf16> to vector<1x8x128xbf16>
    %11 = vector.broadcast %10 : vector<1x8x128xbf16> to vector<12x8x128xbf16>
    %c0_4 = arith.constant 0 : index
    %c0_5 = arith.constant 0 : index
    %c0_6 = arith.constant 0 : index
    %c0_7 = arith.constant 0 : index
    %12 = vector.load %arg3[%c0_4, %c0_5, %c0_6, %c0_7] : memref<2x12x128x32xbf16, #tpu.memory_space<vmem>>, vector<1x12x128x32xbf16>
    %13 = vector.shape_cast %12 : vector<1x12x128x32xbf16> to vector<12x128x32xbf16>
    "tpu.trace_start"() <{level = 10 : i32, message = "gse,ged->gsd"}> : () -> ()
    %cst = arith.constant dense<0.000000e+00> : vector<12x8x32xf32>
    %14 = tpu.matmul %11, %13, %cst {dimension_numbers = #tpu.dot_dimension_numbers<[2], [1], [1], [2], [0, 0, 0, 1, 1, 2], [0], [0]>} : vector<12x8x128xbf16>, vector<12x128x32xbf16>, vector<12x8x32xf32> -> vector<12x8x32xf32>
    "tpu.trace_stop"() : () -> ()
    %c0_8 = arith.constant 0 : index
    %c0_9 = arith.constant 0 : index
    %c0_10 = arith.constant 0 : index
    %c0_11 = arith.constant 0 : index
    %15 = vector.load %arg4[%c0_8, %c0_9, %c0_10, %c0_11] : memref<2x12x1x32xf32, #tpu.memory_space<vmem>>, vector<1x12x1x32xf32>
    %16 = vector.shape_cast %15 : vector<1x12x1x32xf32> to vector<12x1x32xf32>
    %17 = vector.broadcast %16 : vector<12x1x32xf32> to vector<12x8x32xf32>
    %18 = arith.addf %14, %17 : vector<12x8x32xf32>
    %19 = vector.extract_strided_slice %18 {offsets = [0, 0, 0], sizes = [4, 8, 32], strides = [1, 1, 1]} : vector<12x8x32xf32> to vector<4x8x32xf32>
    %20 = vector.extract_strided_slice %18 {offsets = [4, 0, 0], sizes = [4, 8, 32], strides = [1, 1, 1]} : vector<12x8x32xf32> to vector<4x8x32xf32>
    %21 = vector.extract_strided_slice %18 {offsets = [8, 0, 0], sizes = [4, 8, 32], strides = [1, 1, 1]} : vector<12x8x32xf32> to vector<4x8x32xf32>
    %22 = arith.truncf %19 : vector<4x8x32xf32> to vector<4x8x32xbf16>
    %23 = arith.truncf %20 : vector<4x8x32xf32> to vector<4x8x32xbf16>
    "tpu.trace_start"() <{level = 10 : i32, message = "hqd,hkd->hqk"}> : () -> ()
    %cst_12 = arith.constant dense<0.000000e+00> : vector<4x8x8xf32>
    %24 = tpu.matmul %22, %23, %cst_12 {dimension_numbers = #tpu.dot_dimension_numbers<[2], [2], [1], [1], [0, 0, 0, 1, 1, 1], [0], [0]>} : vector<4x8x32xbf16>, vector<4x8x32xbf16>, vector<4x8x8xf32> -> vector<4x8x8xf32>
    %cst_13 = arith.constant -1.000000e+30 : f32
    "tpu.trace_stop"() : () -> ()
    %25 = vector.shape_cast %7 : vector<1x8x8xi1> to vector<1x8x8xi1>
    %26 = vector.broadcast %25 : vector<1x8x8xi1> to vector<4x8x8xi1>
    %27 = vector.broadcast %cst_13 : f32 to vector<4x8x8xf32>
    %28 = arith.select %26, %24, %27 : vector<4x8x8xi1>, vector<4x8x8xf32>
    %cst_14 = arith.constant dense<0xFF800000> : vector<4x8xf32>
    %29 = vector.multi_reduction <maximumf>, %28, %cst_14 [2] : vector<4x8x8xf32> to vector<4x8xf32>
    %30 = vector.shape_cast %29 : vector<4x8xf32> to vector<4x8x1xf32>
    %31 = vector.broadcast %30 : vector<4x8x1xf32> to vector<4x8x8xf32>
    %32 = arith.subf %28, %31 : vector<4x8x8xf32>
    %33 = math.exp %32 : vector<4x8x8xf32>
    %cst_15 = arith.constant dense<0.000000e+00> : vector<4x8xf32>
    %34 = vector.multi_reduction <add>, %33, %cst_15 [2] : vector<4x8x8xf32> to vector<4x8xf32>
    %35 = vector.shape_cast %34 : vector<4x8xf32> to vector<4x8x1xf32>
    %36 = tpu.reciprocal %35 {approx = true} : vector<4x8x1xf32> -> vector<4x8x1xf32>
    %37 = vector.broadcast %36 : vector<4x8x1xf32> to vector<4x8x8xf32>
    %38 = arith.mulf %33, %37 : vector<4x8x8xf32>
    %39 = arith.truncf %38 : vector<4x8x8xf32> to vector<4x8x8xbf16>
    %40 = arith.truncf %21 : vector<4x8x32xf32> to vector<4x8x32xbf16>
    "tpu.trace_start"() <{level = 10 : i32, message = "hqk,hkd->hqd"}> : () -> ()
    %cst_16 = arith.constant dense<0.000000e+00> : vector<4x8x32xf32>
    %41 = tpu.matmul %39, %40, %cst_16 {dimension_numbers = #tpu.dot_dimension_numbers<[2], [1], [1], [2], [0, 0, 0, 1, 1, 2], [0], [0]>} : vector<4x8x8xbf16>, vector<4x8x32xbf16>, vector<4x8x32xf32> -> vector<4x8x32xf32>
    "tpu.trace_stop"() : () -> ()
    %42 = arith.truncf %41 : vector<4x8x32xf32> to vector<4x8x32xbf16>
    %c0_17 = arith.constant 0 : index
    %c0_18 = arith.constant 0 : index
    %c0_19 = arith.constant 0 : index
    %c0_20 = arith.constant 0 : index
    %43 = vector.load %arg5[%c0_17, %c0_18, %c0_19, %c0_20] : memref<2x4x32x128xbf16, #tpu.memory_space<vmem>>, vector<1x4x32x128xbf16>
    %44 = vector.shape_cast %43 : vector<1x4x32x128xbf16> to vector<4x32x128xbf16>
    "tpu.trace_start"() <{level = 10 : i32, message = "hsd,hde->hse"}> : () -> ()
    %cst_21 = arith.constant dense<0.000000e+00> : vector<4x8x128xf32>
    %45 = tpu.matmul %42, %44, %cst_21 {dimension_numbers = #tpu.dot_dimension_numbers<[2], [1], [1], [2], [0, 0, 0, 1, 1, 2], [0], [0]>} : vector<4x8x32xbf16>, vector<4x32x128xbf16>, vector<4x8x128xf32> -> vector<4x8x128xf32>
    "tpu.trace_stop"() : () -> ()
    %cst_22 = arith.constant dense<0.000000e+00> : vector<8x128xf32>
    %46 = vector.multi_reduction <add>, %45, %cst_22 [0] : vector<4x8x128xf32> to vector<8x128xf32>
    %c0_23 = arith.constant 0 : index
    %c0_24 = arith.constant 0 : index
    %c0_25 = arith.constant 0 : index
    %47 = vector.load %arg6[%c0_23, %c0_24, %c0_25] : memref<2x1x128xf32, #tpu.memory_space<vmem>>, vector<1x1x128xf32>
    %48 = vector.shape_cast %47 : vector<1x1x128xf32> to vector<1x128xf32>
    %49 = vector.broadcast %48 : vector<1x128xf32> to vector<8x128xf32>
    %50 = arith.addf %46, %49 : vector<8x128xf32>
    %51 = arith.addf %3, %50 : vector<8x128xf32>
    %cst_26 = arith.constant dense<0.000000e+00> : vector<8xf32>
    %52 = vector.multi_reduction <add>, %51, %cst_26 [1] : vector<8x128xf32> to vector<8xf32>
    %53 = vector.shape_cast %52 : vector<8xf32> to vector<8x1xf32>
    %cst_27 = arith.constant 1.280000e+02 : f32
    %54 = vector.broadcast %cst_27 : f32 to vector<8x1xf32>
    %55 = arith.divf %53, %54 : vector<8x1xf32>
    %56 = vector.broadcast %55 : vector<8x1xf32> to vector<8x128xf32>
    %57 = arith.subf %51, %56 : vector<8x128xf32>
    %58 = arith.mulf %57, %57 : vector<8x128xf32>
    %cst_28 = arith.constant dense<0.000000e+00> : vector<8xf32>
    %59 = vector.multi_reduction <add>, %58, %cst_28 [1] : vector<8x128xf32> to vector<8xf32>
    %60 = vector.shape_cast %59 : vector<8xf32> to vector<8x1xf32>
    %cst_29 = arith.constant 1.280000e+02 : f32
    %61 = vector.broadcast %cst_29 : f32 to vector<8x1xf32>
    %62 = arith.divf %60, %61 : vector<8x1xf32>
    %63 = vector.broadcast %55 : vector<8x1xf32> to vector<8x128xf32>
    %64 = arith.subf %51, %63 : vector<8x128xf32>
    %cst_30 = arith.constant 9.99999974E-6 : f32
    %65 = vector.broadcast %cst_30 : f32 to vector<8x1xf32>
    %66 = arith.addf %62, %65 : vector<8x1xf32>
    %67 = math.rsqrt %66 : vector<8x1xf32>
    %68 = vector.broadcast %67 : vector<8x1xf32> to vector<8x128xf32>
    %69 = arith.mulf %64, %68 : vector<8x128xf32>
    %c0_31 = arith.constant 0 : index
    %c0_32 = arith.constant 0 : index
    %c0_33 = arith.constant 0 : index
    %70 = vector.load %arg11[%c0_31, %c0_32, %c0_33] : memref<2x1x128xf32, #tpu.memory_space<vmem>>, vector<1x1x128xf32>
    %71 = vector.shape_cast %70 : vector<1x1x128xf32> to vector<1x128xf32>
    %72 = vector.broadcast %71 : vector<1x128xf32> to vector<8x128xf32>
    %73 = arith.mulf %69, %72 : vector<8x128xf32>
    %c0_34 = arith.constant 0 : index
    %c0_35 = arith.constant 0 : index
    %c0_36 = arith.constant 0 : index
    %74 = vector.load %arg12[%c0_34, %c0_35, %c0_36] : memref<2x1x128xf32, #tpu.memory_space<vmem>>, vector<1x1x128xf32>
    %75 = vector.shape_cast %74 : vector<1x1x128xf32> to vector<1x128xf32>
    %76 = vector.broadcast %75 : vector<1x128xf32> to vector<8x128xf32>
    %77 = arith.addf %73, %76 : vector<8x128xf32>
    %78 = arith.truncf %77 : vector<8x128xf32> to vector<8x128xbf16>
    %c0_37 = arith.constant 0 : index
    %c0_38 = arith.constant 0 : index
    %c0_39 = arith.constant 0 : index
    %79 = vector.load %arg7[%c0_37, %c0_38, %c0_39] : memref<2x128x512xbf16, #tpu.memory_space<vmem>>, vector<1x128x512xbf16>
    %80 = vector.shape_cast %79 : vector<1x128x512xbf16> to vector<128x512xbf16>
    %cst_40 = arith.constant dense<0.000000e+00> : vector<8x512xf32>
    %81 = tpu.matmul %78, %80, %cst_40 {dimension_numbers = #tpu.dot_dimension_numbers<[1], [0], [0], [1], [0, 0, 1, 1], [], []>} : vector<8x128xbf16>, vector<128x512xbf16>, vector<8x512xf32> -> vector<8x512xf32>
    %c0_41 = arith.constant 0 : index
    %c0_42 = arith.constant 0 : index
    %c0_43 = arith.constant 0 : index
    %82 = vector.load %arg8[%c0_41, %c0_42, %c0_43] : memref<2x1x512xf32, #tpu.memory_space<vmem>>, vector<1x1x512xf32>
    %83 = vector.shape_cast %82 : vector<1x1x512xf32> to vector<1x512xf32>
    %84 = vector.broadcast %83 : vector<1x512xf32> to vector<8x512xf32>
    %85 = arith.addf %81, %84 : vector<8x512xf32>
    %cst_44 = arith.constant 0.000000e+00 : f32
    %86 = vector.broadcast %cst_44 : f32 to vector<8x512xf32>
    %87 = arith.maximumf %85, %86 : vector<8x512xf32>
    %88 = arith.truncf %87 : vector<8x512xf32> to vector<8x512xbf16>
    %c0_45 = arith.constant 0 : index
    %c0_46 = arith.constant 0 : index
    %c0_47 = arith.constant 0 : index
    %89 = vector.load %arg9[%c0_45, %c0_46, %c0_47] : memref<2x512x128xbf16, #tpu.memory_space<vmem>>, vector<1x512x128xbf16>
    %90 = vector.shape_cast %89 : vector<1x512x128xbf16> to vector<512x128xbf16>
    %cst_48 = arith.constant dense<0.000000e+00> : vector<8x128xf32>
    %91 = tpu.matmul %88, %90, %cst_48 {dimension_numbers = #tpu.dot_dimension_numbers<[1], [0], [0], [1], [0, 0, 1, 1], [], []>} : vector<8x512xbf16>, vector<512x128xbf16>, vector<8x128xf32> -> vector<8x128xf32>
    %c0_49 = arith.constant 0 : index
    %c0_50 = arith.constant 0 : index
    %c0_51 = arith.constant 0 : index
    %92 = vector.load %arg10[%c0_49, %c0_50, %c0_51] : memref<2x1x128xf32, #tpu.memory_space<vmem>>, vector<1x1x128xf32>
    %93 = vector.shape_cast %92 : vector<1x1x128xf32> to vector<1x128xf32>
    %94 = vector.broadcast %93 : vector<1x128xf32> to vector<8x128xf32>
    %95 = arith.addf %91, %94 : vector<8x128xf32>
    %96 = arith.addf %77, %95 : vector<8x128xf32>
    %cst_52 = arith.constant dense<0.000000e+00> : vector<8xf32>
    %97 = vector.multi_reduction <add>, %96, %cst_52 [1] : vector<8x128xf32> to vector<8xf32>
    %98 = vector.shape_cast %97 : vector<8xf32> to vector<8x1xf32>
    %cst_53 = arith.constant 1.280000e+02 : f32
    %99 = vector.broadcast %cst_53 : f32 to vector<8x1xf32>
    %100 = arith.divf %98, %99 : vector<8x1xf32>
    %101 = vector.broadcast %100 : vector<8x1xf32> to vector<8x128xf32>
    %102 = arith.subf %96, %101 : vector<8x128xf32>
    %103 = arith.mulf %102, %102 : vector<8x128xf32>
    %cst_54 = arith.constant dense<0.000000e+00> : vector<8xf32>
    %104 = vector.multi_reduction <add>, %103, %cst_54 [1] : vector<8x128xf32> to vector<8xf32>
    %105 = vector.shape_cast %104 : vector<8xf32> to vector<8x1xf32>
    %cst_55 = arith.constant 1.280000e+02 : f32
    %106 = vector.broadcast %cst_55 : f32 to vector<8x1xf32>
    %107 = arith.divf %105, %106 : vector<8x1xf32>
    %108 = vector.broadcast %100 : vector<8x1xf32> to vector<8x128xf32>
    %109 = arith.subf %96, %108 : vector<8x128xf32>
    %cst_56 = arith.constant 9.99999974E-6 : f32
    %110 = vector.broadcast %cst_56 : f32 to vector<8x1xf32>
    %111 = arith.addf %107, %110 : vector<8x1xf32>
    %112 = math.rsqrt %111 : vector<8x1xf32>
    %113 = vector.broadcast %112 : vector<8x1xf32> to vector<8x128xf32>
    %114 = arith.mulf %109, %113 : vector<8x128xf32>
    %c0_57 = arith.constant 0 : index
    %c0_58 = arith.constant 0 : index
    %c0_59 = arith.constant 0 : index
    %115 = vector.load %arg13[%c0_57, %c0_58, %c0_59] : memref<2x1x128xf32, #tpu.memory_space<vmem>>, vector<1x1x128xf32>
    %116 = vector.shape_cast %115 : vector<1x1x128xf32> to vector<1x128xf32>
    %117 = vector.broadcast %116 : vector<1x128xf32> to vector<8x128xf32>
    %118 = arith.mulf %114, %117 : vector<8x128xf32>
    %c0_60 = arith.constant 0 : index
    %c0_61 = arith.constant 0 : index
    %c0_62 = arith.constant 0 : index
    %119 = vector.load %arg14[%c0_60, %c0_61, %c0_62] : memref<2x1x128xf32, #tpu.memory_space<vmem>>, vector<1x1x128xf32>
    %120 = vector.shape_cast %119 : vector<1x1x128xf32> to vector<1x128xf32>
    %121 = vector.broadcast %120 : vector<1x128xf32> to vector<8x128xf32>
    %122 = arith.addf %118, %121 : vector<8x128xf32>
    %123 = arith.truncf %122 : vector<8x128xf32> to vector<8x128xbf16>
    %124 = vector.shape_cast %123 : vector<8x128xbf16> to vector<1x8x128xbf16>
    %125 = vector.shape_cast %124 : vector<1x8x128xbf16> to vector<1x8x128xbf16>
    %126 = vector.broadcast %125 : vector<1x8x128xbf16> to vector<12x8x128xbf16>
    %c1 = arith.constant 1 : index
    %c0_63 = arith.constant 0 : index
    %c0_64 = arith.constant 0 : index
    %c0_65 = arith.constant 0 : index
    %127 = vector.load %arg3[%c1, %c0_63, %c0_64, %c0_65] : memref<2x12x128x32xbf16, #tpu.memory_space<vmem>>, vector<1x12x128x32xbf16>
    %128 = vector.shape_cast %127 : vector<1x12x128x32xbf16> to vector<12x128x32xbf16>
    "tpu.trace_start"() <{level = 10 : i32, message = "gse,ged->gsd"}> : () -> ()
    %cst_66 = arith.constant dense<0.000000e+00> : vector<12x8x32xf32>
    %129 = tpu.matmul %126, %128, %cst_66 {dimension_numbers = #tpu.dot_dimension_numbers<[2], [1], [1], [2], [0, 0, 0, 1, 1, 2], [0], [0]>} : vector<12x8x128xbf16>, vector<12x128x32xbf16>, vector<12x8x32xf32> -> vector<12x8x32xf32>
    "tpu.trace_stop"() : () -> ()
    %c1_67 = arith.constant 1 : index
    %c0_68 = arith.constant 0 : index
    %c0_69 = arith.constant 0 : index
    %c0_70 = arith.constant 0 : index
    %130 = vector.load %arg4[%c1_67, %c0_68, %c0_69, %c0_70] : memref<2x12x1x32xf32, #tpu.memory_space<vmem>>, vector<1x12x1x32xf32>
    %131 = vector.shape_cast %130 : vector<1x12x1x32xf32> to vector<12x1x32xf32>
    %132 = vector.broadcast %131 : vector<12x1x32xf32> to vector<12x8x32xf32>
    %133 = arith.addf %129, %132 : vector<12x8x32xf32>
    %134 = vector.extract_strided_slice %133 {offsets = [0, 0, 0], sizes = [4, 8, 32], strides = [1, 1, 1]} : vector<12x8x32xf32> to vector<4x8x32xf32>
    %135 = vector.extract_strided_slice %133 {offsets = [4, 0, 0], sizes = [4, 8, 32], strides = [1, 1, 1]} : vector<12x8x32xf32> to vector<4x8x32xf32>
    %136 = vector.extract_strided_slice %133 {offsets = [8, 0, 0], sizes = [4, 8, 32], strides = [1, 1, 1]} : vector<12x8x32xf32> to vector<4x8x32xf32>
    %137 = arith.truncf %134 : vector<4x8x32xf32> to vector<4x8x32xbf16>
    %138 = arith.truncf %135 : vector<4x8x32xf32> to vector<4x8x32xbf16>
    "tpu.trace_start"() <{level = 10 : i32, message = "hqd,hkd->hqk"}> : () -> ()
    %cst_71 = arith.constant dense<0.000000e+00> : vector<4x8x8xf32>
    %139 = tpu.matmul %137, %138, %cst_71 {dimension_numbers = #tpu.dot_dimension_numbers<[2], [2], [1], [1], [0, 0, 0, 1, 1, 1], [0], [0]>} : vector<4x8x32xbf16>, vector<4x8x32xbf16>, vector<4x8x8xf32> -> vector<4x8x8xf32>
    %cst_72 = arith.constant -1.000000e+30 : f32
    "tpu.trace_stop"() : () -> ()
    %140 = vector.shape_cast %7 : vector<1x8x8xi1> to vector<1x8x8xi1>
    %141 = vector.broadcast %140 : vector<1x8x8xi1> to vector<4x8x8xi1>
    %142 = vector.broadcast %cst_72 : f32 to vector<4x8x8xf32>
    %143 = arith.select %141, %139, %142 : vector<4x8x8xi1>, vector<4x8x8xf32>
    %cst_73 = arith.constant dense<0xFF800000> : vector<4x8xf32>
    %144 = vector.multi_reduction <maximumf>, %143, %cst_73 [2] : vector<4x8x8xf32> to vector<4x8xf32>
    %145 = vector.shape_cast %144 : vector<4x8xf32> to vector<4x8x1xf32>
    %146 = vector.broadcast %145 : vector<4x8x1xf32> to vector<4x8x8xf32>
    %147 = arith.subf %143, %146 : vector<4x8x8xf32>
    %148 = math.exp %147 : vector<4x8x8xf32>
    %cst_74 = arith.constant dense<0.000000e+00> : vector<4x8xf32>
    %149 = vector.multi_reduction <add>, %148, %cst_74 [2] : vector<4x8x8xf32> to vector<4x8xf32>
    %150 = vector.shape_cast %149 : vector<4x8xf32> to vector<4x8x1xf32>
    %151 = tpu.reciprocal %150 {approx = true} : vector<4x8x1xf32> -> vector<4x8x1xf32>
    %152 = vector.broadcast %151 : vector<4x8x1xf32> to vector<4x8x8xf32>
    %153 = arith.mulf %148, %152 : vector<4x8x8xf32>
    %154 = arith.truncf %153 : vector<4x8x8xf32> to vector<4x8x8xbf16>
    %155 = arith.truncf %136 : vector<4x8x32xf32> to vector<4x8x32xbf16>
    "tpu.trace_start"() <{level = 10 : i32, message = "hqk,hkd->hqd"}> : () -> ()
    %cst_75 = arith.constant dense<0.000000e+00> : vector<4x8x32xf32>
    %156 = tpu.matmul %154, %155, %cst_75 {dimension_numbers = #tpu.dot_dimension_numbers<[2], [1], [1], [2], [0, 0, 0, 1, 1, 2], [0], [0]>} : vector<4x8x8xbf16>, vector<4x8x32xbf16>, vector<4x8x32xf32> -> vector<4x8x32xf32>
    "tpu.trace_stop"() : () -> ()
    %157 = arith.truncf %156 : vector<4x8x32xf32> to vector<4x8x32xbf16>
    %c1_76 = arith.constant 1 : index
    %c0_77 = arith.constant 0 : index
    %c0_78 = arith.constant 0 : index
    %c0_79 = arith.constant 0 : index
    %158 = vector.load %arg5[%c1_76, %c0_77, %c0_78, %c0_79] : memref<2x4x32x128xbf16, #tpu.memory_space<vmem>>, vector<1x4x32x128xbf16>
    %159 = vector.shape_cast %158 : vector<1x4x32x128xbf16> to vector<4x32x128xbf16>
    "tpu.trace_start"() <{level = 10 : i32, message = "hsd,hde->hse"}> : () -> ()
    %cst_80 = arith.constant dense<0.000000e+00> : vector<4x8x128xf32>
    %160 = tpu.matmul %157, %159, %cst_80 {dimension_numbers = #tpu.dot_dimension_numbers<[2], [1], [1], [2], [0, 0, 0, 1, 1, 2], [0], [0]>} : vector<4x8x32xbf16>, vector<4x32x128xbf16>, vector<4x8x128xf32> -> vector<4x8x128xf32>
    "tpu.trace_stop"() : () -> ()
    %cst_81 = arith.constant dense<0.000000e+00> : vector<8x128xf32>
    %161 = vector.multi_reduction <add>, %160, %cst_81 [0] : vector<4x8x128xf32> to vector<8x128xf32>
    %c1_82 = arith.constant 1 : index
    %c0_83 = arith.constant 0 : index
    %c0_84 = arith.constant 0 : index
    %162 = vector.load %arg6[%c1_82, %c0_83, %c0_84] : memref<2x1x128xf32, #tpu.memory_space<vmem>>, vector<1x1x128xf32>
    %163 = vector.shape_cast %162 : vector<1x1x128xf32> to vector<1x128xf32>
    %164 = vector.broadcast %163 : vector<1x128xf32> to vector<8x128xf32>
    %165 = arith.addf %161, %164 : vector<8x128xf32>
    %166 = arith.addf %122, %165 : vector<8x128xf32>
    %cst_85 = arith.constant dense<0.000000e+00> : vector<8xf32>
    %167 = vector.multi_reduction <add>, %166, %cst_85 [1] : vector<8x128xf32> to vector<8xf32>
    %168 = vector.shape_cast %167 : vector<8xf32> to vector<8x1xf32>
    %cst_86 = arith.constant 1.280000e+02 : f32
    %169 = vector.broadcast %cst_86 : f32 to vector<8x1xf32>
    %170 = arith.divf %168, %169 : vector<8x1xf32>
    %171 = vector.broadcast %170 : vector<8x1xf32> to vector<8x128xf32>
    %172 = arith.subf %166, %171 : vector<8x128xf32>
    %173 = arith.mulf %172, %172 : vector<8x128xf32>
    %cst_87 = arith.constant dense<0.000000e+00> : vector<8xf32>
    %174 = vector.multi_reduction <add>, %173, %cst_87 [1] : vector<8x128xf32> to vector<8xf32>
    %175 = vector.shape_cast %174 : vector<8xf32> to vector<8x1xf32>
    %cst_88 = arith.constant 1.280000e+02 : f32
    %176 = vector.broadcast %cst_88 : f32 to vector<8x1xf32>
    %177 = arith.divf %175, %176 : vector<8x1xf32>
    %178 = vector.broadcast %170 : vector<8x1xf32> to vector<8x128xf32>
    %179 = arith.subf %166, %178 : vector<8x128xf32>
    %cst_89 = arith.constant 9.99999974E-6 : f32
    %180 = vector.broadcast %cst_89 : f32 to vector<8x1xf32>
    %181 = arith.addf %177, %180 : vector<8x1xf32>
    %182 = math.rsqrt %181 : vector<8x1xf32>
    %183 = vector.broadcast %182 : vector<8x1xf32> to vector<8x128xf32>
    %184 = arith.mulf %179, %183 : vector<8x128xf32>
    %c1_90 = arith.constant 1 : index
    %c0_91 = arith.constant 0 : index
    %c0_92 = arith.constant 0 : index
    %185 = vector.load %arg11[%c1_90, %c0_91, %c0_92] : memref<2x1x128xf32, #tpu.memory_space<vmem>>, vector<1x1x128xf32>
    %186 = vector.shape_cast %185 : vector<1x1x128xf32> to vector<1x128xf32>
    %187 = vector.broadcast %186 : vector<1x128xf32> to vector<8x128xf32>
    %188 = arith.mulf %184, %187 : vector<8x128xf32>
    %c1_93 = arith.constant 1 : index
    %c0_94 = arith.constant 0 : index
    %c0_95 = arith.constant 0 : index
    %189 = vector.load %arg12[%c1_93, %c0_94, %c0_95] : memref<2x1x128xf32, #tpu.memory_space<vmem>>, vector<1x1x128xf32>
    %190 = vector.shape_cast %189 : vector<1x1x128xf32> to vector<1x128xf32>
    %191 = vector.broadcast %190 : vector<1x128xf32> to vector<8x128xf32>
    %192 = arith.addf %188, %191 : vector<8x128xf32>
    %193 = arith.truncf %192 : vector<8x128xf32> to vector<8x128xbf16>
    %c1_96 = arith.constant 1 : index
    %c0_97 = arith.constant 0 : index
    %c0_98 = arith.constant 0 : index
    %194 = vector.load %arg7[%c1_96, %c0_97, %c0_98] : memref<2x128x512xbf16, #tpu.memory_space<vmem>>, vector<1x128x512xbf16>
    %195 = vector.shape_cast %194 : vector<1x128x512xbf16> to vector<128x512xbf16>
    %cst_99 = arith.constant dense<0.000000e+00> : vector<8x512xf32>
    %196 = tpu.matmul %193, %195, %cst_99 {dimension_numbers = #tpu.dot_dimension_numbers<[1], [0], [0], [1], [0, 0, 1, 1], [], []>} : vector<8x128xbf16>, vector<128x512xbf16>, vector<8x512xf32> -> vector<8x512xf32>
    %c1_100 = arith.constant 1 : index
    %c0_101 = arith.constant 0 : index
    %c0_102 = arith.constant 0 : index
    %197 = vector.load %arg8[%c1_100, %c0_101, %c0_102] : memref<2x1x512xf32, #tpu.memory_space<vmem>>, vector<1x1x512xf32>
    %198 = vector.shape_cast %197 : vector<1x1x512xf32> to vector<1x512xf32>
    %199 = vector.broadcast %198 : vector<1x512xf32> to vector<8x512xf32>
    %200 = arith.addf %196, %199 : vector<8x512xf32>
    %cst_103 = arith.constant 0.000000e+00 : f32
    %201 = vector.broadcast %cst_103 : f32 to vector<8x512xf32>
    %202 = arith.maximumf %200, %201 : vector<8x512xf32>
    %203 = arith.truncf %202 : vector<8x512xf32> to vector<8x512xbf16>
    %c1_104 = arith.constant 1 : index
    %c0_105 = arith.constant 0 : index
    %c0_106 = arith.constant 0 : index
    %204 = vector.load %arg9[%c1_104, %c0_105, %c0_106] : memref<2x512x128xbf16, #tpu.memory_space<vmem>>, vector<1x512x128xbf16>
    %205 = vector.shape_cast %204 : vector<1x512x128xbf16> to vector<512x128xbf16>
    %cst_107 = arith.constant dense<0.000000e+00> : vector<8x128xf32>
    %206 = tpu.matmul %203, %205, %cst_107 {dimension_numbers = #tpu.dot_dimension_numbers<[1], [0], [0], [1], [0, 0, 1, 1], [], []>} : vector<8x512xbf16>, vector<512x128xbf16>, vector<8x128xf32> -> vector<8x128xf32>
    %c1_108 = arith.constant 1 : index
    %c0_109 = arith.constant 0 : index
    %c0_110 = arith.constant 0 : index
    %207 = vector.load %arg10[%c1_108, %c0_109, %c0_110] : memref<2x1x128xf32, #tpu.memory_space<vmem>>, vector<1x1x128xf32>
    %208 = vector.shape_cast %207 : vector<1x1x128xf32> to vector<1x128xf32>
    %209 = vector.broadcast %208 : vector<1x128xf32> to vector<8x128xf32>
    %210 = arith.addf %206, %209 : vector<8x128xf32>
    %211 = arith.addf %192, %210 : vector<8x128xf32>
    %cst_111 = arith.constant dense<0.000000e+00> : vector<8xf32>
    %212 = vector.multi_reduction <add>, %211, %cst_111 [1] : vector<8x128xf32> to vector<8xf32>
    %213 = vector.shape_cast %212 : vector<8xf32> to vector<8x1xf32>
    %cst_112 = arith.constant 1.280000e+02 : f32
    %214 = vector.broadcast %cst_112 : f32 to vector<8x1xf32>
    %215 = arith.divf %213, %214 : vector<8x1xf32>
    %216 = vector.broadcast %215 : vector<8x1xf32> to vector<8x128xf32>
    %217 = arith.subf %211, %216 : vector<8x128xf32>
    %218 = arith.mulf %217, %217 : vector<8x128xf32>
    %cst_113 = arith.constant dense<0.000000e+00> : vector<8xf32>
    %219 = vector.multi_reduction <add>, %218, %cst_113 [1] : vector<8x128xf32> to vector<8xf32>
    %220 = vector.shape_cast %219 : vector<8xf32> to vector<8x1xf32>
    %cst_114 = arith.constant 1.280000e+02 : f32
    %221 = vector.broadcast %cst_114 : f32 to vector<8x1xf32>
    %222 = arith.divf %220, %221 : vector<8x1xf32>
    %223 = vector.broadcast %215 : vector<8x1xf32> to vector<8x128xf32>
    %224 = arith.subf %211, %223 : vector<8x128xf32>
    %cst_115 = arith.constant 9.99999974E-6 : f32
    %225 = vector.broadcast %cst_115 : f32 to vector<8x1xf32>
    %226 = arith.addf %222, %225 : vector<8x1xf32>
    %227 = math.rsqrt %226 : vector<8x1xf32>
    %228 = vector.broadcast %227 : vector<8x1xf32> to vector<8x128xf32>
    %229 = arith.mulf %224, %228 : vector<8x128xf32>
    %c1_116 = arith.constant 1 : index
    %c0_117 = arith.constant 0 : index
    %c0_118 = arith.constant 0 : index
    %230 = vector.load %arg13[%c1_116, %c0_117, %c0_118] : memref<2x1x128xf32, #tpu.memory_space<vmem>>, vector<1x1x128xf32>
    %231 = vector.shape_cast %230 : vector<1x1x128xf32> to vector<1x128xf32>
    %232 = vector.broadcast %231 : vector<1x128xf32> to vector<8x128xf32>
    %233 = arith.mulf %229, %232 : vector<8x128xf32>
    %c1_119 = arith.constant 1 : index
    %c0_120 = arith.constant 0 : index
    %c0_121 = arith.constant 0 : index
    %234 = vector.load %arg14[%c1_119, %c0_120, %c0_121] : memref<2x1x128xf32, #tpu.memory_space<vmem>>, vector<1x1x128xf32>
    %235 = vector.shape_cast %234 : vector<1x1x128xf32> to vector<1x128xf32>
    %236 = vector.broadcast %235 : vector<1x128xf32> to vector<8x128xf32>
    %237 = arith.addf %233, %236 : vector<8x128xf32>
    %238 = vector.extract_strided_slice %237 {offsets = [3, 0], sizes = [5, 128], strides = [1, 1]} : vector<8x128xf32> to vector<5x128xf32>
    %239 = arith.truncf %238 : vector<5x128xf32> to vector<5x128xbf16>
    %c0_122 = arith.constant 0 : index
    %c0_123 = arith.constant 0 : index
    %240 = vector.load %arg15[%c0_122, %c0_123] : memref<128x256xbf16, #tpu.memory_space<vmem>>, vector<128x256xbf16>
    %cst_124 = arith.constant dense<0.000000e+00> : vector<5x256xf32>
    %241 = tpu.matmul %239, %240, %cst_124 {dimension_numbers = #tpu.dot_dimension_numbers<[1], [0], [0], [1], [0, 0, 1, 1], [], []>} : vector<5x128xbf16>, vector<128x256xbf16>, vector<5x256xf32> -> vector<5x256xf32>
    %c0_125 = arith.constant 0 : index
    %c0_126 = arith.constant 0 : index
    %242 = vector.load %arg16[%c0_125, %c0_126] : memref<1x256xf32, #tpu.memory_space<vmem>>, vector<1x256xf32>
    %243 = vector.broadcast %242 : vector<1x256xf32> to vector<5x256xf32>
    %244 = arith.addf %241, %243 : vector<5x256xf32>
    %c0_127 = arith.constant 0 : index
    %c0_128 = arith.constant 0 : index
    %c0_129 = arith.constant 0 : index
    %245 = vector.load %arg17[%c0_127, %c0_128, %c0_129] : memref<1x5x256xf32, #tpu.memory_space<vmem>>, vector<1x5x256xf32>
    %246 = vector.shape_cast %245 : vector<1x5x256xf32> to vector<5x256xf32>
    %247 = vector.shape_cast %244 : vector<5x256xf32> to vector<1x5x256xf32>
    tpu.vector_store %arg17[%c0_127, %c0_128, %c0_129], %247 {strides = array<i32>} : memref<1x5x256xf32, #tpu.memory_space<vmem>>, vector<1x5x256xf32>,
    return
  }
  func.func @transform_0(%arg0: i32) -> (i32, i32, i32) {
    %c0_i32 = arith.constant 0 : i32
    %c0_i32_0 = arith.constant 0 : i32
    %c0_i32_1 = arith.constant 0 : i32
    return %arg0, %c0_i32, %c0_i32_0 : i32, i32, i32
  }
  func.func @transform_1(%arg0: i32) -> (i32, i32) {
    %c0_i32 = arith.constant 0 : i32
    %c0_i32_0 = arith.constant 0 : i32
    %c0_i32_1 = arith.constant 0 : i32
    return %c0_i32, %c0_i32_0 : i32, i32
  }
  func.func @transform_2(%arg0: i32) -> (i32, i32, i32, i32) {
    %c0_i32 = arith.constant 0 : i32
    %c0_i32_0 = arith.constant 0 : i32
    %c0_i32_1 = arith.constant 0 : i32
    %c0_i32_2 = arith.constant 0 : i32
    %c0_i32_3 = arith.constant 0 : i32
    return %c0_i32, %c0_i32_0, %c0_i32_1, %c0_i32_2 : i32, i32, i32, i32
  }
  func.func @transform_3(%arg0: i32) -> (i32, i32, i32, i32) {
    %c0_i32 = arith.constant 0 : i32
    %c0_i32_0 = arith.constant 0 : i32
    %c0_i32_1 = arith.constant 0 : i32
    %c0_i32_2 = arith.constant 0 : i32
    %c0_i32_3 = arith.constant 0 : i32
    return %c0_i32, %c0_i32_0, %c0_i32_1, %c0_i32_2 : i32, i32, i32, i32
  }
  func.func @transform_4(%arg0: i32) -> (i32, i32, i32, i32) {
    %c0_i32 = arith.constant 0 : i32
    %c0_i32_0 = arith.constant 0 : i32
    %c0_i32_1 = arith.constant 0 : i32
    %c0_i32_2 = arith.constant 0 : i32
    %c0_i32_3 = arith.constant 0 : i32
    return %c0_i32, %c0_i32_0, %c0_i32_1, %c0_i32_2 : i32, i32, i32, i32
  }
  func.func @transform_5(%arg0: i32) -> (i32, i32, i32) {
    %c0_i32 = arith.constant 0 : i32
    %c0_i32_0 = arith.constant 0 : i32
    %c0_i32_1 = arith.constant 0 : i32
    %c0_i32_2 = arith.constant 0 : i32
    return %c0_i32, %c0_i32_0, %c0_i32_1 : i32, i32, i32
  }
  func.func @transform_6(%arg0: i32) -> (i32, i32, i32) {
    %c0_i32 = arith.constant 0 : i32
    %c0_i32_0 = arith.constant 0 : i32
    %c0_i32_1 = arith.constant 0 : i32
    %c0_i32_2 = arith.constant 0 : i32
    return %c0_i32, %c0_i32_0, %c0_i32_1 : i32, i32, i32
  }
  func.func @transform_7(%arg0: i32) -> (i32, i32, i32) {
    %c0_i32 = arith.constant 0 : i32
    %c0_i32_0 = arith.constant 0 : i32
    %c0_i32_1 = arith.constant 0 : i32
    %c0_i32_2 = arith.constant 0 : i32
    return %c0_i32, %c0_i32_0, %c0_i32_1 : i32, i32, i32
  }
  func.func @transform_8(%arg0: i32) -> (i32, i32, i32) {
    %c0_i32 = arith.constant 0 : i32
    %c0_i32_0 = arith.constant 0 : i32
    %c0_i32_1 = arith.constant 0 : i32
    %c0_i32_2 = arith.constant 0 : i32
    return %c0_i32, %c0_i32_0, %c0_i32_1 : i32, i32, i32
  }
  func.func @transform_9(%arg0: i32) -> (i32, i32, i32) {
    %c0_i32 = arith.constant 0 : i32
    %c0_i32_0 = arith.constant 0 : i32
    %c0_i32_1 = arith.constant 0 : i32
    %c0_i32_2 = arith.constant 0 : i32
    return %c0_i32, %c0_i32_0, %c0_i32_1 : i32, i32, i32
  }
  func.func @transform_10(%arg0: i32) -> (i32, i32, i32) {
    %c0_i32 = arith.constant 0 : i32
    %c0_i32_0 = arith.constant 0 : i32
    %c0_i32_1 = arith.constant 0 : i32
    %c0_i32_2 = arith.constant 0 : i32
    return %c0_i32, %c0_i32_0, %c0_i32_1 : i32, i32, i32
  }
  func.func @transform_11(%arg0: i32) -> (i32, i32, i32) {
    %c0_i32 = arith.constant 0 : i32
    %c0_i32_0 = arith.constant 0 : i32
    %c0_i32_1 = arith.constant 0 : i32
    %c0_i32_2 = arith.constant 0 : i32
    return %c0_i32, %c0_i32_0, %c0_i32_1 : i32, i32, i32
  }
  func.func @transform_12(%arg0: i32) -> (i32, i32, i32) {
    %c0_i32 = arith.constant 0 : i32
    %c0_i32_0 = arith.constant 0 : i32
    %c0_i32_1 = arith.constant 0 : i32
    %c0_i32_2 = arith.constant 0 : i32
    return %c0_i32, %c0_i32_0, %c0_i32_1 : i32, i32, i32
  }
  func.func @transform_13(%arg0: i32) -> (i32, i32, i32) {
    %c0_i32 = arith.constant 0 : i32
    %c0_i32_0 = arith.constant 0 : i32
    %c0_i32_1 = arith.constant 0 : i32
    %c0_i32_2 = arith.constant 0 : i32
    return %c0_i32, %c0_i32_0, %c0_i32_1 : i32, i32, i32
  }
  func.func @transform_14(%arg0: i32) -> (i32, i32) {
    %c0_i32 = arith.constant 0 : i32
    %c0_i32_0 = arith.constant 0 : i32
    %c0_i32_1 = arith.constant 0 : i32
    return %c0_i32, %c0_i32_0 : i32, i32
  }
  func.func @transform_15(%arg0: i32) -> (i32, i32) {
    %c0_i32 = arith.constant 0 : i32
    %c0_i32_0 = arith.constant 0 : i32
    %c0_i32_1 = arith.constant 0 : i32
    return %c0_i32, %c0_i32_0 : i32, i32
  }
  func.func @transform_16(%arg0: i32) -> (i32, i32, i32) {
    %c0_i32 = arith.constant 0 : i32
    %c0_i32_0 = arith.constant 0 : i32
    %c0_i32_1 = arith.constant 0 : i32
    return %arg0, %c0_i32, %c0_i32_0 : i32, i32, i32
  }
}

</mosaic_0001>

<llo_original>
// kernel: _lambda_.1
$region0: #{_lambda_.1}
  #allocation0 [shape = 'u32[]', space=smem, size = 0x4, offset = 0x4, fixed_abs, tag = 'smem constant byte address 0x4 - core index']
  #allocation1 [shape = 'u32[144,128]{1,0:T(1,128)}', space=vmem, size = 0x12000, scoped, tag = 'internal scratch']
  %s0 = inlined_call_operand.vmem [shape: f32[2,8,128], index: 0, kind: input, shape index: {}]
  %s1 = inlined_call_operand.vmem [shape: f32[8,128], index: 1, kind: input, shape index: {}]
  %s2 = inlined_call_operand.vmem [shape: bf16[2,12,128,32], index: 2, kind: input, shape index: {}]
  %s3 = inlined_call_operand.vmem [shape: f32[2,12,1,32], index: 3, kind: input, shape index: {}]
  %s4 = inlined_call_operand.vmem [shape: bf16[2,4,32,128], index: 4, kind: input, shape index: {}]
  %s5 = inlined_call_operand.vmem [shape: f32[2,1,128], index: 5, kind: input, shape index: {}]
  %s6 = inlined_call_operand.vmem [shape: bf16[2,128,512], index: 6, kind: input, shape index: {}]
  %s7 = inlined_call_operand.vmem [shape: f32[2,1,512], index: 7, kind: input, shape index: {}]
  %s8 = inlined_call_operand.vmem [shape: bf16[2,512,128], index: 8, kind: input, shape index: {}]
  %s9 = inlined_call_operand.vmem [shape: f32[2,1,128], index: 9, kind: input, shape index: {}]
  %s10 = inlined_call_operand.vmem [shape: f32[2,1,128], index: 10, kind: input, shape index: {}]
  %s11 = inlined_call_operand.vmem [shape: f32[2,1,128], index: 11, kind: input, shape index: {}]
  %s12 = inlined_call_operand.vmem [shape: f32[2,1,128], index: 12, kind: input, shape index: {}]
  %s13 = inlined_call_operand.vmem [shape: f32[2,1,128], index: 13, kind: input, shape index: {}]
  %s14 = inlined_call_operand.vmem [shape: bf16[128,256], index: 14, kind: input, shape index: {}]
  %s15 = inlined_call_operand.vmem [shape: f32[1,256], index: 15, kind: input, shape index: {}]
  %s16 = inlined_call_operand.vmem [shape: f32[2,5,256], index: 16, kind: output, shape index: {}]
  %s17 = sld [smem:[#allocation0]]
  $region97: #{_lambda_.1} parent=0
    _
  %s19 = ssub.s32 1, %s17
  %s20 = scalar_select 0, %s19, %s17
  loop: start=0, step=1, limit=4
  $region2: #{_lambda_.1} parent=0 // loop_pre_header
    _
  $region3: #{_lambda_.1} parent=0 // loop_header
    %s22 = sphi 0, %s26
    %p23 = scmp.ge.s32.totalorder %s22, 4
    %s32 = sphi 0, %s34
    %s35 = sphi 0, %s32
    %s36 = sphi 0, %s35
    %s52 = sphi 0, %s36
    %s56 = sphi 0, %s56
    %s58 = sphi 0, %s56
    %s59 = sphi 0, %s58
    %s73 = sphi 0, %s59
    %s77 = sphi 0, %s77
    %s79 = sphi 0, %s77
    %s80 = sphi 0, %s79
    %s94 = sphi 0, %s80
    %s98 = sphi 0, %s98
    %s100 = sphi 0, %s98
    %s101 = sphi 0, %s100
    %s115 = sphi 0, %s101
    %s119 = sphi 0, %s119
    %s121 = sphi 0, %s119
    %s122 = sphi 0, %s121
    %s136 = sphi 0, %s122
    %s140 = sphi 0, %s140
    %s142 = sphi 0, %s140
    %s143 = sphi 0, %s142
    %s157 = sphi 0, %s143
    %s161 = sphi 0, %s161
    %s163 = sphi 0, %s161
    %s164 = sphi 0, %s163
    %s178 = sphi 0, %s164
    %s182 = sphi 0, %s182
    %s184 = sphi 0, %s182
    %s185 = sphi 0, %s184
    %s199 = sphi 0, %s185
    %s203 = sphi 0, %s203
    %s205 = sphi 0, %s203
    %s206 = sphi 0, %s205
    %s220 = sphi 0, %s206
    %s224 = sphi 0, %s224
    %s226 = sphi 0, %s224
    %s227 = sphi 0, %s226
    %s241 = sphi 0, %s227
    %s245 = sphi 0, %s245
    %s247 = sphi 0, %s245
    %s248 = sphi 0, %s247
    %s262 = sphi 0, %s248
    %s266 = sphi 0, %s266
    %s268 = sphi 0, %s266
    %s269 = sphi 0, %s268
    %s283 = sphi 0, %s269
    %s287 = sphi 0, %s287
    %s289 = sphi 0, %s287
    %s290 = sphi 0, %s289
    %s304 = sphi 0, %s290
    %s308 = sphi 0, %s308
    %s310 = sphi 0, %s308
    %s311 = sphi 0, %s310
    %s325 = sphi 0, %s311
    %s329 = sphi 0, %s329
    %s331 = sphi 0, %s329
    %s332 = sphi 0, %s331
    %s346 = sphi 0, %s332
    %s350 = sphi 0, %s350
    %s352 = sphi 0, %s350
    %s353 = sphi 0, %s352
    %s367 = sphi 0, %s353
    %s373 = sphi 0, %s375
    %s376 = sphi 0, %s373
    %s377 = sphi 0, %s376
    %s393 = sphi 0, %s377
  $region4: #{_lambda_.1} parent=0 // loop_header_branch
    %25 = sbr.rel (%p23) target = $region8
  $region5: #{_lambda_.1} parent=0 // loop_body
    %s27 = ssub.s32 %s22, 1
    %s28 = ssub.s32 %s22, 2
    %s29 = sadd.s32 %s22, 1
    %s30 = ssub.s32 %s22, %s29
    %p31 = scmp.eq.s32.totalorder %s30, 0
    %s33 = sadd.s32 %s32, 1
    %s34 = scalar_select %p31, %s32, %s33
    %p37 = pneg %p31
    %p38 = scmp.eq.s32.totalorder %s22, 1
    %p39 = por %p37, %p38
    %p40 = scmp.ne.s32.totalorder %s32, %s35
    %p41 = scmp.eq.s32.totalorder %s22, 0
    %p42 = por %p40, %p41
    %p43 = scmp.ne.s32.totalorder %s32, %s35
    %p44 = scmp.eq.s32.totalorder %s27, 1
    %p45 = por %p43, %p44
    %p46 = scmp.ne.s32.totalorder %s35, %s36
    %p47 = scmp.eq.s32.totalorder %s27, 0
    %p48 = por %p46, %p47
    %p49 = scmp.ne.s32.totalorder %s35, %s36
    %p50 = scmp.eq.s32.totalorder %s28, 1
    %p51 = por %p49, %p50
    %p53 = scmp.ne.s32.totalorder %s36, %s52
    %p54 = scmp.eq.s32.totalorder %s28, 0
    %p55 = por %p53, %p54
    %s57 = sadd.s32 %s56, 1
    %p60 = scmp.eq.s32.totalorder %s22, 1
    %p61 = scmp.ne.s32.totalorder %s56, %s58
    %p62 = scmp.eq.s32.totalorder %s22, 0
    %p63 = por %p61, %p62
    %p64 = scmp.ne.s32.totalorder %s56, %s58
    %p65 = scmp.eq.s32.totalorder %s27, 1
    %p66 = por %p64, %p65
    %p67 = scmp.ne.s32.totalorder %s58, %s59
    %p68 = scmp.eq.s32.totalorder %s27, 0
    %p69 = por %p67, %p68
    %p70 = scmp.ne.s32.totalorder %s58, %s59
    %p71 = scmp.eq.s32.totalorder %s28, 1
    %p72 = por %p70, %p71
    %p74 = scmp.ne.s32.totalorder %s59, %s73
    %p75 = scmp.eq.s32.totalorder %s28, 0
    %p76 = por %p74, %p75
    %s78 = sadd.s32 %s77, 1
    %p81 = scmp.eq.s32.totalorder %s22, 1
    %p82 = scmp.ne.s32.totalorder %s77, %s79
    %p83 = scmp.eq.s32.totalorder %s22, 0
    %p84 = por %p82, %p83
    %p85 = scmp.ne.s32.totalorder %s77, %s79
    %p86 = scmp.eq.s32.totalorder %s27, 1
    %p87 = por %p85, %p86
    %p88 = scmp.ne.s32.totalorder %s79, %s80
    %p89 = scmp.eq.s32.totalorder %s27, 0
    %p90 = por %p88, %p89
    %p91 = scmp.ne.s32.totalorder %s79, %s80
    %p92 = scmp.eq.s32.totalorder %s28, 1
    %p93 = por %p91, %p92
    %p95 = scmp.ne.s32.totalorder %s80, %s94
    %p96 = scmp.eq.s32.totalorder %s28, 0
    %p97 = por %p95, %p96
    %s99 = sadd.s32 %s98, 1
    %p102 = scmp.eq.s32.totalorder %s22, 1
    %p103 = scmp.ne.s32.totalorder %s98, %s100
    %p104 = scmp.eq.s32.totalorder %s22, 0
    %p105 = por %p103, %p104
    %p106 = scmp.ne.s32.totalorder %s98, %s100
    %p107 = scmp.eq.s32.totalorder %s27, 1
    %p108 = por %p106, %p107
    %p109 = scmp.ne.s32.totalorder %s100, %s101
    %p110 = scmp.eq.s32.totalorder %s27, 0
    %p111 = por %p109, %p110
    %p112 = scmp.ne.s32.totalorder %s100, %s101
    %p113 = scmp.eq.s32.totalorder %s28, 1
    %p114 = por %p112, %p113
    %p116 = scmp.ne.s32.totalorder %s101, %s115
    %p117 = scmp.eq.s32.totalorder %s28, 0
    %p118 = por %p116, %p117
    %s120 = sadd.s32 %s119, 1
    %p123 = scmp.eq.s32.totalorder %s22, 1
    %p124 = scmp.ne.s32.totalorder %s119, %s121
    %p125 = scmp.eq.s32.totalorder %s22, 0
    %p126 = por %p124, %p125
    %p127 = scmp.ne.s32.totalorder %s119, %s121
    %p128 = scmp.eq.s32.totalorder %s27, 1
    %p129 = por %p127, %p128
    %p130 = scmp.ne.s32.totalorder %s121, %s122
    %p131 = scmp.eq.s32.totalorder %s27, 0
    %p132 = por %p130, %p131
    %p133 = scmp.ne.s32.totalorder %s121, %s122
    %p134 = scmp.eq.s32.totalorder %s28, 1
    %p135 = por %p133, %p134
    %p137 = scmp.ne.s32.totalorder %s122, %s136
    %p138 = scmp.eq.s32.totalorder %s28, 0
    %p139 = por %p137, %p138
    %s141 = sadd.s32 %s140, 1
    %p144 = scmp.eq.s32.totalorder %s22, 1
    %p145 = scmp.ne.s32.totalorder %s140, %s142
    %p146 = scmp.eq.s32.totalorder %s22, 0
    %p147 = por %p145, %p146
    %p148 = scmp.ne.s32.totalorder %s140, %s142
    %p149 = scmp.eq.s32.totalorder %s27, 1
    %p150 = por %p148, %p149
    %p151 = scmp.ne.s32.totalorder %s142, %s143
    %p152 = scmp.eq.s32.totalorder %s27, 0
    %p153 = por %p151, %p152
    %p154 = scmp.ne.s32.totalorder %s142, %s143
    %p155 = scmp.eq.s32.totalorder %s28, 1
    %p156 = por %p154, %p155
    %p158 = scmp.ne.s32.totalorder %s143, %s157
    %p159 = scmp.eq.s32.totalorder %s28, 0
    %p160 = por %p158, %p159
    %s162 = sadd.s32 %s161, 1
    %p165 = scmp.eq.s32.totalorder %s22, 1
    %p166 = scmp.ne.s32.totalorder %s161, %s163
    %p167 = scmp.eq.s32.totalorder %s22, 0
    %p168 = por %p166, %p167
    %p169 = scmp.ne.s32.totalorder %s161, %s163
    %p170 = scmp.eq.s32.totalorder %s27, 1
    %p171 = por %p169, %p170
    %p172 = scmp.ne.s32.totalorder %s163, %s164
    %p173 = scmp.eq.s32.totalorder %s27, 0
    %p174 = por %p172, %p173
    %p175 = scmp.ne.s32.totalorder %s163, %s164
    %p176 = scmp.eq.s32.totalorder %s28, 1
    %p177 = por %p175, %p176
    %p179 = scmp.ne.s32.totalorder %s164, %s178
    %p180 = scmp.eq.s32.totalorder %s28, 0
    %p181 = por %p179, %p180
    %s183 = sadd.s32 %s182, 1
    %p186 = scmp.eq.s32.totalorder %s22, 1
    %p187 = scmp.ne.s32.totalorder %s182, %s184
    %p188 = scmp.eq.s32.totalorder %s22, 0
    %p189 = por %p187, %p188
    %p190 = scmp.ne.s32.totalorder %s182, %s184
    %p191 = scmp.eq.s32.totalorder %s27, 1
    %p192 = por %p190, %p191
    %p193 = scmp.ne.s32.totalorder %s184, %s185
    %p194 = scmp.eq.s32.totalorder %s27, 0
    %p195 = por %p193, %p194
    %p196 = scmp.ne.s32.totalorder %s184, %s185
    %p197 = scmp.eq.s32.totalorder %s28, 1
    %p198 = por %p196, %p197
    %p200 = scmp.ne.s32.totalorder %s185, %s199
    %p201 = scmp.eq.s32.totalorder %s28, 0
    %p202 = por %p200, %p201
    %s204 = sadd.s32 %s203, 1
    %p207 = scmp.eq.s32.totalorder %s22, 1
    %p208 = scmp.ne.s32.totalorder %s203, %s205
    %p209 = scmp.eq.s32.totalorder %s22, 0
    %p210 = por %p208, %p209
    %p211 = scmp.ne.s32.totalorder %s203, %s205
    %p212 = scmp.eq.s32.totalorder %s27, 1
    %p213 = por %p211, %p212
    %p214 = scmp.ne.s32.totalorder %s205, %s206
    %p215 = scmp.eq.s32.totalorder %s27, 0
    %p216 = por %p214, %p215
    %p217 = scmp.ne.s32.totalorder %s205, %s206
    %p218 = scmp.eq.s32.totalorder %s28, 1
    %p219 = por %p217, %p218
    %p221 = scmp.ne.s32.totalorder %s206, %s220
    %p222 = scmp.eq.s32.totalorder %s28, 0
    %p223 = por %p221, %p222
    %s225 = sadd.s32 %s224, 1
    %p228 = scmp.eq.s32.totalorder %s22, 1
    %p229 = scmp.ne.s32.totalorder %s224, %s226
    %p230 = scmp.eq.s32.totalorder %s22, 0
    %p231 = por %p229, %p230
    %p232 = scmp.ne.s32.totalorder %s224, %s226
    %p233 = scmp.eq.s32.totalorder %s27, 1
    %p234 = por %p232, %p233
    %p235 = scmp.ne.s32.totalorder %s226, %s227
    %p236 = scmp.eq.s32.totalorder %s27, 0
    %p237 = por %p235, %p236
    %p238 = scmp.ne.s32.totalorder %s226, %s227
    %p239 = scmp.eq.s32.totalorder %s28, 1
    %p240 = por %p238, %p239
    %p242 = scmp.ne.s32.totalorder %s227, %s241
    %p243 = scmp.eq.s32.totalorder %s28, 0
    %p244 = por %p242, %p243
    %s246 = sadd.s32 %s245, 1
    %p249 = scmp.eq.s32.totalorder %s22, 1
    %p250 = scmp.ne.s32.totalorder %s245, %s247
    %p251 = scmp.eq.s32.totalorder %s22, 0
    %p252 = por %p250, %p251
    %p253 = scmp.ne.s32.totalorder %s245, %s247
    %p254 = scmp.eq.s32.totalorder %s27, 1
    %p255 = por %p253, %p254
    %p256 = scmp.ne.s32.totalorder %s247, %s248
    %p257 = scmp.eq.s32.totalorder %s27, 0
    %p258 = por %p256, %p257
    %p259 = scmp.ne.s32.totalorder %s247, %s248
    %p260 = scmp.eq.s32.totalorder %s28, 1
    %p261 = por %p259, %p260
    %p263 = scmp.ne.s32.totalorder %s248, %s262
    %p264 = scmp.eq.s32.totalorder %s28, 0
    %p265 = por %p263, %p264
    %s267 = sadd.s32 %s266, 1
    %p270 = scmp.eq.s32.totalorder %s22, 1
    %p271 = scmp.ne.s32.totalorder %s266, %s268
    %p272 = scmp.eq.s32.totalorder %s22, 0
    %p273 = por %p271, %p272
    %p274 = scmp.ne.s32.totalorder %s266, %s268
    %p275 = scmp.eq.s32.totalorder %s27, 1
    %p276 = por %p274, %p275
    %p277 = scmp.ne.s32.totalorder %s268, %s269
    %p278 = scmp.eq.s32.totalorder %s27, 0
    %p279 = por %p277, %p278
    %p280 = scmp.ne.s32.totalorder %s268, %s269
    %p281 = scmp.eq.s32.totalorder %s28, 1
    %p282 = por %p280, %p281
    %p284 = scmp.ne.s32.totalorder %s269, %s283
    %p285 = scmp.eq.s32.totalorder %s28, 0
    %p286 = por %p284, %p285
    %s288 = sadd.s32 %s287, 1
    %p291 = scmp.eq.s32.totalorder %s22, 1
    %p292 = scmp.ne.s32.totalorder %s287, %s289
    %p293 = scmp.eq.s32.totalorder %s22, 0
    %p294 = por %p292, %p293
    %p295 = scmp.ne.s32.totalorder %s287, %s289
    %p296 = scmp.eq.s32.totalorder %s27, 1
    %p297 = por %p295, %p296
    %p298 = scmp.ne.s32.totalorder %s289, %s290
    %p299 = scmp.eq.s32.totalorder %s27, 0
    %p300 = por %p298, %p299
    %p301 = scmp.ne.s32.totalorder %s289, %s290
    %p302 = scmp.eq.s32.totalorder %s28, 1
    %p303 = por %p301, %p302
    %p305 = scmp.ne.s32.totalorder %s290, %s304
    %p306 = scmp.eq.s32.totalorder %s28, 0
    %p307 = por %p305, %p306
    %s309 = sadd.s32 %s308, 1
    %p312 = scmp.eq.s32.totalorder %s22, 1
    %p313 = scmp.ne.s32.totalorder %s308, %s310
    %p314 = scmp.eq.s32.totalorder %s22, 0
    %p315 = por %p313, %p314
    %p316 = scmp.ne.s32.totalorder %s308, %s310
    %p317 = scmp.eq.s32.totalorder %s27, 1
    %p318 = por %p316, %p317
    %p319 = scmp.ne.s32.totalorder %s310, %s311
    %p320 = scmp.eq.s32.totalorder %s27, 0
    %p321 = por %p319, %p320
    %p322 = scmp.ne.s32.totalorder %s310, %s311
    %p323 = scmp.eq.s32.totalorder %s28, 1
    %p324 = por %p322, %p323
    %p326 = scmp.ne.s32.totalorder %s311, %s325
    %p327 = scmp.eq.s32.totalorder %s28, 0
    %p328 = por %p326, %p327
    %s330 = sadd.s32 %s329, 1
    %p333 = scmp.eq.s32.totalorder %s22, 1
    %p334 = scmp.ne.s32.totalorder %s329, %s331
    %p335 = scmp.eq.s32.totalorder %s22, 0
    %p336 = por %p334, %p335
    %p337 = scmp.ne.s32.totalorder %s329, %s331
    %p338 = scmp.eq.s32.totalorder %s27, 1
    %p339 = por %p337, %p338
    %p340 = scmp.ne.s32.totalorder %s331, %s332
    %p341 = scmp.eq.s32.totalorder %s27, 0
    %p342 = por %p340, %p341
    %p343 = scmp.ne.s32.totalorder %s331, %s332
    %p344 = scmp.eq.s32.totalorder %s28, 1
    %p345 = por %p343, %p344
    %p347 = scmp.ne.s32.totalorder %s332, %s346
    %p348 = scmp.eq.s32.totalorder %s28, 0
    %p349 = por %p347, %p348
    %s351 = sadd.s32 %s350, 1
    %p354 = scmp.eq.s32.totalorder %s22, 1
    %p355 = scmp.ne.s32.totalorder %s350, %s352
    %p356 = scmp.eq.s32.totalorder %s22, 0
    %p357 = por %p355, %p356
    %p358 = scmp.ne.s32.totalorder %s350, %s352
    %p359 = scmp.eq.s32.totalorder %s27, 1
    %p360 = por %p358, %p359
    %p361 = scmp.ne.s32.totalorder %s352, %s353
    %p362 = scmp.eq.s32.totalorder %s27, 0
    %p363 = por %p361, %p362
    %p364 = scmp.ne.s32.totalorder %s352, %s353
    %p365 = scmp.eq.s32.totalorder %s28, 1
    %p366 = por %p364, %p365
    %p368 = scmp.ne.s32.totalorder %s353, %s367
    %p369 = scmp.eq.s32.totalorder %s28, 0
    %p370 = por %p368, %p369
    %s371 = ssub.s32 %s22, %s29
    %p372 = scmp.eq.s32.totalorder %s371, 0
    %s374 = sadd.s32 %s373, 1
    %s375 = scalar_select %p372, %s373, %s374
    %p378 = pneg %p372
    %p379 = scmp.eq.s32.totalorder %s22, 1
    %p380 = por %p378, %p379
    %p381 = scmp.ne.s32.totalorder %s373, %s376
    %p382 = scmp.eq.s32.totalorder %s22, 0
    %p383 = por %p381, %p382
    %p384 = scmp.ne.s32.totalorder %s373, %s376
    %p385 = scmp.eq.s32.totalorder %s27, 1
    %p386 = por %p384, %p385
    %p387 = scmp.ne.s32.totalorder %s376, %s377
    %p388 = scmp.eq.s32.totalorder %s27, 0
    %p389 = por %p387, %p388
    %p390 = scmp.ne.s32.totalorder %s376, %s377
    %p391 = scmp.eq.s32.totalorder %s28, 1
    %p392 = por %p390, %p391
    %p394 = scmp.ne.s32.totalorder %s377, %s393
    %p395 = scmp.eq.s32.totalorder %s28, 0
    %p396 = por %p394, %p395
    %p397 = scmp.le.s32.totalorder 1, %s22
    %p398 = scmp.lt.s32.totalorder %s22, 3
    %p399 = pnand %p397, %p398
    %p400 = pneg %p399
    // Predicated region
    $region9: #{_lambda_.1} parent=5 // pred_check
      _
    $region10: #{_lambda_.1} parent=5 // pred_check_branch
      %402 = sbr.rel (%p399) target = $region12
    $region11: #{_lambda_.1} parent=5 // pred_region
      %s403 = ssub.s32 %s22, 1
      // Predicated region
      $region13: #{_lambda_.1} parent=11 // pred_check
        %p404 = pneg %p69
      $region14: #{_lambda_.1} parent=11 // pred_check_branch
        %406 = sbr.rel (%p404) target = $region16
      $region15: #{_lambda_.1} parent=11 // pred_region
        _
      $region16: #{_lambda_.1} parent=11 // pred_fallthru
        _
      // Predicated region
      $region17: #{_lambda_.1} parent=11 // pred_check
        %p407 = pneg %p90
      $region18: #{_lambda_.1} parent=11 // pred_check_branch
        %409 = sbr.rel (%p407) target = $region20
      $region19: #{_lambda_.1} parent=11 // pred_region
        _
      $region20: #{_lambda_.1} parent=11 // pred_fallthru
        _
      // Predicated region
      $region21: #{_lambda_.1} parent=11 // pred_check
        %p410 = pneg %p111
      $region22: #{_lambda_.1} parent=11 // pred_check_branch
        %412 = sbr.rel (%p410) target = $region24
      $region23: #{_lambda_.1} parent=11 // pred_region
        _
      $region24: #{_lambda_.1} parent=11 // pred_fallthru
        _
      // Predicated region
      $region25: #{_lambda_.1} parent=11 // pred_check
        %p413 = pneg %p132
      $region26: #{_lambda_.1} parent=11 // pred_check_branch
        %415 = sbr.rel (%p413) target = $region28
      $region27: #{_lambda_.1} parent=11 // pred_region
        _
      $region28: #{_lambda_.1} parent=11 // pred_fallthru
        _
      // Predicated region
      $region29: #{_lambda_.1} parent=11 // pred_check
        %p416 = pneg %p153
      $region30: #{_lambda_.1} parent=11 // pred_check_branch
        %418 = sbr.rel (%p416) target = $region32
      $region31: #{_lambda_.1} parent=11 // pred_region
        _
      $region32: #{_lambda_.1} parent=11 // pred_fallthru
        _
      // Predicated region
      $region33: #{_lambda_.1} parent=11 // pred_check
        %p419 = pneg %p174
      $region34: #{_lambda_.1} parent=11 // pred_check_branch
        %421 = sbr.rel (%p419) target = $region36
      $region35: #{_lambda_.1} parent=11 // pred_region
        _
      $region36: #{_lambda_.1} parent=11 // pred_fallthru
        _
      // Predicated region
      $region37: #{_lambda_.1} parent=11 // pred_check
        %p422 = pneg %p195
      $region38: #{_lambda_.1} parent=11 // pred_check_branch
        %424 = sbr.rel (%p422) target = $region40
      $region39: #{_lambda_.1} parent=11 // pred_region
        _
      $region40: #{_lambda_.1} parent=11 // pred_fallthru
        _
      // Predicated region
      $region41: #{_lambda_.1} parent=11 // pred_check
        %p425 = pneg %p216
      $region42: #{_lambda_.1} parent=11 // pred_check_branch
        %427 = sbr.rel (%p425) target = $region44
      $region43: #{_lambda_.1} parent=11 // pred_region
        _
      $region44: #{_lambda_.1} parent=11 // pred_fallthru
        _
      // Predicated region
      $region45: #{_lambda_.1} parent=11 // pred_check
        %p428 = pneg %p237
      $region46: #{_lambda_.1} parent=11 // pred_check_branch
        %430 = sbr.rel (%p428) target = $region48
      $region47: #{_lambda_.1} parent=11 // pred_region
        _
      $region48: #{_lambda_.1} parent=11 // pred_fallthru
        _
      // Predicated region
      $region49: #{_lambda_.1} parent=11 // pred_check
        %p431 = pneg %p258
      $region50: #{_lambda_.1} parent=11 // pred_check_branch
        %433 = sbr.rel (%p431) target = $region52
      $region51: #{_lambda_.1} parent=11 // pred_region
        _
      $region52: #{_lambda_.1} parent=11 // pred_fallthru
        _
      // Predicated region
      $region53: #{_lambda_.1} parent=11 // pred_check
        %p434 = pneg %p279
      $region54: #{_lambda_.1} parent=11 // pred_check_branch
        %436 = sbr.rel (%p434) target = $region56
      $region55: #{_lambda_.1} parent=11 // pred_region
        _
      $region56: #{_lambda_.1} parent=11 // pred_fallthru
        _
      // Predicated region
      $region57: #{_lambda_.1} parent=11 // pred_check
        %p437 = pneg %p300
      $region58: #{_lambda_.1} parent=11 // pred_check_branch
        %439 = sbr.rel (%p437) target = $region60
      $region59: #{_lambda_.1} parent=11 // pred_region
        _
      $region60: #{_lambda_.1} parent=11 // pred_fallthru
        _
      // Predicated region
      $region61: #{_lambda_.1} parent=11 // pred_check
        %p440 = pneg %p321
      $region62: #{_lambda_.1} parent=11 // pred_check_branch
        %442 = sbr.rel (%p440) target = $region64
      $region63: #{_lambda_.1} parent=11 // pred_region
        _
      $region64: #{_lambda_.1} parent=11 // pred_fallthru
        _
      // Predicated region
      $region65: #{_lambda_.1} parent=11 // pred_check
        %p443 = pneg %p342
      $region66: #{_lambda_.1} parent=11 // pred_check_branch
        %445 = sbr.rel (%p443) target = $region68
      $region67: #{_lambda_.1} parent=11 // pred_region
        _
      $region68: #{_lambda_.1} parent=11 // pred_fallthru
        _
      // Predicated region
      $region69: #{_lambda_.1} parent=11 // pred_check
        %p446 = pneg %p363
      $region70: #{_lambda_.1} parent=11 // pred_check_branch
        %448 = sbr.rel (%p446) target = $region72
      $region71: #{_lambda_.1} parent=11 // pred_region
        _
      $region72: #{_lambda_.1} parent=11 // pred_fallthru
        _
    $region12: #{_lambda_.1} parent=5 // pred_fallthru
      _
    %p449 = scmp.lt.s32.totalorder %s22, 2
    // Predicated region
    $region73: #{_lambda_.1} parent=5 // pred_check
      %p450 = pneg %p449
    $region74: #{_lambda_.1} parent=5 // pred_check_branch
      %452 = sbr.rel (%p450) target = $region76
    $region75: #{_lambda_.1} parent=5 // pred_region
      // Predicated region
      $region77: #{_lambda_.1} parent=75 // pred_check
        %p453 = pneg %p42
      $region78: #{_lambda_.1} parent=75 // pred_check_branch
        %455 = sbr.rel (%p453) target = $region80
      $region79: #{_lambda_.1} parent=75 // pred_region
        %p456 = scmp.lt.s32.totalorder %s22, 1
        %s457 = scalar_select %p456, %s22, 1
        %s458 = smul.addr %s457, 8
        %s459 = scalar_lea.vmem %s0, %s458
      $region80: #{_lambda_.1} parent=75 // pred_fallthru
        _
    $region76: #{_lambda_.1} parent=5 // pred_fallthru
      _
    %p460 = scmp.le.s32.totalorder 1, %s22
    %p461 = scmp.lt.s32.totalorder %s22, 3
    %p462 = pnand %p460, %p461
    %p463 = pneg %p462
    // Predicated region
    $region81: #{_lambda_.1} parent=5 // pred_check
      _
    $region82: #{_lambda_.1} parent=5 // pred_check_branch
      %465 = sbr.rel (%p462) target = $region84
    $region83: #{_lambda_.1} parent=5 // pred_region
      %s466 = ssub.s32 %s22, 1
      %p467 = scmp.lt.s32.totalorder %s27, 1
      %s468 = scalar_select %p467, %s27, 1
      %s469 = smul.addr %s468, 8
      %s470 = scalar_lea.vmem %s0, %s469
      %p471 = pneg %p48
      %p472 = pneg %p45
      %p473 = pneg %p69
      %p474 = pneg %p66
      %p475 = pneg %p90
      %p476 = pneg %p87
      %p477 = pneg %p111
      %p478 = pneg %p108
      %p479 = pneg %p132
      %p480 = pneg %p129
      %p481 = pneg %p153
      %p482 = pneg %p150
      %p483 = pneg %p174
      %p484 = pneg %p171
      %p485 = pneg %p195
      %p486 = pneg %p192
      %p487 = pneg %p216
      %p488 = pneg %p213
      %p489 = pneg %p237
      %p490 = pneg %p234
      %p491 = pneg %p258
      %p492 = pneg %p255
      %p493 = pneg %p279
      %p494 = pneg %p276
      %p495 = pneg %p300
      %p496 = pneg %p297
      %p497 = pneg %p321
      %p498 = pneg %p318
      %p499 = pneg %p342
      %p500 = pneg %p339
      %p501 = pneg %p363
      %p502 = pneg %p360
      %p503 = pneg %p389
      %p504 = pneg %p386
      %p505 = scmp.lt.s32.totalorder %s27, 1
      %s506 = scalar_select %p505, %s27, 1
      %s507 = smul.addr %s506, 2
      %s508 = smul.addr %s507, 8
      %s509 = scalar_lea.vmem %s16, %s508
      %p510 = scmp.lt.s32.totalorder %s27, 1
      %s511 = scalar_select %p510, %s27, 1
      %s512 = smul.addr %s511, 8
      %s513 = scalar_lea.vmem %s0, %s512
      %p514 = scmp.lt.s32.totalorder %s27, 1
      %s515 = scalar_select %p514, %s27, 1
      %s516 = smul.addr %s515, 2
      %s517 = smul.addr %s516, 8
      %s518 = scalar_lea.vmem %s16, %s517
      %v520 = vld [vmem:[%s513] sm:$0xff]
      %v521 = vld [vmem:[%s1] sm:$0xff]
      %v522 = vadd.f32 %v520, %v521
      %v523 = vlaneseq
      %v524 = vshrl.u32 %v523, 7
      %v525 = vlaneseq
      %v526 = vand.u32 %v525, 127
      %vm527 = vcmp.le.s32.totalorder %v526, %v524
      %v528 = vpack.c.bf16 %v522, %v522
      %v529 = vld [vmem:[%s2] sm:$0xf]
      %v530 = vld [vmem:[%s2 + $0x4] sm:$0xf]
      %v531 = vld [vmem:[%s2 + $0x8] sm:$0xf]
      %v532 = vld [vmem:[%s2 + $0xc] sm:$0xf]
      %v533 = vld [vmem:[%s2 + $0x10] sm:$0xf]
      %v534 = vld [vmem:[%s2 + $0x14] sm:$0xf]
      %v535 = vld [vmem:[%s2 + $0x18] sm:$0xf]
      %v536 = vld [vmem:[%s2 + $0x1c] sm:$0xf]
      %v537 = vld [vmem:[%s2 + $0x20] sm:$0xf]
      %v538 = vld [vmem:[%s2 + $0x24] sm:$0xf]
      %v539 = vld [vmem:[%s2 + $0x28] sm:$0xf]
      %v540 = vld [vmem:[%s2 + $0x2c] sm:$0xf]
      %v541 = vld [vmem:[%s2 + $0x30] sm:$0xf]
      %v542 = vld [vmem:[%s2 + $0x34] sm:$0xf]
      %v543 = vld [vmem:[%s2 + $0x38] sm:$0xf]
      %v544 = vld [vmem:[%s2 + $0x3c] sm:$0xf]
      %v545 = vld [vmem:[%s2 + $0x40] sm:$0xf]
      %v546 = vld [vmem:[%s2 + $0x44] sm:$0xf]
      %v547 = vld [vmem:[%s2 + $0x48] sm:$0xf]
      %v548 = vld [vmem:[%s2 + $0x4c] sm:$0xf]
      %v549 = vld [vmem:[%s2 + $0x50] sm:$0xf]
      %v550 = vld [vmem:[%s2 + $0x54] sm:$0xf]
      %v551 = vld [vmem:[%s2 + $0x58] sm:$0xf]
      %v552 = vld [vmem:[%s2 + $0x5c] sm:$0xf]
      %v553 = vld [vmem:[%s2 + $0x60] sm:$0xf]
      %v554 = vld [vmem:[%s2 + $0x64] sm:$0xf]
      %v555 = vld [vmem:[%s2 + $0x68] sm:$0xf]
      %v556 = vld [vmem:[%s2 + $0x6c] sm:$0xf]
      %v557 = vld [vmem:[%s2 + $0x70] sm:$0xf]
      %v558 = vld [vmem:[%s2 + $0x74] sm:$0xf]
      %v559 = vld [vmem:[%s2 + $0x78] sm:$0xf]
      %v560 = vld [vmem:[%s2 + $0x7c] sm:$0xf]
      %v561 = vld [vmem:[%s2 + $0x80] sm:$0xf]
      %v562 = vld [vmem:[%s2 + $0x84] sm:$0xf]
      %v563 = vld [vmem:[%s2 + $0x88] sm:$0xf]
      %v564 = vld [vmem:[%s2 + $0x8c] sm:$0xf]
      %v565 = vld [vmem:[%s2 + $0x90] sm:$0xf]
      %v566 = vld [vmem:[%s2 + $0x94] sm:$0xf]
      %v567 = vld [vmem:[%s2 + $0x98] sm:$0xf]
      %v568 = vld [vmem:[%s2 + $0x9c] sm:$0xf]
      %v569 = vld [vmem:[%s2 + $0xa0] sm:$0xf]
      %v570 = vld [vmem:[%s2 + $0xa4] sm:$0xf]
      %v571 = vld [vmem:[%s2 + $0xa8] sm:$0xf]
      %v572 = vld [vmem:[%s2 + $0xac] sm:$0xf]
      %v573 = vld [vmem:[%s2 + $0xb0] sm:$0xf]
      %v574 = vld [vmem:[%s2 + $0xb4] sm:$0xf]
      %v575 = vld [vmem:[%s2 + $0xb8] sm:$0xf]
      %v576 = vld [vmem:[%s2 + $0xbc] sm:$0xf]
      %v577 = vld [vmem:[%s2 + $0xc0] sm:$0xf]
      %v578 = vld [vmem:[%s2 + $0xc4] sm:$0xf]
      %v579 = vld [vmem:[%s2 + $0xc8] sm:$0xf]
      %v580 = vld [vmem:[%s2 + $0xcc] sm:$0xf]
      %v581 = vld [vmem:[%s2 + $0xd0] sm:$0xf]
      %v582 = vld [vmem:[%s2 + $0xd4] sm:$0xf]
      %v583 = vld [vmem:[%s2 + $0xd8] sm:$0xf]
      %v584 = vld [vmem:[%s2 + $0xdc] sm:$0xf]
      %v585 = vld [vmem:[%s2 + $0xe0] sm:$0xf]
      %v586 = vld [vmem:[%s2 + $0xe4] sm:$0xf]
      %v587 = vld [vmem:[%s2 + $0xe8] sm:$0xf]
      %v588 = vld [vmem:[%s2 + $0xec] sm:$0xf]
      %v589 = vld [vmem:[%s2 + $0xf0] sm:$0xf]
      %v590 = vld [vmem:[%s2 + $0xf4] sm:$0xf]
      %v591 = vld [vmem:[%s2 + $0xf8] sm:$0xf]
      %v592 = vld [vmem:[%s2 + $0xfc] sm:$0xf]
      %v593 = vld [vmem:[%s2 + $0x100] sm:$0xf]
      %v594 = vld [vmem:[%s2 + $0x104] sm:$0xf]
      %v595 = vld [vmem:[%s2 + $0x108] sm:$0xf]
      %v596 = vld [vmem:[%s2 + $0x10c] sm:$0xf]
      %v597 = vld [vmem:[%s2 + $0x110] sm:$0xf]
      %v598 = vld [vmem:[%s2 + $0x114] sm:$0xf]
      %v599 = vld [vmem:[%s2 + $0x118] sm:$0xf]
      %v600 = vld [vmem:[%s2 + $0x11c] sm:$0xf]
      %v601 = vld [vmem:[%s2 + $0x120] sm:$0xf]
      %v602 = vld [vmem:[%s2 + $0x124] sm:$0xf]
      %v603 = vld [vmem:[%s2 + $0x128] sm:$0xf]
      %v604 = vld [vmem:[%s2 + $0x12c] sm:$0xf]
      %v605 = vld [vmem:[%s2 + $0x130] sm:$0xf]
      %v606 = vld [vmem:[%s2 + $0x134] sm:$0xf]
      %v607 = vld [vmem:[%s2 + $0x138] sm:$0xf]
      %v608 = vld [vmem:[%s2 + $0x13c] sm:$0xf]
      %v609 = vld [vmem:[%s2 + $0x140] sm:$0xf]
      %v610 = vld [vmem:[%s2 + $0x144] sm:$0xf]
      %v611 = vld [vmem:[%s2 + $0x148] sm:$0xf]
      %v612 = vld [vmem:[%s2 + $0x14c] sm:$0xf]
      %v613 = vld [vmem:[%s2 + $0x150] sm:$0xf]
      %v614 = vld [vmem:[%s2 + $0x154] sm:$0xf]
      %v615 = vld [vmem:[%s2 + $0x158] sm:$0xf]
      %v616 = vld [vmem:[%s2 + $0x15c] sm:$0xf]
      %v617 = vld [vmem:[%s2 + $0x160] sm:$0xf]
      %v618 = vld [vmem:[%s2 + $0x164] sm:$0xf]
      %v619 = vld [vmem:[%s2 + $0x168] sm:$0xf]
      %v620 = vld [vmem:[%s2 + $0x16c] sm:$0xf]
      %v621 = vld [vmem:[%s2 + $0x170] sm:$0xf]
      %v622 = vld [vmem:[%s2 + $0x174] sm:$0xf]
      %v623 = vld [vmem:[%s2 + $0x178] sm:$0xf]
      %v624 = vld [vmem:[%s2 + $0x17c] sm:$0xf]
      %v625 = vld [vmem:[%s2 + $0x180] sm:$0xf]
      %v626 = vld [vmem:[%s2 + $0x184] sm:$0xf]
      %v627 = vld [vmem:[%s2 + $0x188] sm:$0xf]
      %v628 = vld [vmem:[%s2 + $0x18c] sm:$0xf]
      %v629 = vld [vmem:[%s2 + $0x190] sm:$0xf]
      %v630 = vld [vmem:[%s2 + $0x194] sm:$0xf]
      %v631 = vld [vmem:[%s2 + $0x198] sm:$0xf]
      %v632 = vld [vmem:[%s2 + $0x19c] sm:$0xf]
      %v633 = vld [vmem:[%s2 + $0x1a0] sm:$0xf]
      %v634 = vld [vmem:[%s2 + $0x1a4] sm:$0xf]
      %v635 = vld [vmem:[%s2 + $0x1a8] sm:$0xf]
      %v636 = vld [vmem:[%s2 + $0x1ac] sm:$0xf]
      %v637 = vld [vmem:[%s2 + $0x1b0] sm:$0xf]
      %v638 = vld [vmem:[%s2 + $0x1b4] sm:$0xf]
      %v639 = vld [vmem:[%s2 + $0x1b8] sm:$0xf]
      %v640 = vld [vmem:[%s2 + $0x1bc] sm:$0xf]
      %v641 = vld [vmem:[%s2 + $0x1c0] sm:$0xf]
      %v642 = vld [vmem:[%s2 + $0x1c4] sm:$0xf]
      %v643 = vld [vmem:[%s2 + $0x1c8] sm:$0xf]
      %v644 = vld [vmem:[%s2 + $0x1cc] sm:$0xf]
      %v645 = vld [vmem:[%s2 + $0x1d0] sm:$0xf]
      %v646 = vld [vmem:[%s2 + $0x1d4] sm:$0xf]
      %v647 = vld [vmem:[%s2 + $0x1d8] sm:$0xf]
      %v648 = vld [vmem:[%s2 + $0x1dc] sm:$0xf]
      %v649 = vld [vmem:[%s2 + $0x1e0] sm:$0xf]
      %v650 = vld [vmem:[%s2 + $0x1e4] sm:$0xf]
      %v651 = vld [vmem:[%s2 + $0x1e8] sm:$0xf]
      %v652 = vld [vmem:[%s2 + $0x1ec] sm:$0xf]
      %v653 = vld [vmem:[%s2 + $0x1f0] sm:$0xf]
      %v654 = vld [vmem:[%s2 + $0x1f4] sm:$0xf]
      %v655 = vld [vmem:[%s2 + $0x1f8] sm:$0xf]
      %v656 = vld [vmem:[%s2 + $0x1fc] sm:$0xf]
      %v657 = vld [vmem:[%s2 + $0x200] sm:$0xf]
      %v658 = vld [vmem:[%s2 + $0x204] sm:$0xf]
      %v659 = vld [vmem:[%s2 + $0x208] sm:$0xf]
      %v660 = vld [vmem:[%s2 + $0x20c] sm:$0xf]
      %v661 = vld [vmem:[%s2 + $0x210] sm:$0xf]
      %v662 = vld [vmem:[%s2 + $0x214] sm:$0xf]
      %v663 = vld [vmem:[%s2 + $0x218] sm:$0xf]
      %v664 = vld [vmem:[%s2 + $0x21c] sm:$0xf]
      %v665 = vld [vmem:[%s2 + $0x220] sm:$0xf]
      %v666 = vld [vmem:[%s2 + $0x224] sm:$0xf]
      %v667 = vld [vmem:[%s2 + $0x228] sm:$0xf]
      %v668 = vld [vmem:[%s2 + $0x22c] sm:$0xf]
      %v669 = vld [vmem:[%s2 + $0x230] sm:$0xf]
      %v670 = vld [vmem:[%s2 + $0x234] sm:$0xf]
      %v671 = vld [vmem:[%s2 + $0x238] sm:$0xf]
      %v672 = vld [vmem:[%s2 + $0x23c] sm:$0xf]
      %v673 = vld [vmem:[%s2 + $0x240] sm:$0xf]
      %v674 = vld [vmem:[%s2 + $0x244] sm:$0xf]
      %v675 = vld [vmem:[%s2 + $0x248] sm:$0xf]
      %v676 = vld [vmem:[%s2 + $0x24c] sm:$0xf]
      %v677 = vld [vmem:[%s2 + $0x250] sm:$0xf]
      %v678 = vld [vmem:[%s2 + $0x254] sm:$0xf]
      %v679 = vld [vmem:[%s2 + $0x258] sm:$0xf]
      %v680 = vld [vmem:[%s2 + $0x25c] sm:$0xf]
      %v681 = vld [vmem:[%s2 + $0x260] sm:$0xf]
      %v682 = vld [vmem:[%s2 + $0x264] sm:$0xf]
      %v683 = vld [vmem:[%s2 + $0x268] sm:$0xf]
      %v684 = vld [vmem:[%s2 + $0x26c] sm:$0xf]
      %v685 = vld [vmem:[%s2 + $0x270] sm:$0xf]
      %v686 = vld [vmem:[%s2 + $0x274] sm:$0xf]
      %v687 = vld [vmem:[%s2 + $0x278] sm:$0xf]
      %v688 = vld [vmem:[%s2 + $0x27c] sm:$0xf]
      %v689 = vld [vmem:[%s2 + $0x280] sm:$0xf]
      %v690 = vld [vmem:[%s2 + $0x284] sm:$0xf]
      %v691 = vld [vmem:[%s2 + $0x288] sm:$0xf]
      %v692 = vld [vmem:[%s2 + $0x28c] sm:$0xf]
      %v693 = vld [vmem:[%s2 + $0x290] sm:$0xf]
      %v694 = vld [vmem:[%s2 + $0x294] sm:$0xf]
      %v695 = vld [vmem:[%s2 + $0x298] sm:$0xf]
      %v696 = vld [vmem:[%s2 + $0x29c] sm:$0xf]
      %v697 = vld [vmem:[%s2 + $0x2a0] sm:$0xf]
      %v698 = vld [vmem:[%s2 + $0x2a4] sm:$0xf]
      %v699 = vld [vmem:[%s2 + $0x2a8] sm:$0xf]
      %v700 = vld [vmem:[%s2 + $0x2ac] sm:$0xf]
      %v701 = vld [vmem:[%s2 + $0x2b0] sm:$0xf]
      %v702 = vld [vmem:[%s2 + $0x2b4] sm:$0xf]
      %v703 = vld [vmem:[%s2 + $0x2b8] sm:$0xf]
      %v704 = vld [vmem:[%s2 + $0x2bc] sm:$0xf]
      %v705 = vld [vmem:[%s2 + $0x2c0] sm:$0xf]
      %v706 = vld [vmem:[%s2 + $0x2c4] sm:$0xf]
      %v707 = vld [vmem:[%s2 + $0x2c8] sm:$0xf]
      %v708 = vld [vmem:[%s2 + $0x2cc] sm:$0xf]
      %v709 = vld [vmem:[%s2 + $0x2d0] sm:$0xf]
      %v710 = vld [vmem:[%s2 + $0x2d4] sm:$0xf]
      %v711 = vld [vmem:[%s2 + $0x2d8] sm:$0xf]
      %v712 = vld [vmem:[%s2 + $0x2dc] sm:$0xf]
      %v713 = vld [vmem:[%s2 + $0x2e0] sm:$0xf]
      %v714 = vld [vmem:[%s2 + $0x2e4] sm:$0xf]
      %v715 = vld [vmem:[%s2 + $0x2e8] sm:$0xf]
      %v716 = vld [vmem:[%s2 + $0x2ec] sm:$0xf]
      %v717 = vld [vmem:[%s2 + $0x2f0] sm:$0xf]
      %v718 = vld [vmem:[%s2 + $0x2f4] sm:$0xf]
      %v719 = vld [vmem:[%s2 + $0x2f8] sm:$0xf]
      %v720 = vld [vmem:[%s2 + $0x2fc] sm:$0xf]
      %v721 = vld [vmem:[%s3] sm:$0x1]
      %v722 = vld [vmem:[%s3 + $0x1] sm:$0x1]
      %v723 = vld [vmem:[%s3 + $0x2] sm:$0x1]
      %v724 = vld [vmem:[%s3 + $0x3] sm:$0x1]
      %v725 = vld [vmem:[%s3 + $0x4] sm:$0x1]
      %v726 = vld [vmem:[%s3 + $0x5] sm:$0x1]
      %v727 = vld [vmem:[%s3 + $0x6] sm:$0x1]
      %v728 = vld [vmem:[%s3 + $0x7] sm:$0x1]
      %v729 = vld [vmem:[%s3 + $0x8] sm:$0x1]
      %v730 = vld [vmem:[%s3 + $0x9] sm:$0x1]
      %v731 = vld [vmem:[%s3 + $0xa] sm:$0x1]
      %v732 = vld [vmem:[%s3 + $0xb] sm:$0x1]
      %v745 = vlaneseq
      %v746 = vshrl.u32 %v745, 7
      %v747 = vsub.s32 0, %v746
      %v748 = vrot.slane %v721, %v747
      %v749 = vlaneseq
      %v750 = vshrl.u32 %v749, 7
      %v751 = vsub.s32 0, %v750
      %v752 = vrot.slane %v722, %v751
      %v753 = vlaneseq
      %v754 = vshrl.u32 %v753, 7
      %v755 = vsub.s32 0, %v754
      %v756 = vrot.slane %v723, %v755
      %v757 = vlaneseq
      %v758 = vshrl.u32 %v757, 7
      %v759 = vsub.s32 0, %v758
      %v760 = vrot.slane %v724, %v759
      %v761 = vlaneseq
      %v762 = vshrl.u32 %v761, 7
      %v763 = vsub.s32 0, %v762
      %v764 = vrot.slane %v725, %v763
      %v765 = vlaneseq
      %v766 = vshrl.u32 %v765, 7
      %v767 = vsub.s32 0, %v766
      %v768 = vrot.slane %v726, %v767
      %v769 = vlaneseq
      %v770 = vshrl.u32 %v769, 7
      %v771 = vsub.s32 0, %v770
      %v772 = vrot.slane %v727, %v771
      %v773 = vlaneseq
      %v774 = vshrl.u32 %v773, 7
      %v775 = vsub.s32 0, %v774
      %v776 = vrot.slane %v728, %v775
      %v777 = vlaneseq
      %v778 = vshrl.u32 %v777, 7
      %v779 = vsub.s32 0, %v778
      %v780 = vrot.slane %v729, %v779
      %v781 = vlaneseq
      %v782 = vshrl.u32 %v781, 7
      %v783 = vsub.s32 0, %v782
      %v784 = vrot.slane %v730, %v783
      %v785 = vlaneseq
      %v786 = vshrl.u32 %v785, 7
      %v787 = vsub.s32 0, %v786
      %v788 = vrot.slane %v731, %v787
      %v789 = vlaneseq
      %v790 = vshrl.u32 %v789, 7
      %v791 = vsub.s32 0, %v790
      %v792 = vrot.slane %v732, %v791
      %v821 = vunpack.c.l.b16 %v529
      %v822 = vunpack.c.l.b16 %v530
      %v823 = vunpack.c.l.b16 %v531
      %v824 = vunpack.c.l.b16 %v532
      %v825 = vunpack.c.l.b16 %v533
      %v826 = vunpack.c.l.b16 %v534
      %v827 = vunpack.c.l.b16 %v535
      %v828 = vunpack.c.l.b16 %v536
      %v829 = vunpack.c.l.b16 %v537
      %v830 = vunpack.c.l.b16 %v538
      %v831 = vunpack.c.l.b16 %v539
      %v832 = vunpack.c.l.b16 %v540
      %v833 = vunpack.c.l.b16 %v541
      %v834 = vunpack.c.l.b16 %v542
      %v835 = vunpack.c.l.b16 %v543
      %v836 = vunpack.c.l.b16 %v544
      %v837 = vpack.c.b16 %v822, %v821
      %v838 = vpack.c.b16 %v824, %v823
      %v839 = vpack.c.b16 %v826, %v825
      %v840 = vpack.c.b16 %v828, %v827
      %v841 = vpack.c.b16 %v830, %v829
      %v842 = vpack.c.b16 %v832, %v831
      %v843 = vpack.c.b16 %v834, %v833
      %v844 = vpack.c.b16 %v836, %v835
      %853 = vmatprep.subr.bf16.mxu0 0
      %854 = vmatpush1.bf16.msra.mxu0 %v837
      %855 = vmatprep.subr.bf16.mxu0 0
      %856 = vmatpush1.bf16.msra.mxu0 %v838
      %857 = vmatprep.subr.bf16.mxu0 0
      %858 = vmatpush1.bf16.msra.mxu0 %v839
      %859 = vmatprep.subr.bf16.mxu0 0
      %860 = vmatpush1.bf16.msra.mxu0 %v840
      %861 = vmatprep.subr.bf16.mxu0 0
      %862 = vmatpush1.bf16.msra.mxu0 %v841
      %863 = vmatprep.subr.bf16.mxu0 0
      %864 = vmatpush1.bf16.msra.mxu0 %v842
      %865 = vmatprep.subr.bf16.mxu0 0
      %866 = vmatpush1.bf16.msra.mxu0 %v843
      %867 = vmatprep.subr.bf16.mxu0 0
      %868 = vmatpush1.bf16.msra.mxu0 %v844
      %869 = vmatprep.subr.bf16.mxu0 0
      %870 = vmatpush1.bf16.msra.mxu0 0
      %871 = vmatprep.subr.bf16.mxu0 0
      %872 = vmatpush1.bf16.msra.mxu0 0
      %873 = vmatprep.subr.bf16.mxu0 0
      %874 = vmatpush1.bf16.msra.mxu0 0
      %875 = vmatprep.subr.bf16.mxu0 0
      %876 = vmatpush1.bf16.msra.mxu0 0
      %877 = vmatprep.subr.bf16.mxu0 0
      %878 = vmatpush1.bf16.msra.mxu0 0
      %879 = vmatprep.subr.bf16.mxu0 0
      %880 = vmatpush1.bf16.msra.mxu0 0
      %881 = vmatprep.subr.bf16.mxu0 0
      %882 = vmatpush1.bf16.msra.mxu0 0
      %883 = vmatprep.subr.bf16.mxu0 0
      %884 = vmatpush1.bf16.msra.mxu0 0
      %885 = vmatprep.mubr.bf16.mxu0 0
      %886 = vmatmul.mubr.bf16.gmra.mrb[0].mxu0 %v528
      %v887 = vpop.f32.mrb[0].mxu0
      %v888 = vadd.f32 %v748, %v887
      %v889 = vpop.f32.mrb[0].mxu0
      %v890 = vpop.f32.mrb[0].mxu0
      %v891 = vpop.f32.mrb[0].mxu0
      %892 = vdwg.mxu0
      %v909 = vunpack.c.l.b16 %v545
      %v910 = vunpack.c.l.b16 %v546
      %v911 = vunpack.c.l.b16 %v547
      %v912 = vunpack.c.l.b16 %v548
      %v913 = vunpack.c.l.b16 %v549
      %v914 = vunpack.c.l.b16 %v550
      %v915 = vunpack.c.l.b16 %v551
      %v916 = vunpack.c.l.b16 %v552
      %v917 = vunpack.c.l.b16 %v553
      %v918 = vunpack.c.l.b16 %v554
      %v919 = vunpack.c.l.b16 %v555
      %v920 = vunpack.c.l.b16 %v556
      %v921 = vunpack.c.l.b16 %v557
      %v922 = vunpack.c.l.b16 %v558
      %v923 = vunpack.c.l.b16 %v559
      %v924 = vunpack.c.l.b16 %v560
      %v925 = vpack.c.b16 %v910, %v909
      %v926 = vpack.c.b16 %v912, %v911
      %v927 = vpack.c.b16 %v914, %v913
      %v928 = vpack.c.b16 %v916, %v915
      %v929 = vpack.c.b16 %v918, %v917
      %v930 = vpack.c.b16 %v920, %v919
      %v931 = vpack.c.b16 %v922, %v921
      %v932 = vpack.c.b16 %v924, %v923
      %941 = vmatprep.subr.bf16.mxu0 0
      %942 = vmatpush1.bf16.msra.mxu0 %v925
      %943 = vmatprep.subr.bf16.mxu0 0
      %944 = vmatpush1.bf16.msra.mxu0 %v926
      %945 = vmatprep.subr.bf16.mxu0 0
      %946 = vmatpush1.bf16.msra.mxu0 %v927
      %947 = vmatprep.subr.bf16.mxu0 0
      %948 = vmatpush1.bf16.msra.mxu0 %v928
      %949 = vmatprep.subr.bf16.mxu0 0
      %950 = vmatpush1.bf16.msra.mxu0 %v929
      %951 = vmatprep.subr.bf16.mxu0 0
      %952 = vmatpush1.bf16.msra.mxu0 %v930
      %953 = vmatprep.subr.bf16.mxu0 0
      %954 = vmatpush1.bf16.msra.mxu0 %v931
      %955 = vmatprep.subr.bf16.mxu0 0
      %956 = vmatpush1.bf16.msra.mxu0 %v932
      %957 = vmatprep.subr.bf16.mxu0 0
      %958 = vmatpush1.bf16.msra.mxu0 0
      %959 = vmatprep.subr.bf16.mxu0 0
      %960 = vmatpush1.bf16.msra.mxu0 0
      %961 = vmatprep.subr.bf16.mxu0 0
      %962 = vmatpush1.bf16.msra.mxu0 0
      %963 = vmatprep.subr.bf16.mxu0 0
      %964 = vmatpush1.bf16.msra.mxu0 0
      %965 = vmatprep.subr.bf16.mxu0 0
      %966 = vmatpush1.bf16.msra.mxu0 0
      %967 = vmatprep.subr.bf16.mxu0 0
      %968 = vmatpush1.bf16.msra.mxu0 0
      %969 = vmatprep.subr.bf16.mxu0 0
      %970 = vmatpush1.bf16.msra.mxu0 0
      %971 = vmatprep.subr.bf16.mxu0 0
      %972 = vmatpush1.bf16.msra.mxu0 0
      %973 = vmatprep.mubr.bf16.mxu0 0
      %974 = vmatmul.mubr.bf16.gmra.mrb[0].mxu0 %v528
      %v975 = vpop.f32.mrb[0].mxu0
      %v976 = vadd.f32 %v752, %v975
      %v977 = vpop.f32.mrb[0].mxu0
      %v978 = vpop.f32.mrb[0].mxu0
      %v979 = vpop.f32.mrb[0].mxu0
      %980 = vdwg.mxu0
      %v997 = vunpack.c.l.b16 %v561
      %v998 = vunpack.c.l.b16 %v562
      %v999 = vunpack.c.l.b16 %v563
      %v1000 = vunpack.c.l.b16 %v564
      %v1001 = vunpack.c.l.b16 %v565
      %v1002 = vunpack.c.l.b16 %v566
      %v1003 = vunpack.c.l.b16 %v567
      %v1004 = vunpack.c.l.b16 %v568
      %v1005 = vunpack.c.l.b16 %v569
      %v1006 = vunpack.c.l.b16 %v570
      %v1007 = vunpack.c.l.b16 %v571
      %v1008 = vunpack.c.l.b16 %v572
      %v1009 = vunpack.c.l.b16 %v573
      %v1010 = vunpack.c.l.b16 %v574
      %v1011 = vunpack.c.l.b16 %v575
      %v1012 = vunpack.c.l.b16 %v576
      %v1013 = vpack.c.b16 %v998, %v997
      %v1014 = vpack.c.b16 %v1000, %v999
      %v1015 = vpack.c.b16 %v1002, %v1001
      %v1016 = vpack.c.b16 %v1004, %v1003
      %v1017 = vpack.c.b16 %v1006, %v1005
      %v1018 = vpack.c.b16 %v1008, %v1007
      %v1019 = vpack.c.b16 %v1010, %v1009
      %v1020 = vpack.c.b16 %v1012, %v1011
      %1029 = vmatprep.subr.bf16.mxu0 0
      %1030 = vmatpush1.bf16.msra.mxu0 %v1013
      %1031 = vmatprep.subr.bf16.mxu0 0
      %1032 = vmatpush1.bf16.msra.mxu0 %v1014
      %1033 = vmatprep.subr.bf16.mxu0 0
      %1034 = vmatpush1.bf16.msra.mxu0 %v1015
      %1035 = vmatprep.subr.bf16.mxu0 0
      %1036 = vmatpush1.bf16.msra.mxu0 %v1016
      %1037 = vmatprep.subr.bf16.mxu0 0
      %1038 = vmatpush1.bf16.msra.mxu0 %v1017
      %1039 = vmatprep.subr.bf16.mxu0 0
      %1040 = vmatpush1.bf16.msra.mxu0 %v1018
      %1041 = vmatprep.subr.bf16.mxu0 0
      %1042 = vmatpush1.bf16.msra.mxu0 %v1019
      %1043 = vmatprep.subr.bf16.mxu0 0
      %1044 = vmatpush1.bf16.msra.mxu0 %v1020
      %1045 = vmatprep.subr.bf16.mxu0 0
      %1046 = vmatpush1.bf16.msra.mxu0 0
      %1047 = vmatprep.subr.bf16.mxu0 0
      %1048 = vmatpush1.bf16.msra.mxu0 0
      %1049 = vmatprep.subr.bf16.mxu0 0
      %1050 = vmatpush1.bf16.msra.mxu0 0
      %1051 = vmatprep.subr.bf16.mxu0 0
      %1052 = vmatpush1.bf16.msra.mxu0 0
      %1053 = vmatprep.subr.bf16.mxu0 0
      %1054 = vmatpush1.bf16.msra.mxu0 0
      %1055 = vmatprep.subr.bf16.mxu0 0
      %1056 = vmatpush1.bf16.msra.mxu0 0
      %1057 = vmatprep.subr.bf16.mxu0 0
      %1058 = vmatpush1.bf16.msra.mxu0 0
      %1059 = vmatprep.subr.bf16.mxu0 0
      %1060 = vmatpush1.bf16.msra.mxu0 0
      %1061 = vmatprep.mubr.bf16.mxu0 0
      %1062 = vmatmul.mubr.bf16.gmra.mrb[0].mxu0 %v528
      %v1063 = vpop.f32.mrb[0].mxu0
      %v1064 = vadd.f32 %v756, %v1063
      %v1065 = vpop.f32.mrb[0].mxu0
      %v1066 = vpop.f32.mrb[0].mxu0
      %v1067 = vpop.f32.mrb[0].mxu0
      %1068 = vdwg.mxu0
      %v1085 = vunpack.c.l.b16 %v577
      %v1086 = vunpack.c.l.b16 %v578
      %v1087 = vunpack.c.l.b16 %v579
      %v1088 = vunpack.c.l.b16 %v580
      %v1089 = vunpack.c.l.b16 %v581
      %v1090 = vunpack.c.l.b16 %v582
      %v1091 = vunpack.c.l.b16 %v583
      %v1092 = vunpack.c.l.b16 %v584
      %v1093 = vunpack.c.l.b16 %v585
      %v1094 = vunpack.c.l.b16 %v586
      %v1095 = vunpack.c.l.b16 %v587
      %v1096 = vunpack.c.l.b16 %v588
      %v1097 = vunpack.c.l.b16 %v589
      %v1098 = vunpack.c.l.b16 %v590
      %v1099 = vunpack.c.l.b16 %v591
      %v1100 = vunpack.c.l.b16 %v592
      %v1101 = vpack.c.b16 %v1086, %v1085
      %v1102 = vpack.c.b16 %v1088, %v1087
      %v1103 = vpack.c.b16 %v1090, %v1089
      %v1104 = vpack.c.b16 %v1092, %v1091
      %v1105 = vpack.c.b16 %v1094, %v1093
      %v1106 = vpack.c.b16 %v1096, %v1095
      %v1107 = vpack.c.b16 %v1098, %v1097
      %v1108 = vpack.c.b16 %v1100, %v1099
      %1117 = vmatprep.subr.bf16.mxu0 0
      %1118 = vmatpush1.bf16.msra.mxu0 %v1101
      %1119 = vmatprep.subr.bf16.mxu0 0
      %1120 = vmatpush1.bf16.msra.mxu0 %v1102
      %1121 = vmatprep.subr.bf16.mxu0 0
      %1122 = vmatpush1.bf16.msra.mxu0 %v1103
      %1123 = vmatprep.subr.bf16.mxu0 0
      %1124 = vmatpush1.bf16.msra.mxu0 %v1104
      %1125 = vmatprep.subr.bf16.mxu0 0
      %1126 = vmatpush1.bf16.msra.mxu0 %v1105
      %1127 = vmatprep.subr.bf16.mxu0 0
      %1128 = vmatpush1.bf16.msra.mxu0 %v1106
      %1129 = vmatprep.subr.bf16.mxu0 0
      %1130 = vmatpush1.bf16.msra.mxu0 %v1107
      %1131 = vmatprep.subr.bf16.mxu0 0
      %1132 = vmatpush1.bf16.msra.mxu0 %v1108
      %1133 = vmatprep.subr.bf16.mxu0 0
      %1134 = vmatpush1.bf16.msra.mxu0 0
      %1135 = vmatprep.subr.bf16.mxu0 0
      %1136 = vmatpush1.bf16.msra.mxu0 0
      %1137 = vmatprep.subr.bf16.mxu0 0
      %1138 = vmatpush1.bf16.msra.mxu0 0
      %1139 = vmatprep.subr.bf16.mxu0 0
      %1140 = vmatpush1.bf16.msra.mxu0 0
      %1141 = vmatprep.subr.bf16.mxu0 0
      %1142 = vmatpush1.bf16.msra.mxu0 0
      %1143 = vmatprep.subr.bf16.mxu0 0
      %1144 = vmatpush1.bf16.msra.mxu0 0
      %1145 = vmatprep.subr.bf16.mxu0 0
      %1146 = vmatpush1.bf16.msra.mxu0 0
      %1147 = vmatprep.subr.bf16.mxu0 0
      %1148 = vmatpush1.bf16.msra.mxu0 0
      %1149 = vmatprep.mubr.bf16.mxu0 0
      %1150 = vmatmul.mubr.bf16.gmra.mrb[0].mxu0 %v528
      %v1151 = vpop.f32.mrb[0].mxu0
      %v1152 = vadd.f32 %v760, %v1151
      %v1153 = vpop.f32.mrb[0].mxu0
      %v1154 = vpop.f32.mrb[0].mxu0
      %v1155 = vpop.f32.mrb[0].mxu0
      %1156 = vdwg.mxu0
      %v1173 = vunpack.c.l.b16 %v593
      %v1174 = vunpack.c.l.b16 %v594
      %v1175 = vunpack.c.l.b16 %v595
      %v1176 = vunpack.c.l.b16 %v596
      %v1177 = vunpack.c.l.b16 %v597
      %v1178 = vunpack.c.l.b16 %v598
      %v1179 = vunpack.c.l.b16 %v599
      %v1180 = vunpack.c.l.b16 %v600
      %v1181 = vunpack.c.l.b16 %v601
      %v1182 = vunpack.c.l.b16 %v602
      %v1183 = vunpack.c.l.b16 %v603
      %v1184 = vunpack.c.l.b16 %v604
      %v1185 = vunpack.c.l.b16 %v605
      %v1186 = vunpack.c.l.b16 %v606
      %v1187 = vunpack.c.l.b16 %v607
      %v1188 = vunpack.c.l.b16 %v608
      %v1189 = vpack.c.b16 %v1174, %v1173
      %v1190 = vpack.c.b16 %v1176, %v1175
      %v1191 = vpack.c.b16 %v1178, %v1177
      %v1192 = vpack.c.b16 %v1180, %v1179
      %v1193 = vpack.c.b16 %v1182, %v1181
      %v1194 = vpack.c.b16 %v1184, %v1183
      %v1195 = vpack.c.b16 %v1186, %v1185
      %v1196 = vpack.c.b16 %v1188, %v1187
      %1205 = vmatprep.subr.bf16.mxu0 0
      %1206 = vmatpush1.bf16.msra.mxu0 %v1189
      %1207 = vmatprep.subr.bf16.mxu0 0
      %1208 = vmatpush1.bf16.msra.mxu0 %v1190
      %1209 = vmatprep.subr.bf16.mxu0 0
      %1210 = vmatpush1.bf16.msra.mxu0 %v1191
      %1211 = vmatprep.subr.bf16.mxu0 0
      %1212 = vmatpush1.bf16.msra.mxu0 %v1192
      %1213 = vmatprep.subr.bf16.mxu0 0
      %1214 = vmatpush1.bf16.msra.mxu0 %v1193
      %1215 = vmatprep.subr.bf16.mxu0 0
      %1216 = vmatpush1.bf16.msra.mxu0 %v1194
      %1217 = vmatprep.subr.bf16.mxu0 0
      %1218 = vmatpush1.bf16.msra.mxu0 %v1195
      %1219 = vmatprep.subr.bf16.mxu0 0
      %1220 = vmatpush1.bf16.msra.mxu0 %v1196
      %1221 = vmatprep.subr.bf16.mxu0 0
      %1222 = vmatpush1.bf16.msra.mxu0 0
      %1223 = vmatprep.subr.bf16.mxu0 0
      %1224 = vmatpush1.bf16.msra.mxu0 0
      %1225 = vmatprep.subr.bf16.mxu0 0
      %1226 = vmatpush1.bf16.msra.mxu0 0
      %1227 = vmatprep.subr.bf16.mxu0 0
      %1228 = vmatpush1.bf16.msra.mxu0 0
      %1229 = vmatprep.subr.bf16.mxu0 0
      %1230 = vmatpush1.bf16.msra.mxu0 0
      %1231 = vmatprep.subr.bf16.mxu0 0
      %1232 = vmatpush1.bf16.msra.mxu0 0
      %1233 = vmatprep.subr.bf16.mxu0 0
      %1234 = vmatpush1.bf16.msra.mxu0 0
      %1235 = vmatprep.subr.bf16.mxu0 0
      %1236 = vmatpush1.bf16.msra.mxu0 0
      %1237 = vmatprep.mubr.bf16.mxu0 0
      %1238 = vmatmul.mubr.bf16.gmra.mrb[0].mxu0 %v528
      %v1239 = vpop.f32.mrb[0].mxu0
      %v1240 = vadd.f32 %v764, %v1239
      %v1241 = vpop.f32.mrb[0].mxu0
      %v1242 = vpop.f32.mrb[0].mxu0
      %v1243 = vpop.f32.mrb[0].mxu0
      %1244 = vdwg.mxu0
      %v1261 = vunpack.c.l.b16 %v609
      %v1262 = vunpack.c.l.b16 %v610
      %v1263 = vunpack.c.l.b16 %v611
      %v1264 = vunpack.c.l.b16 %v612
      %v1265 = vunpack.c.l.b16 %v613
      %v1266 = vunpack.c.l.b16 %v614
      %v1267 = vunpack.c.l.b16 %v615
      %v1268 = vunpack.c.l.b16 %v616
      %v1269 = vunpack.c.l.b16 %v617
      %v1270 = vunpack.c.l.b16 %v618
      %v1271 = vunpack.c.l.b16 %v619
      %v1272 = vunpack.c.l.b16 %v620
      %v1273 = vunpack.c.l.b16 %v621
      %v1274 = vunpack.c.l.b16 %v622
      %v1275 = vunpack.c.l.b16 %v623
      %v1276 = vunpack.c.l.b16 %v624
      %v1277 = vpack.c.b16 %v1262, %v1261
      %v1278 = vpack.c.b16 %v1264, %v1263
      %v1279 = vpack.c.b16 %v1266, %v1265
      %v1280 = vpack.c.b16 %v1268, %v1267
      %v1281 = vpack.c.b16 %v1270, %v1269
      %v1282 = vpack.c.b16 %v1272, %v1271
      %v1283 = vpack.c.b16 %v1274, %v1273
      %v1284 = vpack.c.b16 %v1276, %v1275
      %1293 = vmatprep.subr.bf16.mxu0 0
      %1294 = vmatpush1.bf16.msra.mxu0 %v1277
      %1295 = vmatprep.subr.bf16.mxu0 0
      %1296 = vmatpush1.bf16.msra.mxu0 %v1278
      %1297 = vmatprep.subr.bf16.mxu0 0
      %1298 = vmatpush1.bf16.msra.mxu0 %v1279
      %1299 = vmatprep.subr.bf16.mxu0 0
      %1300 = vmatpush1.bf16.msra.mxu0 %v1280
      %1301 = vmatprep.subr.bf16.mxu0 0
      %1302 = vmatpush1.bf16.msra.mxu0 %v1281
      %1303 = vmatprep.subr.bf16.mxu0 0
      %1304 = vmatpush1.bf16.msra.mxu0 %v1282
      %1305 = vmatprep.subr.bf16.mxu0 0
      %1306 = vmatpush1.bf16.msra.mxu0 %v1283
      %1307 = vmatprep.subr.bf16.mxu0 0
      %1308 = vmatpush1.bf16.msra.mxu0 %v1284
      %1309 = vmatprep.subr.bf16.mxu0 0
      %1310 = vmatpush1.bf16.msra.mxu0 0
      %1311 = vmatprep.subr.bf16.mxu0 0
      %1312 = vmatpush1.bf16.msra.mxu0 0
      %1313 = vmatprep.subr.bf16.mxu0 0
      %1314 = vmatpush1.bf16.msra.mxu0 0
      %1315 = vmatprep.subr.bf16.mxu0 0
      %1316 = vmatpush1.bf16.msra.mxu0 0
      %1317 = vmatprep.subr.bf16.mxu0 0
      %1318 = vmatpush1.bf16.msra.mxu0 0
      %1319 = vmatprep.subr.bf16.mxu0 0
      %1320 = vmatpush1.bf16.msra.mxu0 0
      %1321 = vmatprep.subr.bf16.mxu0 0
      %1322 = vmatpush1.bf16.msra.mxu0 0
      %1323 = vmatprep.subr.bf16.mxu0 0
      %1324 = vmatpush1.bf16.msra.mxu0 0
      %1325 = vmatprep.mubr.bf16.mxu0 0
      %1326 = vmatmul.mubr.bf16.gmra.mrb[0].mxu0 %v528
      %v1327 = vpop.f32.mrb[0].mxu0
      %v1328 = vadd.f32 %v768, %v1327
      %v1329 = vpop.f32.mrb[0].mxu0
      %v1330 = vpop.f32.mrb[0].mxu0
      %v1331 = vpop.f32.mrb[0].mxu0
      %1332 = vdwg.mxu0
      %v1349 = vunpack.c.l.b16 %v625
      %v1350 = vunpack.c.l.b16 %v626
      %v1351 = vunpack.c.l.b16 %v627
      %v1352 = vunpack.c.l.b16 %v628
      %v1353 = vunpack.c.l.b16 %v629
      %v1354 = vunpack.c.l.b16 %v630
      %v1355 = vunpack.c.l.b16 %v631
      %v1356 = vunpack.c.l.b16 %v632
      %v1357 = vunpack.c.l.b16 %v633
      %v1358 = vunpack.c.l.b16 %v634
      %v1359 = vunpack.c.l.b16 %v635
      %v1360 = vunpack.c.l.b16 %v636
      %v1361 = vunpack.c.l.b16 %v637
      %v1362 = vunpack.c.l.b16 %v638
      %v1363 = vunpack.c.l.b16 %v639
      %v1364 = vunpack.c.l.b16 %v640
      %v1365 = vpack.c.b16 %v1350, %v1349
      %v1366 = vpack.c.b16 %v1352, %v1351
      %v1367 = vpack.c.b16 %v1354, %v1353
      %v1368 = vpack.c.b16 %v1356, %v1355
      %v1369 = vpack.c.b16 %v1358, %v1357
      %v1370 = vpack.c.b16 %v1360, %v1359
      %v1371 = vpack.c.b16 %v1362, %v1361
      %v1372 = vpack.c.b16 %v1364, %v1363
      %1381 = vmatprep.subr.bf16.mxu0 0
      %1382 = vmatpush1.bf16.msra.mxu0 %v1365
      %1383 = vmatprep.subr.bf16.mxu0 0
      %1384 = vmatpush1.bf16.msra.mxu0 %v1366
      %1385 = vmatprep.subr.bf16.mxu0 0
      %1386 = vmatpush1.bf16.msra.mxu0 %v1367
      %1387 = vmatprep.subr.bf16.mxu0 0
      %1388 = vmatpush1.bf16.msra.mxu0 %v1368
      %1389 = vmatprep.subr.bf16.mxu0 0
      %1390 = vmatpush1.bf16.msra.mxu0 %v1369
      %1391 = vmatprep.subr.bf16.mxu0 0
      %1392 = vmatpush1.bf16.msra.mxu0 %v1370
      %1393 = vmatprep.subr.bf16.mxu0 0
      %1394 = vmatpush1.bf16.msra.mxu0 %v1371
      %1395 = vmatprep.subr.bf16.mxu0 0
      %1396 = vmatpush1.bf16.msra.mxu0 %v1372
      %1397 = vmatprep.subr.bf16.mxu0 0
      %1398 = vmatpush1.bf16.msra.mxu0 0
      %1399 = vmatprep.subr.bf16.mxu0 0
      %1400 = vmatpush1.bf16.msra.mxu0 0
      %1401 = vmatprep.subr.bf16.mxu0 0
      %1402 = vmatpush1.bf16.msra.mxu0 0
      %1403 = vmatprep.subr.bf16.mxu0 0
      %1404 = vmatpush1.bf16.msra.mxu0 0
      %1405 = vmatprep.subr.bf16.mxu0 0
      %1406 = vmatpush1.bf16.msra.mxu0 0
      %1407 = vmatprep.subr.bf16.mxu0 0
      %1408 = vmatpush1.bf16.msra.mxu0 0
      %1409 = vmatprep.subr.bf16.mxu0 0
      %1410 = vmatpush1.bf16.msra.mxu0 0
      %1411 = vmatprep.subr.bf16.mxu0 0
      %1412 = vmatpush1.bf16.msra.mxu0 0
      %1413 = vmatprep.mubr.bf16.mxu0 0
      %1414 = vmatmul.mubr.bf16.gmra.mrb[0].mxu0 %v528
      %v1415 = vpop.f32.mrb[0].mxu0
      %v1416 = vadd.f32 %v772, %v1415
      %v1417 = vpop.f32.mrb[0].mxu0
      %v1418 = vpop.f32.mrb[0].mxu0
      %v1419 = vpop.f32.mrb[0].mxu0
      %1420 = vdwg.mxu0
      %v1437 = vunpack.c.l.b16 %v641
      %v1438 = vunpack.c.l.b16 %v642
      %v1439 = vunpack.c.l.b16 %v643
      %v1440 = vunpack.c.l.b16 %v644
      %v1441 = vunpack.c.l.b16 %v645
      %v1442 = vunpack.c.l.b16 %v646
      %v1443 = vunpack.c.l.b16 %v647
      %v1444 = vunpack.c.l.b16 %v648
      %v1445 = vunpack.c.l.b16 %v649
      %v1446 = vunpack.c.l.b16 %v650
      %v1447 = vunpack.c.l.b16 %v651
      %v1448 = vunpack.c.l.b16 %v652
      %v1449 = vunpack.c.l.b16 %v653
      %v1450 = vunpack.c.l.b16 %v654
      %v1451 = vunpack.c.l.b16 %v655
      %v1452 = vunpack.c.l.b16 %v656
      %v1453 = vpack.c.b16 %v1438, %v1437
      %v1454 = vpack.c.b16 %v1440, %v1439
      %v1455 = vpack.c.b16 %v1442, %v1441
      %v1456 = vpack.c.b16 %v1444, %v1443
      %v1457 = vpack.c.b16 %v1446, %v1445
      %v1458 = vpack.c.b16 %v1448, %v1447
      %v1459 = vpack.c.b16 %v1450, %v1449
      %v1460 = vpack.c.b16 %v1452, %v1451
      %1469 = vmatprep.subr.bf16.mxu0 0
      %1470 = vmatpush1.bf16.msra.mxu0 %v1453
      %1471 = vmatprep.subr.bf16.mxu0 0
      %1472 = vmatpush1.bf16.msra.mxu0 %v1454
      %1473 = vmatprep.subr.bf16.mxu0 0
      %1474 = vmatpush1.bf16.msra.mxu0 %v1455
      %1475 = vmatprep.subr.bf16.mxu0 0
      %1476 = vmatpush1.bf16.msra.mxu0 %v1456
      %1477 = vmatprep.subr.bf16.mxu0 0
      %1478 = vmatpush1.bf16.msra.mxu0 %v1457
      %1479 = vmatprep.subr.bf16.mxu0 0
      %1480 = vmatpush1.bf16.msra.mxu0 %v1458
      %1481 = vmatprep.subr.bf16.mxu0 0
      %1482 = vmatpush1.bf16.msra.mxu0 %v1459
      %1483 = vmatprep.subr.bf16.mxu0 0
      %1484 = vmatpush1.bf16.msra.mxu0 %v1460
      %1485 = vmatprep.subr.bf16.mxu0 0
      %1486 = vmatpush1.bf16.msra.mxu0 0
      %1487 = vmatprep.subr.bf16.mxu0 0
      %1488 = vmatpush1.bf16.msra.mxu0 0
      %1489 = vmatprep.subr.bf16.mxu0 0
      %1490 = vmatpush1.bf16.msra.mxu0 0
      %1491 = vmatprep.subr.bf16.mxu0 0
      %1492 = vmatpush1.bf16.msra.mxu0 0
      %1493 = vmatprep.subr.bf16.mxu0 0
      %1494 = vmatpush1.bf16.msra.mxu0 0
      %1495 = vmatprep.subr.bf16.mxu0 0
      %1496 = vmatpush1.bf16.msra.mxu0 0
      %1497 = vmatprep.subr.bf16.mxu0 0
      %1498 = vmatpush1.bf16.msra.mxu0 0
      %1499 = vmatprep.subr.bf16.mxu0 0
      %1500 = vmatpush1.bf16.msra.mxu0 0
      %1501 = vmatprep.mubr.bf16.mxu0 0
      %1502 = vmatmul.mubr.bf16.gmra.mrb[0].mxu0 %v528
      %v1503 = vpop.f32.mrb[0].mxu0
      %v1504 = vadd.f32 %v776, %v1503
      %v1505 = vpop.f32.mrb[0].mxu0
      %v1506 = vpop.f32.mrb[0].mxu0
      %v1507 = vpop.f32.mrb[0].mxu0
      %1508 = vdwg.mxu0
      %v1525 = vunpack.c.l.b16 %v657
      %v1526 = vunpack.c.l.b16 %v658
      %v1527 = vunpack.c.l.b16 %v659
      %v1528 = vunpack.c.l.b16 %v660
      %v1529 = vunpack.c.l.b16 %v661
      %v1530 = vunpack.c.l.b16 %v662
      %v1531 = vunpack.c.l.b16 %v663
      %v1532 = vunpack.c.l.b16 %v664
      %v1533 = vunpack.c.l.b16 %v665
      %v1534 = vunpack.c.l.b16 %v666
      %v1535 = vunpack.c.l.b16 %v667
      %v1536 = vunpack.c.l.b16 %v668
      %v1537 = vunpack.c.l.b16 %v669
      %v1538 = vunpack.c.l.b16 %v670
      %v1539 = vunpack.c.l.b16 %v671
      %v1540 = vunpack.c.l.b16 %v672
      %v1541 = vpack.c.b16 %v1526, %v1525
      %v1542 = vpack.c.b16 %v1528, %v1527
      %v1543 = vpack.c.b16 %v1530, %v1529
      %v1544 = vpack.c.b16 %v1532, %v1531
      %v1545 = vpack.c.b16 %v1534, %v1533
      %v1546 = vpack.c.b16 %v1536, %v1535
      %v1547 = vpack.c.b16 %v1538, %v1537
      %v1548 = vpack.c.b16 %v1540, %v1539
      %1557 = vmatprep.subr.bf16.mxu0 0
      %1558 = vmatpush1.bf16.msra.mxu0 %v1541
      %1559 = vmatprep.subr.bf16.mxu0 0
      %1560 = vmatpush1.bf16.msra.mxu0 %v1542
      %1561 = vmatprep.subr.bf16.mxu0 0
      %1562 = vmatpush1.bf16.msra.mxu0 %v1543
      %1563 = vmatprep.subr.bf16.mxu0 0
      %1564 = vmatpush1.bf16.msra.mxu0 %v1544
      %1565 = vmatprep.subr.bf16.mxu0 0
      %1566 = vmatpush1.bf16.msra.mxu0 %v1545
      %1567 = vmatprep.subr.bf16.mxu0 0
      %1568 = vmatpush1.bf16.msra.mxu0 %v1546
      %1569 = vmatprep.subr.bf16.mxu0 0
      %1570 = vmatpush1.bf16.msra.mxu0 %v1547
      %1571 = vmatprep.subr.bf16.mxu0 0
      %1572 = vmatpush1.bf16.msra.mxu0 %v1548
      %1573 = vmatprep.subr.bf16.mxu0 0
      %1574 = vmatpush1.bf16.msra.mxu0 0
      %1575 = vmatprep.subr.bf16.mxu0 0
      %1576 = vmatpush1.bf16.msra.mxu0 0
      %1577 = vmatprep.subr.bf16.mxu0 0
      %1578 = vmatpush1.bf16.msra.mxu0 0
      %1579 = vmatprep.subr.bf16.mxu0 0
      %1580 = vmatpush1.bf16.msra.mxu0 0
      %1581 = vmatprep.subr.bf16.mxu0 0
      %1582 = vmatpush1.bf16.msra.mxu0 0
      %1583 = vmatprep.subr.bf16.mxu0 0
      %1584 = vmatpush1.bf16.msra.mxu0 0
      %1585 = vmatprep.subr.bf16.mxu0 0
      %1586 = vmatpush1.bf16.msra.mxu0 0
      %1587 = vmatprep.subr.bf16.mxu0 0
      %1588 = vmatpush1.bf16.msra.mxu0 0
      %1589 = vmatprep.mubr.bf16.mxu0 0
      %1590 = vmatmul.mubr.bf16.gmra.mrb[0].mxu0 %v528
      %v1591 = vpop.f32.mrb[0].mxu0
      %v1592 = vadd.f32 %v780, %v1591
      %v1593 = vpop.f32.mrb[0].mxu0
      %v1594 = vpop.f32.mrb[0].mxu0
      %v1595 = vpop.f32.mrb[0].mxu0
      %1596 = vdwg.mxu0
      %v1613 = vunpack.c.l.b16 %v673
      %v1614 = vunpack.c.l.b16 %v674
      %v1615 = vunpack.c.l.b16 %v675
      %v1616 = vunpack.c.l.b16 %v676
      %v1617 = vunpack.c.l.b16 %v677
      %v1618 = vunpack.c.l.b16 %v678
      %v1619 = vunpack.c.l.b16 %v679
      %v1620 = vunpack.c.l.b16 %v680
      %v1621 = vunpack.c.l.b16 %v681
      %v1622 = vunpack.c.l.b16 %v682
      %v1623 = vunpack.c.l.b16 %v683
      %v1624 = vunpack.c.l.b16 %v684
      %v1625 = vunpack.c.l.b16 %v685
      %v1626 = vunpack.c.l.b16 %v686
      %v1627 = vunpack.c.l.b16 %v687
      %v1628 = vunpack.c.l.b16 %v688
      %v1629 = vpack.c.b16 %v1614, %v1613
      %v1630 = vpack.c.b16 %v1616, %v1615
      %v1631 = vpack.c.b16 %v1618, %v1617
      %v1632 = vpack.c.b16 %v1620, %v1619
      %v1633 = vpack.c.b16 %v1622, %v1621
      %v1634 = vpack.c.b16 %v1624, %v1623
      %v1635 = vpack.c.b16 %v1626, %v1625
      %v1636 = vpack.c.b16 %v1628, %v1627
      %1645 = vmatprep.subr.bf16.mxu0 0
      %1646 = vmatpush1.bf16.msra.mxu0 %v1629
      %1647 = vmatprep.subr.bf16.mxu0 0
      %1648 = vmatpush1.bf16.msra.mxu0 %v1630
      %1649 = vmatprep.subr.bf16.mxu0 0
      %1650 = vmatpush1.bf16.msra.mxu0 %v1631
      %1651 = vmatprep.subr.bf16.mxu0 0
      %1652 = vmatpush1.bf16.msra.mxu0 %v1632
      %1653 = vmatprep.subr.bf16.mxu0 0
      %1654 = vmatpush1.bf16.msra.mxu0 %v1633
      %1655 = vmatprep.subr.bf16.mxu0 0
      %1656 = vmatpush1.bf16.msra.mxu0 %v1634
      %1657 = vmatprep.subr.bf16.mxu0 0
      %1658 = vmatpush1.bf16.msra.mxu0 %v1635
      %1659 = vmatprep.subr.bf16.mxu0 0
      %1660 = vmatpush1.bf16.msra.mxu0 %v1636
      %1661 = vmatprep.subr.bf16.mxu0 0
      %1662 = vmatpush1.bf16.msra.mxu0 0
      %1663 = vmatprep.subr.bf16.mxu0 0
      %1664 = vmatpush1.bf16.msra.mxu0 0
      %1665 = vmatprep.subr.bf16.mxu0 0
      %1666 = vmatpush1.bf16.msra.mxu0 0
      %1667 = vmatprep.subr.bf16.mxu0 0
      %1668 = vmatpush1.bf16.msra.mxu0 0
      %1669 = vmatprep.subr.bf16.mxu0 0
      %1670 = vmatpush1.bf16.msra.mxu0 0
      %1671 = vmatprep.subr.bf16.mxu0 0
      %1672 = vmatpush1.bf16.msra.mxu0 0
      %1673 = vmatprep.subr.bf16.mxu0 0
      %1674 = vmatpush1.bf16.msra.mxu0 0
      %1675 = vmatprep.subr.bf16.mxu0 0
      %1676 = vmatpush1.bf16.msra.mxu0 0
      %1677 = vmatprep.mubr.bf16.mxu0 0
      %1678 = vmatmul.mubr.bf16.gmra.mrb[0].mxu0 %v528
      %v1679 = vpop.f32.mrb[0].mxu0
      %v1680 = vadd.f32 %v784, %v1679
      %v1681 = vpop.f32.mrb[0].mxu0
      %v1682 = vpop.f32.mrb[0].mxu0
      %v1683 = vpop.f32.mrb[0].mxu0
      %1684 = vdwg.mxu0
      %v1701 = vunpack.c.l.b16 %v689
      %v1702 = vunpack.c.l.b16 %v690
      %v1703 = vunpack.c.l.b16 %v691
      %v1704 = vunpack.c.l.b16 %v692
      %v1705 = vunpack.c.l.b16 %v693
      %v1706 = vunpack.c.l.b16 %v694
      %v1707 = vunpack.c.l.b16 %v695
      %v1708 = vunpack.c.l.b16 %v696
      %v1709 = vunpack.c.l.b16 %v697
      %v1710 = vunpack.c.l.b16 %v698
      %v1711 = vunpack.c.l.b16 %v699
      %v1712 = vunpack.c.l.b16 %v700
      %v1713 = vunpack.c.l.b16 %v701
      %v1714 = vunpack.c.l.b16 %v702
      %v1715 = vunpack.c.l.b16 %v703
      %v1716 = vunpack.c.l.b16 %v704
      %v1717 = vpack.c.b16 %v1702, %v1701
      %v1718 = vpack.c.b16 %v1704, %v1703
      %v1719 = vpack.c.b16 %v1706, %v1705
      %v1720 = vpack.c.b16 %v1708, %v1707
      %v1721 = vpack.c.b16 %v1710, %v1709
      %v1722 = vpack.c.b16 %v1712, %v1711
      %v1723 = vpack.c.b16 %v1714, %v1713
      %v1724 = vpack.c.b16 %v1716, %v1715
      %1733 = vmatprep.subr.bf16.mxu0 0
      %1734 = vmatpush1.bf16.msra.mxu0 %v1717
      %1735 = vmatprep.subr.bf16.mxu0 0
      %1736 = vmatpush1.bf16.msra.mxu0 %v1718
      %1737 = vmatprep.subr.bf16.mxu0 0
      %1738 = vmatpush1.bf16.msra.mxu0 %v1719
      %1739 = vmatprep.subr.bf16.mxu0 0
      %1740 = vmatpush1.bf16.msra.mxu0 %v1720
      %1741 = vmatprep.subr.bf16.mxu0 0
      %1742 = vmatpush1.bf16.msra.mxu0 %v1721
      %1743 = vmatprep.subr.bf16.mxu0 0
      %1744 = vmatpush1.bf16.msra.mxu0 %v1722
      %1745 = vmatprep.subr.bf16.mxu0 0
      %1746 = vmatpush1.bf16.msra.mxu0 %v1723
      %1747 = vmatprep.subr.bf16.mxu0 0
      %1748 = vmatpush1.bf16.msra.mxu0 %v1724
      %1749 = vmatprep.subr.bf16.mxu0 0
      %1750 = vmatpush1.bf16.msra.mxu0 0
      %1751 = vmatprep.subr.bf16.mxu0 0
      %1752 = vmatpush1.bf16.msra.mxu0 0
      %1753 = vmatprep.subr.bf16.mxu0 0
      %1754 = vmatpush1.bf16.msra.mxu0 0
      %1755 = vmatprep.subr.bf16.mxu0 0
      %1756 = vmatpush1.bf16.msra.mxu0 0
      %1757 = vmatprep.subr.bf16.mxu0 0
      %1758 = vmatpush1.bf16.msra.mxu0 0
      %1759 = vmatprep.subr.bf16.mxu0 0
      %1760 = vmatpush1.bf16.msra.mxu0 0
      %1761 = vmatprep.subr.bf16.mxu0 0
      %1762 = vmatpush1.bf16.msra.mxu0 0
      %1763 = vmatprep.subr.bf16.mxu0 0
      %1764 = vmatpush1.bf16.msra.mxu0 0
      %1765 = vmatprep.mubr.bf16.mxu0 0
      %1766 = vmatmul.mubr.bf16.gmra.mrb[0].mxu0 %v528
      %v1767 = vpop.f32.mrb[0].mxu0
      %v1768 = vadd.f32 %v788, %v1767
      %v1769 = vpop.f32.mrb[0].mxu0
      %v1770 = vpop.f32.mrb[0].mxu0
      %v1771 = vpop.f32.mrb[0].mxu0
      %1772 = vdwg.mxu0
      %v1789 = vunpack.c.l.b16 %v705
      %v1790 = vunpack.c.l.b16 %v706
      %v1791 = vunpack.c.l.b16 %v707
      %v1792 = vunpack.c.l.b16 %v708
      %v1793 = vunpack.c.l.b16 %v709
      %v1794 = vunpack.c.l.b16 %v710
      %v1795 = vunpack.c.l.b16 %v711
      %v1796 = vunpack.c.l.b16 %v712
      %v1797 = vunpack.c.l.b16 %v713
      %v1798 = vunpack.c.l.b16 %v714
      %v1799 = vunpack.c.l.b16 %v715
      %v1800 = vunpack.c.l.b16 %v716
      %v1801 = vunpack.c.l.b16 %v717
      %v1802 = vunpack.c.l.b16 %v718
      %v1803 = vunpack.c.l.b16 %v719
      %v1804 = vunpack.c.l.b16 %v720
      %v1805 = vpack.c.b16 %v1790, %v1789
      %v1806 = vpack.c.b16 %v1792, %v1791
      %v1807 = vpack.c.b16 %v1794, %v1793
      %v1808 = vpack.c.b16 %v1796, %v1795
      %v1809 = vpack.c.b16 %v1798, %v1797
      %v1810 = vpack.c.b16 %v1800, %v1799
      %v1811 = vpack.c.b16 %v1802, %v1801
      %v1812 = vpack.c.b16 %v1804, %v1803
      %1821 = vmatprep.subr.bf16.mxu0 0
      %1822 = vmatpush1.bf16.msra.mxu0 %v1805
      %1823 = vmatprep.subr.bf16.mxu0 0
      %1824 = vmatpush1.bf16.msra.mxu0 %v1806
      %1825 = vmatprep.subr.bf16.mxu0 0
      %1826 = vmatpush1.bf16.msra.mxu0 %v1807
      %1827 = vmatprep.subr.bf16.mxu0 0
      %1828 = vmatpush1.bf16.msra.mxu0 %v1808
      %1829 = vmatprep.subr.bf16.mxu0 0
      %1830 = vmatpush1.bf16.msra.mxu0 %v1809
      %1831 = vmatprep.subr.bf16.mxu0 0
      %1832 = vmatpush1.bf16.msra.mxu0 %v1810
      %1833 = vmatprep.subr.bf16.mxu0 0
      %1834 = vmatpush1.bf16.msra.mxu0 %v1811
      %1835 = vmatprep.subr.bf16.mxu0 0
      %1836 = vmatpush1.bf16.msra.mxu0 %v1812
      %1837 = vmatprep.subr.bf16.mxu0 0
      %1838 = vmatpush1.bf16.msra.mxu0 0
      %1839 = vmatprep.subr.bf16.mxu0 0
      %1840 = vmatpush1.bf16.msra.mxu0 0
      %1841 = vmatprep.subr.bf16.mxu0 0
      %1842 = vmatpush1.bf16.msra.mxu0 0
      %1843 = vmatprep.subr.bf16.mxu0 0
      %1844 = vmatpush1.bf16.msra.mxu0 0
      %1845 = vmatprep.subr.bf16.mxu0 0
      %1846 = vmatpush1.bf16.msra.mxu0 0
      %1847 = vmatprep.subr.bf16.mxu0 0
      %1848 = vmatpush1.bf16.msra.mxu0 0
      %1849 = vmatprep.subr.bf16.mxu0 0
      %1850 = vmatpush1.bf16.msra.mxu0 0
      %1851 = vmatprep.subr.bf16.mxu0 0
      %1852 = vmatpush1.bf16.msra.mxu0 0
      %1853 = vmatprep.mubr.bf16.mxu0 0
      %1854 = vmatmul.mubr.bf16.gmra.mrb[0].mxu0 %v528
      %v1855 = vpop.f32.mrb[0].mxu0
      %v1856 = vadd.f32 %v792, %v1855
      %v1857 = vpop.f32.mrb[0].mxu0
      %v1858 = vpop.f32.mrb[0].mxu0
      %v1859 = vpop.f32.mrb[0].mxu0
      %1860 = vdwg.mxu0
      %v1861 = vpack.c.bf16 %v888, %v888
      %v1862 = vpack.c.bf16 %v976, %v976
      %v1863 = vpack.c.bf16 %v1064, %v1064
      %v1864 = vpack.c.bf16 %v1152, %v1152
      %v1865 = vpack.c.bf16 %v1240, %v1240
      %v1866 = vpack.c.bf16 %v1328, %v1328
      %v1867 = vpack.c.bf16 %v1416, %v1416
      %v1868 = vpack.c.bf16 %v1504, %v1504
      %vm1869 = vcmask 261120
      %v1871 = vsel %vm1869, %v1861, 0
      %v1874 = vsel %vm1869, %v1865, 0
      %1876 = vmatprep.subr.bf16.mxu0 0
      %1877 = vmatpush1.bf16.xpose.msra.mxu0 %v1874
      %1878 = vmatprep.subr.bf16.mxu0 0
      %1879 = vmatpush1.bf16.xpose.msra.mxu0 0
      %1880 = vmatprep.subr.bf16.mxu0 0
      %1881 = vmatpush1.bf16.xpose.msra.mxu0 0
      %1882 = vmatprep.subr.bf16.mxu0 0
      %1883 = vmatpush1.bf16.xpose.msra.mxu0 0
      %1884 = vmatprep.subr.bf16.mxu0 0
      %1885 = vmatpush1.bf16.xpose.msra.mxu0 0
      %1886 = vmatprep.subr.bf16.mxu0 0
      %1887 = vmatpush1.bf16.xpose.msra.mxu0 0
      %1888 = vmatprep.subr.bf16.mxu0 0
      %1889 = vmatpush1.bf16.xpose.msra.mxu0 0
      %1890 = vmatprep.subr.bf16.mxu0 0
      %1891 = vmatpush1.bf16.xpose.msra.mxu0 0
      %1892 = vmatprep.subr.bf16.mxu0 0
      %1893 = vmatpush1.bf16.xpose.msra.mxu0 0
      %1894 = vmatprep.subr.bf16.mxu0 0
      %1895 = vmatpush1.bf16.xpose.msra.mxu0 0
      %1896 = vmatprep.subr.bf16.mxu0 0
      %1897 = vmatpush1.bf16.xpose.msra.mxu0 0
      %1898 = vmatprep.subr.bf16.mxu0 0
      %1899 = vmatpush1.bf16.xpose.msra.mxu0 0
      %1900 = vmatprep.subr.bf16.mxu0 0
      %1901 = vmatpush1.bf16.xpose.msra.mxu0 0
      %1902 = vmatprep.subr.bf16.mxu0 0
      %1903 = vmatpush1.bf16.xpose.msra.mxu0 0
      %1904 = vmatprep.subr.bf16.mxu0 0
      %1905 = vmatpush1.bf16.xpose.msra.mxu0 0
      %1906 = vmatprep.subr.bf16.mxu0 0
      %1907 = vmatpush1.bf16.xpose.msra.mxu0 0
      %1908 = vmatprep.mubr.bf16.mxu0 0
      %1909 = vmatmul.mubr.bf16.gmra.mrb[0].mxu0 %v1871
      %v1910 = vpop.f32.mrb[0].mxu0
      %v1911 = vadd.f32 0.0, %v1910
      %v1912 = vpop.f32.mrb[0].mxu0
      %v1913 = vpop.f32.mrb[0].mxu0
      %v1914 = vpop.f32.mrb[0].mxu0
      %1915 = vdwg.mxu0
      %v1917 = vsel %vm1869, %v1862, 0
      %v1920 = vsel %vm1869, %v1866, 0
      %1922 = vmatprep.subr.bf16.mxu0 0
      %1923 = vmatpush1.bf16.xpose.msra.mxu0 %v1920
      %1924 = vmatprep.subr.bf16.mxu0 0
      %1925 = vmatpush1.bf16.xpose.msra.mxu0 0
      %1926 = vmatprep.subr.bf16.mxu0 0
      %1927 = vmatpush1.bf16.xpose.msra.mxu0 0
      %1928 = vmatprep.subr.bf16.mxu0 0
      %1929 = vmatpush1.bf16.xpose.msra.mxu0 0
      %1930 = vmatprep.subr.bf16.mxu0 0
      %1931 = vmatpush1.bf16.xpose.msra.mxu0 0
      %1932 = vmatprep.subr.bf16.mxu0 0
      %1933 = vmatpush1.bf16.xpose.msra.mxu0 0
      %1934 = vmatprep.subr.bf16.mxu0 0
      %1935 = vmatpush1.bf16.xpose.msra.mxu0 0
      %1936 = vmatprep.subr.bf16.mxu0 0
      %1937 = vmatpush1.bf16.xpose.msra.mxu0 0
      %1938 = vmatprep.subr.bf16.mxu0 0
      %1939 = vmatpush1.bf16.xpose.msra.mxu0 0
      %1940 = vmatprep.subr.bf16.mxu0 0
      %1941 = vmatpush1.bf16.xpose.msra.mxu0 0
      %1942 = vmatprep.subr.bf16.mxu0 0
      %1943 = vmatpush1.bf16.xpose.msra.mxu0 0
      %1944 = vmatprep.subr.bf16.mxu0 0
      %1945 = vmatpush1.bf16.xpose.msra.mxu0 0
      %1946 = vmatprep.subr.bf16.mxu0 0
      %1947 = vmatpush1.bf16.xpose.msra.mxu0 0
      %1948 = vmatprep.subr.bf16.mxu0 0
      %1949 = vmatpush1.bf16.xpose.msra.mxu0 0
      %1950 = vmatprep.subr.bf16.mxu0 0
      %1951 = vmatpush1.bf16.xpose.msra.mxu0 0
      %1952 = vmatprep.subr.bf16.mxu0 0
      %1953 = vmatpush1.bf16.xpose.msra.mxu0 0
      %1954 = vmatprep.mubr.bf16.mxu0 0
      %1955 = vmatmul.mubr.bf16.gmra.mrb[0].mxu0 %v1917
      %v1956 = vpop.f32.mrb[0].mxu0
      %v1957 = vadd.f32 0.0, %v1956
      %v1958 = vpop.f32.mrb[0].mxu0
      %v1959 = vpop.f32.mrb[0].mxu0
      %v1960 = vpop.f32.mrb[0].mxu0
      %1961 = vdwg.mxu0
      %v1963 = vsel %vm1869, %v1863, 0
      %v1966 = vsel %vm1869, %v1867, 0
      %1968 = vmatprep.subr.bf16.mxu0 0
      %1969 = vmatpush1.bf16.xpose.msra.mxu0 %v1966
      %1970 = vmatprep.subr.bf16.mxu0 0
      %1971 = vmatpush1.bf16.xpose.msra.mxu0 0
      %1972 = vmatprep.subr.bf16.mxu0 0
      %1973 = vmatpush1.bf16.xpose.msra.mxu0 0
      %1974 = vmatprep.subr.bf16.mxu0 0
      %1975 = vmatpush1.bf16.xpose.msra.mxu0 0
      %1976 = vmatprep.subr.bf16.mxu0 0
      %1977 = vmatpush1.bf16.xpose.msra.mxu0 0
      %1978 = vmatprep.subr.bf16.mxu0 0
      %1979 = vmatpush1.bf16.xpose.msra.mxu0 0
      %1980 = vmatprep.subr.bf16.mxu0 0
      %1981 = vmatpush1.bf16.xpose.msra.mxu0 0
      %1982 = vmatprep.subr.bf16.mxu0 0
      %1983 = vmatpush1.bf16.xpose.msra.mxu0 0
      %1984 = vmatprep.subr.bf16.mxu0 0
      %1985 = vmatpush1.bf16.xpose.msra.mxu0 0
      %1986 = vmatprep.subr.bf16.mxu0 0
      %1987 = vmatpush1.bf16.xpose.msra.mxu0 0
      %1988 = vmatprep.subr.bf16.mxu0 0
      %1989 = vmatpush1.bf16.xpose.msra.mxu0 0
      %1990 = vmatprep.subr.bf16.mxu0 0
      %1991 = vmatpush1.bf16.xpose.msra.mxu0 0
      %1992 = vmatprep.subr.bf16.mxu0 0
      %1993 = vmatpush1.bf16.xpose.msra.mxu0 0
      %1994 = vmatprep.subr.bf16.mxu0 0
      %1995 = vmatpush1.bf16.xpose.msra.mxu0 0
      %1996 = vmatprep.subr.bf16.mxu0 0
      %1997 = vmatpush1.bf16.xpose.msra.mxu0 0
      %1998 = vmatprep.subr.bf16.mxu0 0
      %1999 = vmatpush1.bf16.xpose.msra.mxu0 0
      %2000 = vmatprep.mubr.bf16.mxu0 0
      %2001 = vmatmul.mubr.bf16.gmra.mrb[0].mxu0 %v1963
      %v2002 = vpop.f32.mrb[0].mxu0
      %v2003 = vadd.f32 0.0, %v2002
      %v2004 = vpop.f32.mrb[0].mxu0
      %v2005 = vpop.f32.mrb[0].mxu0
      %v2006 = vpop.f32.mrb[0].mxu0
      %2007 = vdwg.mxu0
      %v2009 = vsel %vm1869, %v1864, 0
      %v2012 = vsel %vm1869, %v1868, 0
      %2014 = vmatprep.subr.bf16.mxu0 0
      %2015 = vmatpush1.bf16.xpose.msra.mxu0 %v2012
      %2016 = vmatprep.subr.bf16.mxu0 0
      %2017 = vmatpush1.bf16.xpose.msra.mxu0 0
      %2018 = vmatprep.subr.bf16.mxu0 0
      %2019 = vmatpush1.bf16.xpose.msra.mxu0 0
      %2020 = vmatprep.subr.bf16.mxu0 0
      %2021 = vmatpush1.bf16.xpose.msra.mxu0 0
      %2022 = vmatprep.subr.bf16.mxu0 0
      %2023 = vmatpush1.bf16.xpose.msra.mxu0 0
      %2024 = vmatprep.subr.bf16.mxu0 0
      %2025 = vmatpush1.bf16.xpose.msra.mxu0 0
      %2026 = vmatprep.subr.bf16.mxu0 0
      %2027 = vmatpush1.bf16.xpose.msra.mxu0 0
      %2028 = vmatprep.subr.bf16.mxu0 0
      %2029 = vmatpush1.bf16.xpose.msra.mxu0 0
      %2030 = vmatprep.subr.bf16.mxu0 0
      %2031 = vmatpush1.bf16.xpose.msra.mxu0 0
      %2032 = vmatprep.subr.bf16.mxu0 0
      %2033 = vmatpush1.bf16.xpose.msra.mxu0 0
      %2034 = vmatprep.subr.bf16.mxu0 0
      %2035 = vmatpush1.bf16.xpose.msra.mxu0 0
      %2036 = vmatprep.subr.bf16.mxu0 0
      %2037 = vmatpush1.bf16.xpose.msra.mxu0 0
      %2038 = vmatprep.subr.bf16.mxu0 0
      %2039 = vmatpush1.bf16.xpose.msra.mxu0 0
      %2040 = vmatprep.subr.bf16.mxu0 0
      %2041 = vmatpush1.bf16.xpose.msra.mxu0 0
      %2042 = vmatprep.subr.bf16.mxu0 0
      %2043 = vmatpush1.bf16.xpose.msra.mxu0 0
      %2044 = vmatprep.subr.bf16.mxu0 0
      %2045 = vmatpush1.bf16.xpose.msra.mxu0 0
      %2046 = vmatprep.mubr.bf16.mxu0 0
      %2047 = vmatmul.mubr.bf16.gmra.mrb[0].mxu0 %v2009
      %v2048 = vpop.f32.mrb[0].mxu0
      %v2049 = vadd.f32 0.0, %v2048
      %v2050 = vpop.f32.mrb[0].mxu0
      %v2051 = vpop.f32.mrb[0].mxu0
      %v2052 = vpop.f32.mrb[0].mxu0
      %2053 = vdwg.mxu0
      %v2054 = vsel %vm527, 1, 0
      %vm2055 = vcmp.eq.s32.totalorder %v2054, 1
      %v2056 = vsel %vm2055, %v1911, -1e+30
      %v2057 = vsel %vm2055, %v1957, -1e+30
      %v2058 = vsel %vm2055, %v2003, -1e+30
      %v2059 = vsel %vm2055, %v2049, -1e+30
      %vm2060 = vcmask 64512
      %v2061 = vsel %vm2060, %v2056, -inf
      %2062 = vmax.xlane.f32.xlu0 %v2061
      %v2063 = vpop.xlane.xlu0 %2062
      %v2064 = vsel %vm2060, %v2057, -inf
      %2065 = vmax.xlane.f32.xlu0 %v2064
      %v2066 = vpop.xlane.xlu0 %2065
      %v2067 = vsel %vm2060, %v2058, -inf
      %2068 = vmax.xlane.f32.xlu0 %v2067
      %v2069 = vpop.xlane.xlu0 %2068
      %v2070 = vsel %vm2060, %v2059, -inf
      %2071 = vmax.xlane.f32.xlu0 %v2070
      %v2072 = vpop.xlane.xlu0 %2071
      %v2073 = vsub.f32 %v2056, %v2063
      %v2074 = vsub.f32 %v2057, %v2066
      %v2075 = vsub.f32 %v2058, %v2069
      %v2076 = vsub.f32 %v2059, %v2072
      %v2077 = vmul.f32 %v2073, 1.442695
      %v2078 = vpow.pop %v2077
      %v2079 = vmul.f32 %v2074, 1.442695
      %v2080 = vpow.pop %v2079
      %v2081 = vmul.f32 %v2075, 1.442695
      %v2082 = vpow.pop %v2081
      %v2083 = vmul.f32 %v2076, 1.442695
      %v2084 = vpow.pop %v2083
      %v2085 = vsel %vm2060, %v2078, 0.0
      %2086 = vadd.xlane.f32.xlu0 %v2085
      %v2087 = vpop.xlane.xlu0 %2086
      %v2088 = vsel %vm2060, %v2080, 0.0
      %2089 = vadd.xlane.f32.xlu0 %v2088
      %v2090 = vpop.xlane.xlu0 %2089
      %v2091 = vsel %vm2060, %v2082, 0.0
      %2092 = vadd.xlane.f32.xlu0 %v2091
      %v2093 = vpop.xlane.xlu0 %2092
      %v2094 = vsel %vm2060, %v2084, 0.0
      %2095 = vadd.xlane.f32.xlu0 %v2094
      %v2096 = vpop.xlane.xlu0 %2095
      %v2097 = vrcp.pop %v2087
      %v2098 = vrcp.pop %v2090
      %v2099 = vrcp.pop %v2093
      %v2100 = vrcp.pop %v2096
      %v2101 = vmul.f32 %v2078, %v2097
      %v2102 = vmul.f32 %v2080, %v2098
      %v2103 = vmul.f32 %v2082, %v2099
      %v2104 = vmul.f32 %v2084, %v2100
      %v2105 = vpack.c.bf16 %v2101, %v2101
      %v2106 = vpack.c.bf16 %v2102, %v2102
      %v2107 = vpack.c.bf16 %v2103, %v2103
      %v2108 = vpack.c.bf16 %v2104, %v2104
      %v2109 = vpack.c.bf16 %v1592, %v1592
      %v2110 = vpack.c.bf16 %v1680, %v1680
      %v2111 = vpack.c.bf16 %v1768, %v1768
      %v2112 = vpack.c.bf16 %v1856, %v1856
      %v2114 = vsel %vm2060, %v2105, 0
      %vm2116 = vcmask 1043456
      %v2118 = vsel %vm2116, %v2109, 0
      %2120 = vmatprep.subr.bf16.mxu0 0
      %2121 = vmatpush1.bf16.msra.mxu0 %v2118
      %2122 = vmatprep.subr.bf16.mxu0 0
      %2123 = vmatpush1.bf16.msra.mxu0 0
      %2124 = vmatprep.subr.bf16.mxu0 0
      %2125 = vmatpush1.bf16.msra.mxu0 0
      %2126 = vmatprep.subr.bf16.mxu0 0
      %2127 = vmatpush1.bf16.msra.mxu0 0
      %2128 = vmatprep.subr.bf16.mxu0 0
      %2129 = vmatpush1.bf16.msra.mxu0 0
      %2130 = vmatprep.subr.bf16.mxu0 0
      %2131 = vmatpush1.bf16.msra.mxu0 0
      %2132 = vmatprep.subr.bf16.mxu0 0
      %2133 = vmatpush1.bf16.msra.mxu0 0
      %2134 = vmatprep.subr.bf16.mxu0 0
      %2135 = vmatpush1.bf16.msra.mxu0 0
      %2136 = vmatprep.subr.bf16.mxu0 0
      %2137 = vmatpush1.bf16.msra.mxu0 0
      %2138 = vmatprep.subr.bf16.mxu0 0
      %2139 = vmatpush1.bf16.msra.mxu0 0
      %2140 = vmatprep.subr.bf16.mxu0 0
      %2141 = vmatpush1.bf16.msra.mxu0 0
      %2142 = vmatprep.subr.bf16.mxu0 0
      %2143 = vmatpush1.bf16.msra.mxu0 0
      %2144 = vmatprep.subr.bf16.mxu0 0
      %2145 = vmatpush1.bf16.msra.mxu0 0
      %2146 = vmatprep.subr.bf16.mxu0 0
      %2147 = vmatpush1.bf16.msra.mxu0 0
      %2148 = vmatprep.subr.bf16.mxu0 0
      %2149 = vmatpush1.bf16.msra.mxu0 0
      %2150 = vmatprep.subr.bf16.mxu0 0
      %2151 = vmatpush1.bf16.msra.mxu0 0
      %2152 = vmatprep.mubr.bf16.mxu0 0
      %2153 = vmatmul.mubr.bf16.gmra.mrb[0].mxu0 %v2114
      %v2154 = vpop.f32.mrb[0].mxu0
      %v2155 = vadd.f32 0.0, %v2154
      %v2156 = vpop.f32.mrb[0].mxu0
      %v2157 = vpop.f32.mrb[0].mxu0
      %v2158 = vpop.f32.mrb[0].mxu0
      %2159 = vdwg.mxu0
      %v2161 = vsel %vm2060, %v2106, 0
      %v2164 = vsel %vm2116, %v2110, 0
      %2166 = vmatprep.subr.bf16.mxu0 0
      %2167 = vmatpush1.bf16.msra.mxu0 %v2164
      %2168 = vmatprep.subr.bf16.mxu0 0
      %2169 = vmatpush1.bf16.msra.mxu0 0
      %2170 = vmatprep.subr.bf16.mxu0 0
      %2171 = vmatpush1.bf16.msra.mxu0 0
      %2172 = vmatprep.subr.bf16.mxu0 0
      %2173 = vmatpush1.bf16.msra.mxu0 0
      %2174 = vmatprep.subr.bf16.mxu0 0
      %2175 = vmatpush1.bf16.msra.mxu0 0
      %2176 = vmatprep.subr.bf16.mxu0 0
      %2177 = vmatpush1.bf16.msra.mxu0 0
      %2178 = vmatprep.subr.bf16.mxu0 0
      %2179 = vmatpush1.bf16.msra.mxu0 0
      %2180 = vmatprep.subr.bf16.mxu0 0
      %2181 = vmatpush1.bf16.msra.mxu0 0
      %2182 = vmatprep.subr.bf16.mxu0 0
      %2183 = vmatpush1.bf16.msra.mxu0 0
      %2184 = vmatprep.subr.bf16.mxu0 0
      %2185 = vmatpush1.bf16.msra.mxu0 0
      %2186 = vmatprep.subr.bf16.mxu0 0
      %2187 = vmatpush1.bf16.msra.mxu0 0
      %2188 = vmatprep.subr.bf16.mxu0 0
      %2189 = vmatpush1.bf16.msra.mxu0 0
      %2190 = vmatprep.subr.bf16.mxu0 0
      %2191 = vmatpush1.bf16.msra.mxu0 0
      %2192 = vmatprep.subr.bf16.mxu0 0
      %2193 = vmatpush1.bf16.msra.mxu0 0
      %2194 = vmatprep.subr.bf16.mxu0 0
      %2195 = vmatpush1.bf16.msra.mxu0 0
      %2196 = vmatprep.subr.bf16.mxu0 0
      %2197 = vmatpush1.bf16.msra.mxu0 0
      %2198 = vmatprep.mubr.bf16.mxu0 0
      %2199 = vmatmul.mubr.bf16.gmra.mrb[0].mxu0 %v2161
      %v2200 = vpop.f32.mrb[0].mxu0
      %v2201 = vadd.f32 0.0, %v2200
      %v2202 = vpop.f32.mrb[0].mxu0
      %v2203 = vpop.f32.mrb[0].mxu0
      %v2204 = vpop.f32.mrb[0].mxu0
      %2205 = vdwg.mxu0
      %v2207 = vsel %vm2060, %v2107, 0
      %v2210 = vsel %vm2116, %v2111, 0
      %2212 = vmatprep.subr.bf16.mxu0 0
      %2213 = vmatpush1.bf16.msra.mxu0 %v2210
      %2214 = vmatprep.subr.bf16.mxu0 0
      %2215 = vmatpush1.bf16.msra.mxu0 0
      %2216 = vmatprep.subr.bf16.mxu0 0
      %2217 = vmatpush1.bf16.msra.mxu0 0
      %2218 = vmatprep.subr.bf16.mxu0 0
      %2219 = vmatpush1.bf16.msra.mxu0 0
      %2220 = vmatprep.subr.bf16.mxu0 0
      %2221 = vmatpush1.bf16.msra.mxu0 0
      %2222 = vmatprep.subr.bf16.mxu0 0
      %2223 = vmatpush1.bf16.msra.mxu0 0
      %2224 = vmatprep.subr.bf16.mxu0 0
      %2225 = vmatpush1.bf16.msra.mxu0 0
      %2226 = vmatprep.subr.bf16.mxu0 0
      %2227 = vmatpush1.bf16.msra.mxu0 0
      %2228 = vmatprep.subr.bf16.mxu0 0
      %2229 = vmatpush1.bf16.msra.mxu0 0
      %2230 = vmatprep.subr.bf16.mxu0 0
      %2231 = vmatpush1.bf16.msra.mxu0 0
      %2232 = vmatprep.subr.bf16.mxu0 0
      %2233 = vmatpush1.bf16.msra.mxu0 0
      %2234 = vmatprep.subr.bf16.mxu0 0
      %2235 = vmatpush1.bf16.msra.mxu0 0
      %2236 = vmatprep.subr.bf16.mxu0 0
      %2237 = vmatpush1.bf16.msra.mxu0 0
      %2238 = vmatprep.subr.bf16.mxu0 0
      %2239 = vmatpush1.bf16.msra.mxu0 0
      %2240 = vmatprep.subr.bf16.mxu0 0
      %2241 = vmatpush1.bf16.msra.mxu0 0
      %2242 = vmatprep.subr.bf16.mxu0 0
      %2243 = vmatpush1.bf16.msra.mxu0 0
      %2244 = vmatprep.mubr.bf16.mxu0 0
      %2245 = vmatmul.mubr.bf16.gmra.mrb[0].mxu0 %v2207
      %v2246 = vpop.f32.mrb[0].mxu0
      %v2247 = vadd.f32 0.0, %v2246
      %v2248 = vpop.f32.mrb[0].mxu0
      %v2249 = vpop.f32.mrb[0].mxu0
      %v2250 = vpop.f32.mrb[0].mxu0
      %2251 = vdwg.mxu0
      %v2253 = vsel %vm2060, %v2108, 0
      %v2256 = vsel %vm2116, %v2112, 0
      %2258 = vmatprep.subr.bf16.mxu0 0
      %2259 = vmatpush1.bf16.msra.mxu0 %v2256
      %2260 = vmatprep.subr.bf16.mxu0 0
      %2261 = vmatpush1.bf16.msra.mxu0 0
      %2262 = vmatprep.subr.bf16.mxu0 0
      %2263 = vmatpush1.bf16.msra.mxu0 0
      %2264 = vmatprep.subr.bf16.mxu0 0
      %2265 = vmatpush1.bf16.msra.mxu0 0
      %2266 = vmatprep.subr.bf16.mxu0 0
      %2267 = vmatpush1.bf16.msra.mxu0 0
      %2268 = vmatprep.subr.bf16.mxu0 0
      %2269 = vmatpush1.bf16.msra.mxu0 0
      %2270 = vmatprep.subr.bf16.mxu0 0
      %2271 = vmatpush1.bf16.msra.mxu0 0
      %2272 = vmatprep.subr.bf16.mxu0 0
      %2273 = vmatpush1.bf16.msra.mxu0 0
      %2274 = vmatprep.subr.bf16.mxu0 0
      %2275 = vmatpush1.bf16.msra.mxu0 0
      %2276 = vmatprep.subr.bf16.mxu0 0
      %2277 = vmatpush1.bf16.msra.mxu0 0
      %2278 = vmatprep.subr.bf16.mxu0 0
      %2279 = vmatpush1.bf16.msra.mxu0 0
      %2280 = vmatprep.subr.bf16.mxu0 0
      %2281 = vmatpush1.bf16.msra.mxu0 0
      %2282 = vmatprep.subr.bf16.mxu0 0
      %2283 = vmatpush1.bf16.msra.mxu0 0
      %2284 = vmatprep.subr.bf16.mxu0 0
      %2285 = vmatpush1.bf16.msra.mxu0 0
      %2286 = vmatprep.subr.bf16.mxu0 0
      %2287 = vmatpush1.bf16.msra.mxu0 0
      %2288 = vmatprep.subr.bf16.mxu0 0
      %2289 = vmatpush1.bf16.msra.mxu0 0
      %2290 = vmatprep.mubr.bf16.mxu0 0
      %2291 = vmatmul.mubr.bf16.gmra.mrb[0].mxu0 %v2253
      %v2292 = vpop.f32.mrb[0].mxu0
      %v2293 = vadd.f32 0.0, %v2292
      %v2294 = vpop.f32.mrb[0].mxu0
      %v2295 = vpop.f32.mrb[0].mxu0
      %v2296 = vpop.f32.mrb[0].mxu0
      %2297 = vdwg.mxu0
      %v2298 = vpack.c.bf16 %v2155, %v2155
      %v2299 = vpack.c.bf16 %v2201, %v2201
      %v2300 = vpack.c.bf16 %v2247, %v2247
      %v2301 = vpack.c.bf16 %v2293, %v2293
      %v2302 = vld [vmem:[%s4] sm:$0xf]
      %v2303 = vld [vmem:[%s4 + $0x4] sm:$0xf]
      %v2304 = vld [vmem:[%s4 + $0x8] sm:$0xf]
      %v2305 = vld [vmem:[%s4 + $0xc] sm:$0xf]
      %v2306 = vld [vmem:[%s4 + $0x10] sm:$0xf]
      %v2307 = vld [vmem:[%s4 + $0x14] sm:$0xf]
      %v2308 = vld [vmem:[%s4 + $0x18] sm:$0xf]
      %v2309 = vld [vmem:[%s4 + $0x1c] sm:$0xf]
      %v2310 = vld [vmem:[%s4 + $0x20] sm:$0xf]
      %v2311 = vld [vmem:[%s4 + $0x24] sm:$0xf]
      %v2312 = vld [vmem:[%s4 + $0x28] sm:$0xf]
      %v2313 = vld [vmem:[%s4 + $0x2c] sm:$0xf]
      %v2314 = vld [vmem:[%s4 + $0x30] sm:$0xf]
      %v2315 = vld [vmem:[%s4 + $0x34] sm:$0xf]
      %v2316 = vld [vmem:[%s4 + $0x38] sm:$0xf]
      %v2317 = vld [vmem:[%s4 + $0x3c] sm:$0xf]
      %v2322 = vunpack.c.l.b16 %v2302
      %v2323 = vunpack.c.l.b16 %v2303
      %v2324 = vunpack.c.l.b16 %v2304
      %v2325 = vunpack.c.l.b16 %v2305
      %v2326 = vpack.c.b16 %v2323, %v2322
      %v2327 = vpack.c.b16 %v2325, %v2324
      %v2331 = vsel %vm1869, %v2298, 0
      %2333 = vmatprep.subr.bf16.mxu0 0
      %2334 = vmatpush1.bf16.msra.mxu0 %v2326
      %2335 = vmatprep.subr.bf16.mxu0 0
      %2336 = vmatpush1.bf16.msra.mxu0 %v2327
      %2337 = vmatprep.subr.bf16.mxu0 0
      %2338 = vmatpush1.bf16.msra.mxu0 0
      %2339 = vmatprep.subr.bf16.mxu0 0
      %2340 = vmatpush1.bf16.msra.mxu0 0
      %2341 = vmatprep.subr.bf16.mxu0 0
      %2342 = vmatpush1.bf16.msra.mxu0 0
      %2343 = vmatprep.subr.bf16.mxu0 0
      %2344 = vmatpush1.bf16.msra.mxu0 0
      %2345 = vmatprep.subr.bf16.mxu0 0
      %2346 = vmatpush1.bf16.msra.mxu0 0
      %2347 = vmatprep.subr.bf16.mxu0 0
      %2348 = vmatpush1.bf16.msra.mxu0 0
      %2349 = vmatprep.subr.bf16.mxu0 0
      %2350 = vmatpush1.bf16.msra.mxu0 0
      %2351 = vmatprep.subr.bf16.mxu0 0
      %2352 = vmatpush1.bf16.msra.mxu0 0
      %2353 = vmatprep.subr.bf16.mxu0 0
      %2354 = vmatpush1.bf16.msra.mxu0 0
      %2355 = vmatprep.subr.bf16.mxu0 0
      %2356 = vmatpush1.bf16.msra.mxu0 0
      %2357 = vmatprep.subr.bf16.mxu0 0
      %2358 = vmatpush1.bf16.msra.mxu0 0
      %2359 = vmatprep.subr.bf16.mxu0 0
      %2360 = vmatpush1.bf16.msra.mxu0 0
      %2361 = vmatprep.subr.bf16.mxu0 0
      %2362 = vmatpush1.bf16.msra.mxu0 0
      %2363 = vmatprep.subr.bf16.mxu0 0
      %2364 = vmatpush1.bf16.msra.mxu0 0
      %2365 = vmatprep.mubr.bf16.mxu0 0
      %2366 = vmatmul.mubr.bf16.gmra.mrb[0].mxu0 %v2331
      %v2367 = vpop.f32.mrb[0].mxu0
      %v2368 = vadd.f32 0.0, %v2367
      %v2369 = vpop.f32.mrb[0].mxu0
      %v2370 = vpop.f32.mrb[0].mxu0
      %v2371 = vpop.f32.mrb[0].mxu0
      %2372 = vdwg.mxu0
      %v2377 = vunpack.c.l.b16 %v2306
      %v2378 = vunpack.c.l.b16 %v2307
      %v2379 = vunpack.c.l.b16 %v2308
      %v2380 = vunpack.c.l.b16 %v2309
      %v2381 = vpack.c.b16 %v2378, %v2377
      %v2382 = vpack.c.b16 %v2380, %v2379
      %v2386 = vsel %vm1869, %v2299, 0
      %2388 = vmatprep.subr.bf16.mxu0 0
      %2389 = vmatpush1.bf16.msra.mxu0 %v2381
      %2390 = vmatprep.subr.bf16.mxu0 0
      %2391 = vmatpush1.bf16.msra.mxu0 %v2382
      %2392 = vmatprep.subr.bf16.mxu0 0
      %2393 = vmatpush1.bf16.msra.mxu0 0
      %2394 = vmatprep.subr.bf16.mxu0 0
      %2395 = vmatpush1.bf16.msra.mxu0 0
      %2396 = vmatprep.subr.bf16.mxu0 0
      %2397 = vmatpush1.bf16.msra.mxu0 0
      %2398 = vmatprep.subr.bf16.mxu0 0
      %2399 = vmatpush1.bf16.msra.mxu0 0
      %2400 = vmatprep.subr.bf16.mxu0 0
      %2401 = vmatpush1.bf16.msra.mxu0 0
      %2402 = vmatprep.subr.bf16.mxu0 0
      %2403 = vmatpush1.bf16.msra.mxu0 0
      %2404 = vmatprep.subr.bf16.mxu0 0
      %2405 = vmatpush1.bf16.msra.mxu0 0
      %2406 = vmatprep.subr.bf16.mxu0 0
      %2407 = vmatpush1.bf16.msra.mxu0 0
      %2408 = vmatprep.subr.bf16.mxu0 0
      %2409 = vmatpush1.bf16.msra.mxu0 0
      %2410 = vmatprep.subr.bf16.mxu0 0
      %2411 = vmatpush1.bf16.msra.mxu0 0
      %2412 = vmatprep.subr.bf16.mxu0 0
      %2413 = vmatpush1.bf16.msra.mxu0 0
      %2414 = vmatprep.subr.bf16.mxu0 0
      %2415 = vmatpush1.bf16.msra.mxu0 0
      %2416 = vmatprep.subr.bf16.mxu0 0
      %2417 = vmatpush1.bf16.msra.mxu0 0
      %2418 = vmatprep.subr.bf16.mxu0 0
      %2419 = vmatpush1.bf16.msra.mxu0 0
      %2420 = vmatprep.mubr.bf16.mxu0 0
      %2421 = vmatmul.mubr.bf16.gmra.mrb[0].mxu0 %v2386
      %v2422 = vpop.f32.mrb[0].mxu0
      %v2423 = vadd.f32 0.0, %v2422
      %v2424 = vpop.f32.mrb[0].mxu0
      %v2425 = vpop.f32.mrb[0].mxu0
      %v2426 = vpop.f32.mrb[0].mxu0
      %2427 = vdwg.mxu0
      %v2432 = vunpack.c.l.b16 %v2310
      %v2433 = vunpack.c.l.b16 %v2311
      %v2434 = vunpack.c.l.b16 %v2312
      %v2435 = vunpack.c.l.b16 %v2313
      %v2436 = vpack.c.b16 %v2433, %v2432
      %v2437 = vpack.c.b16 %v2435, %v2434
      %v2441 = vsel %vm1869, %v2300, 0
      %2443 = vmatprep.subr.bf16.mxu0 0
      %2444 = vmatpush1.bf16.msra.mxu0 %v2436
      %2445 = vmatprep.subr.bf16.mxu0 0
      %2446 = vmatpush1.bf16.msra.mxu0 %v2437
      %2447 = vmatprep.subr.bf16.mxu0 0
      %2448 = vmatpush1.bf16.msra.mxu0 0
      %2449 = vmatprep.subr.bf16.mxu0 0
      %2450 = vmatpush1.bf16.msra.mxu0 0
      %2451 = vmatprep.subr.bf16.mxu0 0
      %2452 = vmatpush1.bf16.msra.mxu0 0
      %2453 = vmatprep.subr.bf16.mxu0 0
      %2454 = vmatpush1.bf16.msra.mxu0 0
      %2455 = vmatprep.subr.bf16.mxu0 0
      %2456 = vmatpush1.bf16.msra.mxu0 0
      %2457 = vmatprep.subr.bf16.mxu0 0
      %2458 = vmatpush1.bf16.msra.mxu0 0
      %2459 = vmatprep.subr.bf16.mxu0 0
      %2460 = vmatpush1.bf16.msra.mxu0 0
      %2461 = vmatprep.subr.bf16.mxu0 0
      %2462 = vmatpush1.bf16.msra.mxu0 0
      %2463 = vmatprep.subr.bf16.mxu0 0
      %2464 = vmatpush1.bf16.msra.mxu0 0
      %2465 = vmatprep.subr.bf16.mxu0 0
      %2466 = vmatpush1.bf16.msra.mxu0 0
      %2467 = vmatprep.subr.bf16.mxu0 0
      %2468 = vmatpush1.bf16.msra.mxu0 0
      %2469 = vmatprep.subr.bf16.mxu0 0
      %2470 = vmatpush1.bf16.msra.mxu0 0
      %2471 = vmatprep.subr.bf16.mxu0 0
      %2472 = vmatpush1.bf16.msra.mxu0 0
      %2473 = vmatprep.subr.bf16.mxu0 0
      %2474 = vmatpush1.bf16.msra.mxu0 0
      %2475 = vmatprep.mubr.bf16.mxu0 0
      %2476 = vmatmul.mubr.bf16.gmra.mrb[0].mxu0 %v2441
      %v2477 = vpop.f32.mrb[0].mxu0
      %v2478 = vadd.f32 0.0, %v2477
      %v2479 = vpop.f32.mrb[0].mxu0
      %v2480 = vpop.f32.mrb[0].mxu0
      %v2481 = vpop.f32.mrb[0].mxu0
      %2482 = vdwg.mxu0
      %v2487 = vunpack.c.l.b16 %v2314
      %v2488 = vunpack.c.l.b16 %v2315
      %v2489 = vunpack.c.l.b16 %v2316
      %v2490 = vunpack.c.l.b16 %v2317
      %v2491 = vpack.c.b16 %v2488, %v2487
      %v2492 = vpack.c.b16 %v2490, %v2489
      %v2496 = vsel %vm1869, %v2301, 0
      %2498 = vmatprep.subr.bf16.mxu0 0
      %2499 = vmatpush1.bf16.msra.mxu0 %v2491
      %2500 = vmatprep.subr.bf16.mxu0 0
      %2501 = vmatpush1.bf16.msra.mxu0 %v2492
      %2502 = vmatprep.subr.bf16.mxu0 0
      %2503 = vmatpush1.bf16.msra.mxu0 0
      %2504 = vmatprep.subr.bf16.mxu0 0
      %2505 = vmatpush1.bf16.msra.mxu0 0
      %2506 = vmatprep.subr.bf16.mxu0 0
      %2507 = vmatpush1.bf16.msra.mxu0 0
      %2508 = vmatprep.subr.bf16.mxu0 0
      %2509 = vmatpush1.bf16.msra.mxu0 0
      %2510 = vmatprep.subr.bf16.mxu0 0
      %2511 = vmatpush1.bf16.msra.mxu0 0
      %2512 = vmatprep.subr.bf16.mxu0 0
      %2513 = vmatpush1.bf16.msra.mxu0 0
      %2514 = vmatprep.subr.bf16.mxu0 0
      %2515 = vmatpush1.bf16.msra.mxu0 0
      %2516 = vmatprep.subr.bf16.mxu0 0
      %2517 = vmatpush1.bf16.msra.mxu0 0
      %2518 = vmatprep.subr.bf16.mxu0 0
      %2519 = vmatpush1.bf16.msra.mxu0 0
      %2520 = vmatprep.subr.bf16.mxu0 0
      %2521 = vmatpush1.bf16.msra.mxu0 0
      %2522 = vmatprep.subr.bf16.mxu0 0
      %2523 = vmatpush1.bf16.msra.mxu0 0
      %2524 = vmatprep.subr.bf16.mxu0 0
      %2525 = vmatpush1.bf16.msra.mxu0 0
      %2526 = vmatprep.subr.bf16.mxu0 0
      %2527 = vmatpush1.bf16.msra.mxu0 0
      %2528 = vmatprep.subr.bf16.mxu0 0
      %2529 = vmatpush1.bf16.msra.mxu0 0
      %2530 = vmatprep.mubr.bf16.mxu0 0
      %2531 = vmatmul.mubr.bf16.gmra.mrb[0].mxu0 %v2496
      %v2532 = vpop.f32.mrb[0].mxu0
      %v2533 = vadd.f32 0.0, %v2532
      %v2534 = vpop.f32.mrb[0].mxu0
      %v2535 = vpop.f32.mrb[0].mxu0
      %v2536 = vpop.f32.mrb[0].mxu0
      %2537 = vdwg.mxu0
      %v2538 = vadd.f32 %v2368, %v2423
      %v2539 = vadd.f32 %v2538, %v2478
      %v2540 = vadd.f32 %v2539, %v2533
      %v2541 = vld [vmem:[%s5] sm:$0x1]
      %v2543 = vlaneseq
      %v2544 = vshrl.u32 %v2543, 7
      %v2545 = vsub.s32 0, %v2544
      %v2546 = vrot.slane %v2541, %v2545
      %v2548 = vadd.f32 %v2540, %v2546
      %v2549 = vadd.f32 %v522, %v2548
      %2550 = vadd.xlane.f32.xlu0 %v2549
      %v2551 = vpop.xlane.xlu0 %2550
      %v2552 = vrcp.pop 128.0
      %v2553 = vmul.f32 %v2551, %v2552
      %v2554 = vsub.f32 %v2549, %v2553
      %v2555 = vmul.f32 %v2554, %v2554
      %2556 = vadd.xlane.f32.xlu0 %v2555
      %v2557 = vpop.xlane.xlu0 %2556
      %v2558 = vmul.f32 %v2557, %v2552
      %v2559 = vadd.f32 %v2558, 1e-05
      %v2560 = vrsqrt.pop %v2559
      %v2561 = vmul.f32 %v2554, %v2560
      %v2562 = vld [vmem:[%s10] sm:$0x1]
      %v2564 = vlaneseq
      %v2565 = vshrl.u32 %v2564, 7
      %v2566 = vsub.s32 0, %v2565
      %v2567 = vrot.slane %v2562, %v2566
      %v2569 = vmul.f32 %v2561, %v2567
      %v2570 = vld [vmem:[%s11] sm:$0x1]
      %v2572 = vlaneseq
      %v2573 = vshrl.u32 %v2572, 7
      %v2574 = vsub.s32 0, %v2573
      %v2575 = vrot.slane %v2570, %v2574
      %v2577 = vadd.f32 %v2569, %v2575
      %v2578 = vpack.c.bf16 %v2577, %v2577
      %v2579 = vld [vmem:[%s6] sm:$0xff]
      %v2580 = vld [vmem:[%s6 + $0x8] sm:$0xff]
      %v2581 = vld [vmem:[%s6 + $0x10] sm:$0xff]
      %v2582 = vld [vmem:[%s6 + $0x18] sm:$0xff]
      %v2583 = vld [vmem:[%s6 + $0x20] sm:$0xff]
      %v2584 = vld [vmem:[%s6 + $0x28] sm:$0xff]
      %v2585 = vld [vmem:[%s6 + $0x30] sm:$0xff]
      %v2586 = vld [vmem:[%s6 + $0x38] sm:$0xff]
      %v2587 = vld [vmem:[%s6 + $0x40] sm:$0xff]
      %v2588 = vld [vmem:[%s6 + $0x48] sm:$0xff]
      %v2589 = vld [vmem:[%s6 + $0x50] sm:$0xff]
      %v2590 = vld [vmem:[%s6 + $0x58] sm:$0xff]
      %v2591 = vld [vmem:[%s6 + $0x60] sm:$0xff]
      %v2592 = vld [vmem:[%s6 + $0x68] sm:$0xff]
      %v2593 = vld [vmem:[%s6 + $0x70] sm:$0xff]
      %v2594 = vld [vmem:[%s6 + $0x78] sm:$0xff]
      %v2595 = vld [vmem:[%s6 + $0x80] sm:$0xff]
      %v2596 = vld [vmem:[%s6 + $0x88] sm:$0xff]
      %v2597 = vld [vmem:[%s6 + $0x90] sm:$0xff]
      %v2598 = vld [vmem:[%s6 + $0x98] sm:$0xff]
      %v2599 = vld [vmem:[%s6 + $0xa0] sm:$0xff]
      %v2600 = vld [vmem:[%s6 + $0xa8] sm:$0xff]
      %v2601 = vld [vmem:[%s6 + $0xb0] sm:$0xff]
      %v2602 = vld [vmem:[%s6 + $0xb8] sm:$0xff]
      %v2603 = vld [vmem:[%s6 + $0xc0] sm:$0xff]
      %v2604 = vld [vmem:[%s6 + $0xc8] sm:$0xff]
      %v2605 = vld [vmem:[%s6 + $0xd0] sm:$0xff]
      %v2606 = vld [vmem:[%s6 + $0xd8] sm:$0xff]
      %v2607 = vld [vmem:[%s6 + $0xe0] sm:$0xff]
      %v2608 = vld [vmem:[%s6 + $0xe8] sm:$0xff]
      %v2609 = vld [vmem:[%s6 + $0xf0] sm:$0xff]
      %v2610 = vld [vmem:[%s6 + $0xf8] sm:$0xff]
      %v2611 = vld [vmem:[%s7] sm:$0xf]
      %v2613 = vlaneseq
      %v2614 = vshrl.u32 %v2613, 7
      %v2615 = vsub.s32 0, %v2614
      %v2616 = vrot.slane %v2611, %v2615
      %v2617 = vlaneseq
      %v2618 = vshrl.u32 %v2617, 7
      %v2619 = vsub.s32 1, %v2618
      %v2620 = vrot.slane %v2611, %v2619
      %v2621 = vlaneseq
      %v2622 = vshrl.u32 %v2621, 7
      %v2623 = vsub.s32 2, %v2622
      %v2624 = vrot.slane %v2611, %v2623
      %v2625 = vlaneseq
      %v2626 = vshrl.u32 %v2625, 7
      %v2627 = vsub.s32 3, %v2626
      %v2628 = vrot.slane %v2611, %v2627
      %v2665 = vunpack.c.l.b16 %v2579
      %v2666 = vunpack.c.h.b16 %v2579
      %v2667 = vunpack.c.l.b16 %v2580
      %v2668 = vunpack.c.h.b16 %v2580
      %v2669 = vunpack.c.l.b16 %v2581
      %v2670 = vunpack.c.h.b16 %v2581
      %v2671 = vunpack.c.l.b16 %v2582
      %v2672 = vunpack.c.h.b16 %v2582
      %v2673 = vunpack.c.l.b16 %v2583
      %v2674 = vunpack.c.h.b16 %v2583
      %v2675 = vunpack.c.l.b16 %v2584
      %v2676 = vunpack.c.h.b16 %v2584
      %v2677 = vunpack.c.l.b16 %v2585
      %v2678 = vunpack.c.h.b16 %v2585
      %v2679 = vunpack.c.l.b16 %v2586
      %v2680 = vunpack.c.h.b16 %v2586
      %v2681 = vunpack.c.l.b16 %v2587
      %v2682 = vunpack.c.h.b16 %v2587
      %v2683 = vunpack.c.l.b16 %v2588
      %v2684 = vunpack.c.h.b16 %v2588
      %v2685 = vunpack.c.l.b16 %v2589
      %v2686 = vunpack.c.h.b16 %v2589
      %v2687 = vunpack.c.l.b16 %v2590
      %v2688 = vunpack.c.h.b16 %v2590
      %v2689 = vunpack.c.l.b16 %v2591
      %v2690 = vunpack.c.h.b16 %v2591
      %v2691 = vunpack.c.l.b16 %v2592
      %v2692 = vunpack.c.h.b16 %v2592
      %v2693 = vunpack.c.l.b16 %v2593
      %v2694 = vunpack.c.h.b16 %v2593
      %v2695 = vunpack.c.l.b16 %v2594
      %v2696 = vunpack.c.h.b16 %v2594
      %v2697 = vunpack.c.l.b16 %v2595
      %v2698 = vunpack.c.h.b16 %v2595
      %v2699 = vunpack.c.l.b16 %v2596
      %v2700 = vunpack.c.h.b16 %v2596
      %v2701 = vunpack.c.l.b16 %v2597
      %v2702 = vunpack.c.h.b16 %v2597
      %v2703 = vunpack.c.l.b16 %v2598
      %v2704 = vunpack.c.h.b16 %v2598
      %v2705 = vunpack.c.l.b16 %v2599
      %v2706 = vunpack.c.h.b16 %v2599
      %v2707 = vunpack.c.l.b16 %v2600
      %v2708 = vunpack.c.h.b16 %v2600
      %v2709 = vunpack.c.l.b16 %v2601
      %v2710 = vunpack.c.h.b16 %v2601
      %v2711 = vunpack.c.l.b16 %v2602
      %v2712 = vunpack.c.h.b16 %v2602
      %v2713 = vunpack.c.l.b16 %v2603
      %v2714 = vunpack.c.h.b16 %v2603
      %v2715 = vunpack.c.l.b16 %v2604
      %v2716 = vunpack.c.h.b16 %v2604
      %v2717 = vunpack.c.l.b16 %v2605
      %v2718 = vunpack.c.h.b16 %v2605
      %v2719 = vunpack.c.l.b16 %v2606
      %v2720 = vunpack.c.h.b16 %v2606
      %v2721 = vunpack.c.l.b16 %v2607
      %v2722 = vunpack.c.h.b16 %v2607
      %v2723 = vunpack.c.l.b16 %v2608
      %v2724 = vunpack.c.h.b16 %v2608
      %v2725 = vunpack.c.l.b16 %v2609
      %v2726 = vunpack.c.h.b16 %v2609
      %v2727 = vunpack.c.l.b16 %v2610
      %v2728 = vunpack.c.h.b16 %v2610
      %v2729 = vpack.c.b16 %v2669, %v2665
      %v2730 = vpack.c.b16 %v2670, %v2666
      %v2731 = vpack.c.b16 %v2671, %v2667
      %v2732 = vpack.c.b16 %v2672, %v2668
      %v2733 = vpack.c.b16 %v2677, %v2673
      %v2734 = vpack.c.b16 %v2678, %v2674
      %v2735 = vpack.c.b16 %v2679, %v2675
      %v2736 = vpack.c.b16 %v2680, %v2676
      %v2737 = vpack.c.b16 %v2685, %v2681
      %v2738 = vpack.c.b16 %v2686, %v2682
      %v2739 = vpack.c.b16 %v2687, %v2683
      %v2740 = vpack.c.b16 %v2688, %v2684
      %v2741 = vpack.c.b16 %v2693, %v2689
      %v2742 = vpack.c.b16 %v2694, %v2690
      %v2743 = vpack.c.b16 %v2695, %v2691
      %v2744 = vpack.c.b16 %v2696, %v2692
      %v2745 = vpack.c.b16 %v2701, %v2697
      %v2746 = vpack.c.b16 %v2702, %v2698
      %v2747 = vpack.c.b16 %v2703, %v2699
      %v2748 = vpack.c.b16 %v2704, %v2700
      %v2749 = vpack.c.b16 %v2709, %v2705
      %v2750 = vpack.c.b16 %v2710, %v2706
      %v2751 = vpack.c.b16 %v2711, %v2707
      %v2752 = vpack.c.b16 %v2712, %v2708
      %v2753 = vpack.c.b16 %v2717, %v2713
      %v2754 = vpack.c.b16 %v2718, %v2714
      %v2755 = vpack.c.b16 %v2719, %v2715
      %v2756 = vpack.c.b16 %v2720, %v2716
      %v2757 = vpack.c.b16 %v2725, %v2721
      %v2758 = vpack.c.b16 %v2726, %v2722
      %v2759 = vpack.c.b16 %v2727, %v2723
      %v2760 = vpack.c.b16 %v2728, %v2724
      %2793 = vmatprep.subr.bf16.mxu0 %v2730
      %2794 = vmatpush1.bf16.msra.mxu0 %v2729
      %2795 = vmatprep.subr.bf16.mxu0 %v2734
      %2796 = vmatpush1.bf16.msra.mxu0 %v2733
      %2797 = vmatprep.subr.bf16.mxu0 %v2738
      %2798 = vmatpush1.bf16.msra.mxu0 %v2737
      %2799 = vmatprep.subr.bf16.mxu0 %v2742
      %2800 = vmatpush1.bf16.msra.mxu0 %v2741
      %2801 = vmatprep.subr.bf16.mxu0 %v2746
      %2802 = vmatpush1.bf16.msra.mxu0 %v2745
      %2803 = vmatprep.subr.bf16.mxu0 %v2750
      %2804 = vmatpush1.bf16.msra.mxu0 %v2749
      %2805 = vmatprep.subr.bf16.mxu0 %v2754
      %2806 = vmatpush1.bf16.msra.mxu0 %v2753
      %2807 = vmatprep.subr.bf16.mxu0 %v2758
      %2808 = vmatpush1.bf16.msra.mxu0 %v2757
      %2809 = vmatprep.subr.bf16.mxu0 0
      %2810 = vmatpush1.bf16.msra.mxu0 0
      %2811 = vmatprep.subr.bf16.mxu0 0
      %2812 = vmatpush1.bf16.msra.mxu0 0
      %2813 = vmatprep.subr.bf16.mxu0 0
      %2814 = vmatpush1.bf16.msra.mxu0 0
      %2815 = vmatprep.subr.bf16.mxu0 0
      %2816 = vmatpush1.bf16.msra.mxu0 0
      %2817 = vmatprep.subr.bf16.mxu0 0
      %2818 = vmatpush1.bf16.msra.mxu0 0
      %2819 = vmatprep.subr.bf16.mxu0 0
      %2820 = vmatpush1.bf16.msra.mxu0 0
      %2821 = vmatprep.subr.bf16.mxu0 0
      %2822 = vmatpush1.bf16.msra.mxu0 0
      %2823 = vmatprep.subr.bf16.mxu0 0
      %2824 = vmatpush1.bf16.msra.mxu0 0
      %2825 = vmatprep.mubr.bf16.mxu0 0
      %2826 = vmatmul.mubr.bf16.gmra.mrb[0].mxu0 %v2578
      %v2827 = vpop.f32.mrb[0].mxu0
      %v2828 = vadd.f32 %v2616, %v2827
      %v2829 = vpop.f32.mrb[0].mxu0
      %v2830 = vadd.f32 %v2620, %v2829
      %v2831 = vpop.f32.mrb[0].mxu0
      %v2832 = vpop.f32.mrb[0].mxu0
      %2833 = vdwg.mxu0
      %2834 = vmatprep.subr.bf16.mxu0 %v2732
      %2835 = vmatpush1.bf16.msra.mxu0 %v2731
      %2836 = vmatprep.subr.bf16.mxu0 %v2736
      %2837 = vmatpush1.bf16.msra.mxu0 %v2735
      %2838 = vmatprep.subr.bf16.mxu0 %v2740
      %2839 = vmatpush1.bf16.msra.mxu0 %v2739
      %2840 = vmatprep.subr.bf16.mxu0 %v2744
      %2841 = vmatpush1.bf16.msra.mxu0 %v2743
      %2842 = vmatprep.subr.bf16.mxu0 %v2748
      %2843 = vmatpush1.bf16.msra.mxu0 %v2747
      %2844 = vmatprep.subr.bf16.mxu0 %v2752
      %2845 = vmatpush1.bf16.msra.mxu0 %v2751
      %2846 = vmatprep.subr.bf16.mxu0 %v2756
      %2847 = vmatpush1.bf16.msra.mxu0 %v2755
      %2848 = vmatprep.subr.bf16.mxu0 %v2760
      %2849 = vmatpush1.bf16.msra.mxu0 %v2759
      %2850 = vmatprep.subr.bf16.mxu0 0
      %2851 = vmatpush1.bf16.msra.mxu0 0
      %2852 = vmatprep.subr.bf16.mxu0 0
      %2853 = vmatpush1.bf16.msra.mxu0 0
      %2854 = vmatprep.subr.bf16.mxu0 0
      %2855 = vmatpush1.bf16.msra.mxu0 0
      %2856 = vmatprep.subr.bf16.mxu0 0
      %2857 = vmatpush1.bf16.msra.mxu0 0
      %2858 = vmatprep.subr.bf16.mxu0 0
      %2859 = vmatpush1.bf16.msra.mxu0 0
      %2860 = vmatprep.subr.bf16.mxu0 0
      %2861 = vmatpush1.bf16.msra.mxu0 0
      %2862 = vmatprep.subr.bf16.mxu0 0
      %2863 = vmatpush1.bf16.msra.mxu0 0
      %2864 = vmatprep.subr.bf16.mxu0 0
      %2865 = vmatpush1.bf16.msra.mxu0 0
      %2866 = vmatprep.mubr.bf16.mxu0 0
      %2867 = vmatmul.mubr.bf16.gmra.mrb[0].mxu0 %v2578
      %v2868 = vpop.f32.mrb[0].mxu0
      %v2869 = vadd.f32 %v2624, %v2868
      %v2870 = vpop.f32.mrb[0].mxu0
      %v2871 = vadd.f32 %v2628, %v2870
      %v2872 = vpop.f32.mrb[0].mxu0
      %v2873 = vpop.f32.mrb[0].mxu0
      %2874 = vdwg.mxu0
      %v2875 = vmax.f32 %v2828, 0.0
      %v2876 = vmax.f32 %v2830, 0.0
      %v2877 = vmax.f32 %v2869, 0.0
      %v2878 = vmax.f32 %v2871, 0.0
      %v2879 = vpack.c.bf16 %v2875, %v2875
      %v2880 = vpack.c.bf16 %v2876, %v2876
      %v2881 = vpack.c.bf16 %v2877, %v2877
      %v2882 = vpack.c.bf16 %v2878, %v2878
      %v2883 = vld [vmem:[%s8] sm:$0xf]
      %v2884 = vld [vmem:[%s8 + $0x4] sm:$0xf]
      %v2885 = vld [vmem:[%s8 + $0x8] sm:$0xf]
      %v2886 = vld [vmem:[%s8 + $0xc] sm:$0xf]
      %v2887 = vld [vmem:[%s8 + $0x10] sm:$0xf]
      %v2888 = vld [vmem:[%s8 + $0x14] sm:$0xf]
      %v2889 = vld [vmem:[%s8 + $0x18] sm:$0xf]
      %v2890 = vld [vmem:[%s8 + $0x1c] sm:$0xf]
      %v2891 = vld [vmem:[%s8 + $0x20] sm:$0xf]
      %v2892 = vld [vmem:[%s8 + $0x24] sm:$0xf]
      %v2893 = vld [vmem:[%s8 + $0x28] sm:$0xf]
      %v2894 = vld [vmem:[%s8 + $0x2c] sm:$0xf]
      %v2895 = vld [vmem:[%s8 + $0x30] sm:$0xf]
      %v2896 = vld [vmem:[%s8 + $0x34] sm:$0xf]
      %v2897 = vld [vmem:[%s8 + $0x38] sm:$0xf]
      %v2898 = vld [vmem:[%s8 + $0x3c] sm:$0xf]
      %v2899 = vld [vmem:[%s8 + $0x40] sm:$0xf]
      %v2900 = vld [vmem:[%s8 + $0x44] sm:$0xf]
      %v2901 = vld [vmem:[%s8 + $0x48] sm:$0xf]
      %v2902 = vld [vmem:[%s8 + $0x4c] sm:$0xf]
      %v2903 = vld [vmem:[%s8 + $0x50] sm:$0xf]
      %v2904 = vld [vmem:[%s8 + $0x54] sm:$0xf]
      %v2905 = vld [vmem:[%s8 + $0x58] sm:$0xf]
      %v2906 = vld [vmem:[%s8 + $0x5c] sm:$0xf]
      %v2907 = vld [vmem:[%s8 + $0x60] sm:$0xf]
      %v2908 = vld [vmem:[%s8 + $0x64] sm:$0xf]
      %v2909 = vld [vmem:[%s8 + $0x68] sm:$0xf]
      %v2910 = vld [vmem:[%s8 + $0x6c] sm:$0xf]
      %v2911 = vld [vmem:[%s8 + $0x70] sm:$0xf]
      %v2912 = vld [vmem:[%s8 + $0x74] sm:$0xf]
      %v2913 = vld [vmem:[%s8 + $0x78] sm:$0xf]
      %v2914 = vld [vmem:[%s8 + $0x7c] sm:$0xf]
      %v2915 = vld [vmem:[%s8 + $0x80] sm:$0xf]
      %v2916 = vld [vmem:[%s8 + $0x84] sm:$0xf]
      %v2917 = vld [vmem:[%s8 + $0x88] sm:$0xf]
      %v2918 = vld [vmem:[%s8 + $0x8c] sm:$0xf]
      %v2919 = vld [vmem:[%s8 + $0x90] sm:$0xf]
      %v2920 = vld [vmem:[%s8 + $0x94] sm:$0xf]
      %v2921 = vld [vmem:[%s8 + $0x98] sm:$0xf]
      %v2922 = vld [vmem:[%s8 + $0x9c] sm:$0xf]
      %v2923 = vld [vmem:[%s8 + $0xa0] sm:$0xf]
      %v2924 = vld [vmem:[%s8 + $0xa4] sm:$0xf]
      %v2925 = vld [vmem:[%s8 + $0xa8] sm:$0xf]
      %v2926 = vld [vmem:[%s8 + $0xac] sm:$0xf]
      %v2927 = vld [vmem:[%s8 + $0xb0] sm:$0xf]
      %v2928 = vld [vmem:[%s8 + $0xb4] sm:$0xf]
      %v2929 = vld [vmem:[%s8 + $0xb8] sm:$0xf]
      %v2930 = vld [vmem:[%s8 + $0xbc] sm:$0xf]
      %v2931 = vld [vmem:[%s8 + $0xc0] sm:$0xf]
      %v2932 = vld [vmem:[%s8 + $0xc4] sm:$0xf]
      %v2933 = vld [vmem:[%s8 + $0xc8] sm:$0xf]
      %v2934 = vld [vmem:[%s8 + $0xcc] sm:$0xf]
      %v2935 = vld [vmem:[%s8 + $0xd0] sm:$0xf]
      %v2936 = vld [vmem:[%s8 + $0xd4] sm:$0xf]
      %v2937 = vld [vmem:[%s8 + $0xd8] sm:$0xf]
      %v2938 = vld [vmem:[%s8 + $0xdc] sm:$0xf]
      %v2939 = vld [vmem:[%s8 + $0xe0] sm:$0xf]
      %v2940 = vld [vmem:[%s8 + $0xe4] sm:$0xf]
      %v2941 = vld [vmem:[%s8 + $0xe8] sm:$0xf]
      %v2942 = vld [vmem:[%s8 + $0xec] sm:$0xf]
      %v2943 = vld [vmem:[%s8 + $0xf0] sm:$0xf]
      %v2944 = vld [vmem:[%s8 + $0xf4] sm:$0xf]
      %v2945 = vld [vmem:[%s8 + $0xf8] sm:$0xf]
      %v2946 = vld [vmem:[%s8 + $0xfc] sm:$0xf]
      %v2947 = vld [vmem:[%s9] sm:$0x1]
      %v2949 = vlaneseq
      %v2950 = vshrl.u32 %v2949, 7
      %v2951 = vsub.s32 0, %v2950
      %v2952 = vrot.slane %v2947, %v2951
      %v3018 = vunpack.c.l.b16 %v2883
      %v3019 = vunpack.c.l.b16 %v2884
      %v3020 = vunpack.c.l.b16 %v2885
      %v3021 = vunpack.c.l.b16 %v2886
      %v3022 = vunpack.c.l.b16 %v2887
      %v3023 = vunpack.c.l.b16 %v2888
      %v3024 = vunpack.c.l.b16 %v2889
      %v3025 = vunpack.c.l.b16 %v2890
      %v3026 = vunpack.c.l.b16 %v2891
      %v3027 = vunpack.c.l.b16 %v2892
      %v3028 = vunpack.c.l.b16 %v2893
      %v3029 = vunpack.c.l.b16 %v2894
      %v3030 = vunpack.c.l.b16 %v2895
      %v3031 = vunpack.c.l.b16 %v2896
      %v3032 = vunpack.c.l.b16 %v2897
      %v3033 = vunpack.c.l.b16 %v2898
      %v3034 = vunpack.c.l.b16 %v2899
      %v3035 = vunpack.c.l.b16 %v2900
      %v3036 = vunpack.c.l.b16 %v2901
      %v3037 = vunpack.c.l.b16 %v2902
      %v3038 = vunpack.c.l.b16 %v2903
      %v3039 = vunpack.c.l.b16 %v2904
      %v3040 = vunpack.c.l.b16 %v2905
      %v3041 = vunpack.c.l.b16 %v2906
      %v3042 = vunpack.c.l.b16 %v2907
      %v3043 = vunpack.c.l.b16 %v2908
      %v3044 = vunpack.c.l.b16 %v2909
      %v3045 = vunpack.c.l.b16 %v2910
      %v3046 = vunpack.c.l.b16 %v2911
      %v3047 = vunpack.c.l.b16 %v2912
      %v3048 = vunpack.c.l.b16 %v2913
      %v3049 = vunpack.c.l.b16 %v2914
      %v3050 = vunpack.c.l.b16 %v2915
      %v3051 = vunpack.c.l.b16 %v2916
      %v3052 = vunpack.c.l.b16 %v2917
      %v3053 = vunpack.c.l.b16 %v2918
      %v3054 = vunpack.c.l.b16 %v2919
      %v3055 = vunpack.c.l.b16 %v2920
      %v3056 = vunpack.c.l.b16 %v2921
      %v3057 = vunpack.c.l.b16 %v2922
      %v3058 = vunpack.c.l.b16 %v2923
      %v3059 = vunpack.c.l.b16 %v2924
      %v3060 = vunpack.c.l.b16 %v2925
      %v3061 = vunpack.c.l.b16 %v2926
      %v3062 = vunpack.c.l.b16 %v2927
      %v3063 = vunpack.c.l.b16 %v2928
      %v3064 = vunpack.c.l.b16 %v2929
      %v3065 = vunpack.c.l.b16 %v2930
      %v3066 = vunpack.c.l.b16 %v2931
      %v3067 = vunpack.c.l.b16 %v2932
      %v3068 = vunpack.c.l.b16 %v2933
      %v3069 = vunpack.c.l.b16 %v2934
      %v3070 = vunpack.c.l.b16 %v2935
      %v3071 = vunpack.c.l.b16 %v2936
      %v3072 = vunpack.c.l.b16 %v2937
      %v3073 = vunpack.c.l.b16 %v2938
      %v3074 = vunpack.c.l.b16 %v2939
      %v3075 = vunpack.c.l.b16 %v2940
      %v3076 = vunpack.c.l.b16 %v2941
      %v3077 = vunpack.c.l.b16 %v2942
      %v3078 = vunpack.c.l.b16 %v2943
      %v3079 = vunpack.c.l.b16 %v2944
      %v3080 = vunpack.c.l.b16 %v2945
      %v3081 = vunpack.c.l.b16 %v2946
      %v3082 = vpack.c.b16 %v3019, %v3018
      %v3083 = vpack.c.b16 %v3021, %v3020
      %v3084 = vpack.c.b16 %v3023, %v3022
      %v3085 = vpack.c.b16 %v3025, %v3024
      %v3086 = vpack.c.b16 %v3027, %v3026
      %v3087 = vpack.c.b16 %v3029, %v3028
      %v3088 = vpack.c.b16 %v3031, %v3030
      %v3089 = vpack.c.b16 %v3033, %v3032
      %v3090 = vpack.c.b16 %v3035, %v3034
      %v3091 = vpack.c.b16 %v3037, %v3036
      %v3092 = vpack.c.b16 %v3039, %v3038
      %v3093 = vpack.c.b16 %v3041, %v3040
      %v3094 = vpack.c.b16 %v3043, %v3042
      %v3095 = vpack.c.b16 %v3045, %v3044
      %v3096 = vpack.c.b16 %v3047, %v3046
      %v3097 = vpack.c.b16 %v3049, %v3048
      %v3098 = vpack.c.b16 %v3051, %v3050
      %v3099 = vpack.c.b16 %v3053, %v3052
      %v3100 = vpack.c.b16 %v3055, %v3054
      %v3101 = vpack.c.b16 %v3057, %v3056
      %v3102 = vpack.c.b16 %v3059, %v3058
      %v3103 = vpack.c.b16 %v3061, %v3060
      %v3104 = vpack.c.b16 %v3063, %v3062
      %v3105 = vpack.c.b16 %v3065, %v3064
      %v3106 = vpack.c.b16 %v3067, %v3066
      %v3107 = vpack.c.b16 %v3069, %v3068
      %v3108 = vpack.c.b16 %v3071, %v3070
      %v3109 = vpack.c.b16 %v3073, %v3072
      %v3110 = vpack.c.b16 %v3075, %v3074
      %v3111 = vpack.c.b16 %v3077, %v3076
      %v3112 = vpack.c.b16 %v3079, %v3078
      %v3113 = vpack.c.b16 %v3081, %v3080
      %3146 = vmatprep.subr.bf16.mxu0 0
      %3147 = vmatpush1.bf16.msra.mxu0 %v3082
      %3148 = vmatprep.subr.bf16.mxu0 0
      %3149 = vmatpush1.bf16.msra.mxu0 %v3083
      %3150 = vmatprep.subr.bf16.mxu0 0
      %3151 = vmatpush1.bf16.msra.mxu0 %v3084
      %3152 = vmatprep.subr.bf16.mxu0 0
      %3153 = vmatpush1.bf16.msra.mxu0 %v3085
      %3154 = vmatprep.subr.bf16.mxu0 0
      %3155 = vmatpush1.bf16.msra.mxu0 %v3086
      %3156 = vmatprep.subr.bf16.mxu0 0
      %3157 = vmatpush1.bf16.msra.mxu0 %v3087
      %3158 = vmatprep.subr.bf16.mxu0 0
      %3159 = vmatpush1.bf16.msra.mxu0 %v3088
      %3160 = vmatprep.subr.bf16.mxu0 0
      %3161 = vmatpush1.bf16.msra.mxu0 %v3089
      %3162 = vmatprep.subr.bf16.mxu0 0
      %3163 = vmatpush1.bf16.msra.mxu0 %v3090
      %3164 = vmatprep.subr.bf16.mxu0 0
      %3165 = vmatpush1.bf16.msra.mxu0 %v3091
      %3166 = vmatprep.subr.bf16.mxu0 0
      %3167 = vmatpush1.bf16.msra.mxu0 %v3092
      %3168 = vmatprep.subr.bf16.mxu0 0
      %3169 = vmatpush1.bf16.msra.mxu0 %v3093
      %3170 = vmatprep.subr.bf16.mxu0 0
      %3171 = vmatpush1.bf16.msra.mxu0 %v3094
      %3172 = vmatprep.subr.bf16.mxu0 0
      %3173 = vmatpush1.bf16.msra.mxu0 %v3095
      %3174 = vmatprep.subr.bf16.mxu0 0
      %3175 = vmatpush1.bf16.msra.mxu0 %v3096
      %3176 = vmatprep.subr.bf16.mxu0 0
      %3177 = vmatpush1.bf16.msra.mxu0 %v3097
      %3178 = vmatprep.mubr.bf16.mxu0 %v2880
      %3179 = vmatmul.mubr.bf16.gmra.mrb[0].mxu0 %v2879
      %v3180 = vpop.f32.mrb[0].mxu0
      %v3181 = vadd.f32 %v2952, %v3180
      %v3182 = vpop.f32.mrb[0].mxu0
      %v3183 = vpop.f32.mrb[0].mxu0
      %v3184 = vpop.f32.mrb[0].mxu0
      %3185 = vdwg.mxu0
      %3186 = vmatprep.subr.bf16.mxu0 0
      %3187 = vmatpush1.bf16.msra.mxu0 %v3098
      %3188 = vmatprep.subr.bf16.mxu0 0
      %3189 = vmatpush1.bf16.msra.mxu0 %v3099
      %3190 = vmatprep.subr.bf16.mxu0 0
      %3191 = vmatpush1.bf16.msra.mxu0 %v3100
      %3192 = vmatprep.subr.bf16.mxu0 0
      %3193 = vmatpush1.bf16.msra.mxu0 %v3101
      %3194 = vmatprep.subr.bf16.mxu0 0
      %3195 = vmatpush1.bf16.msra.mxu0 %v3102
      %3196 = vmatprep.subr.bf16.mxu0 0
      %3197 = vmatpush1.bf16.msra.mxu0 %v3103
      %3198 = vmatprep.subr.bf16.mxu0 0
      %3199 = vmatpush1.bf16.msra.mxu0 %v3104
      %3200 = vmatprep.subr.bf16.mxu0 0
      %3201 = vmatpush1.bf16.msra.mxu0 %v3105
      %3202 = vmatprep.subr.bf16.mxu0 0
      %3203 = vmatpush1.bf16.msra.mxu0 %v3106
      %3204 = vmatprep.subr.bf16.mxu0 0
      %3205 = vmatpush1.bf16.msra.mxu0 %v3107
      %3206 = vmatprep.subr.bf16.mxu0 0
      %3207 = vmatpush1.bf16.msra.mxu0 %v3108
      %3208 = vmatprep.subr.bf16.mxu0 0
      %3209 = vmatpush1.bf16.msra.mxu0 %v3109
      %3210 = vmatprep.subr.bf16.mxu0 0
      %3211 = vmatpush1.bf16.msra.mxu0 %v3110
      %3212 = vmatprep.subr.bf16.mxu0 0
      %3213 = vmatpush1.bf16.msra.mxu0 %v3111
      %3214 = vmatprep.subr.bf16.mxu0 0
      %3215 = vmatpush1.bf16.msra.mxu0 %v3112
      %3216 = vmatprep.subr.bf16.mxu0 0
      %3217 = vmatpush1.bf16.msra.mxu0 %v3113
      %3218 = vmatprep.mubr.bf16.mxu0 %v2882
      %3219 = vmatmul.mubr.bf16.gmra.mrb[0].mxu0 %v2881
      %v3220 = vpop.f32.mrb[0].mxu0
      %v3221 = vadd.f32 %v3181, %v3220
      %v3222 = vpop.f32.mrb[0].mxu0
      %v3223 = vpop.f32.mrb[0].mxu0
      %v3224 = vpop.f32.mrb[0].mxu0
      %3225 = vdwg.mxu0
      %v3226 = vadd.f32 %v2577, %v3221
      %3227 = vadd.xlane.f32.xlu0 %v3226
      %v3228 = vpop.xlane.xlu0 %3227
      %v3229 = vmul.f32 %v3228, %v2552
      %v3230 = vsub.f32 %v3226, %v3229
      %v3231 = vmul.f32 %v3230, %v3230
      %3232 = vadd.xlane.f32.xlu0 %v3231
      %v3233 = vpop.xlane.xlu0 %3232
      %v3234 = vmul.f32 %v3233, %v2552
      %v3235 = vadd.f32 %v3234, 1e-05
      %v3236 = vrsqrt.pop %v3235
      %v3237 = vmul.f32 %v3230, %v3236
      %v3238 = vld [vmem:[%s12] sm:$0x1]
      %v3240 = vlaneseq
      %v3241 = vshrl.u32 %v3240, 7
      %v3242 = vsub.s32 0, %v3241
      %v3243 = vrot.slane %v3238, %v3242
      %v3245 = vmul.f32 %v3237, %v3243
      %v3246 = vld [vmem:[%s13] sm:$0x1]
      %v3248 = vlaneseq
      %v3249 = vshrl.u32 %v3248, 7
      %v3250 = vsub.s32 0, %v3249
      %v3251 = vrot.slane %v3246, %v3250
      %v3253 = vadd.f32 %v3245, %v3251
      %v3254 = vpack.c.bf16 %v3253, %v3253
      %s3255 = scalar_lea.vmem %s2, 768
      %v3256 = vld [vmem:[%s3255] sm:$0xf]
      %v3257 = vld [vmem:[%s3255 + $0x4] sm:$0xf]
      %v3258 = vld [vmem:[%s3255 + $0x8] sm:$0xf]
      %v3259 = vld [vmem:[%s3255 + $0xc] sm:$0xf]
      %v3260 = vld [vmem:[%s3255 + $0x10] sm:$0xf]
      %v3261 = vld [vmem:[%s3255 + $0x14] sm:$0xf]
      %v3262 = vld [vmem:[%s3255 + $0x18] sm:$0xf]
      %v3263 = vld [vmem:[%s3255 + $0x1c] sm:$0xf]
      %v3264 = vld [vmem:[%s3255 + $0x20] sm:$0xf]
      %v3265 = vld [vmem:[%s3255 + $0x24] sm:$0xf]
      %v3266 = vld [vmem:[%s3255 + $0x28] sm:$0xf]
      %v3267 = vld [vmem:[%s3255 + $0x2c] sm:$0xf]
      %v3268 = vld [vmem:[%s3255 + $0x30] sm:$0xf]
      %v3269 = vld [vmem:[%s3255 + $0x34] sm:$0xf]
      %v3270 = vld [vmem:[%s3255 + $0x38] sm:$0xf]
      %v3271 = vld [vmem:[%s3255 + $0x3c] sm:$0xf]
      %v3272 = vld [vmem:[%s3255 + $0x40] sm:$0xf]
      %v3273 = vld [vmem:[%s3255 + $0x44] sm:$0xf]
      %v3274 = vld [vmem:[%s3255 + $0x48] sm:$0xf]
      %v3275 = vld [vmem:[%s3255 + $0x4c] sm:$0xf]
      %v3276 = vld [vmem:[%s3255 + $0x50] sm:$0xf]
      %v3277 = vld [vmem:[%s3255 + $0x54] sm:$0xf]
      %v3278 = vld [vmem:[%s3255 + $0x58] sm:$0xf]
      %v3279 = vld [vmem:[%s3255 + $0x5c] sm:$0xf]
      %v3280 = vld [vmem:[%s3255 + $0x60] sm:$0xf]
      %v3281 = vld [vmem:[%s3255 + $0x64] sm:$0xf]
      %v3282 = vld [vmem:[%s3255 + $0x68] sm:$0xf]
      %v3283 = vld [vmem:[%s3255 + $0x6c] sm:$0xf]
      %v3284 = vld [vmem:[%s3255 + $0x70] sm:$0xf]
      %v3285 = vld [vmem:[%s3255 + $0x74] sm:$0xf]
      %v3286 = vld [vmem:[%s3255 + $0x78] sm:$0xf]
      %v3287 = vld [vmem:[%s3255 + $0x7c] sm:$0xf]
      %v3288 = vld [vmem:[%s3255 + $0x80] sm:$0xf]
      %v3289 = vld [vmem:[%s3255 + $0x84] sm:$0xf]
      %v3290 = vld [vmem:[%s3255 + $0x88] sm:$0xf]
      %v3291 = vld [vmem:[%s3255 + $0x8c] sm:$0xf]
      %v3292 = vld [vmem:[%s3255 + $0x90] sm:$0xf]
      %v3293 = vld [vmem:[%s3255 + $0x94] sm:$0xf]
      %v3294 = vld [vmem:[%s3255 + $0x98] sm:$0xf]
      %v3295 = vld [vmem:[%s3255 + $0x9c] sm:$0xf]
      %v3296 = vld [vmem:[%s3255 + $0xa0] sm:$0xf]
      %v3297 = vld [vmem:[%s3255 + $0xa4] sm:$0xf]
      %v3298 = vld [vmem:[%s3255 + $0xa8] sm:$0xf]
      %v3299 = vld [vmem:[%s3255 + $0xac] sm:$0xf]
      %v3300 = vld [vmem:[%s3255 + $0xb0] sm:$0xf]
      %v3301 = vld [vmem:[%s3255 + $0xb4] sm:$0xf]
      %v3302 = vld [vmem:[%s3255 + $0xb8] sm:$0xf]
      %v3303 = vld [vmem:[%s3255 + $0xbc] sm:$0xf]
      %v3304 = vld [vmem:[%s3255 + $0xc0] sm:$0xf]
      %v3305 = vld [vmem:[%s3255 + $0xc4] sm:$0xf]
      %v3306 = vld [vmem:[%s3255 + $0xc8] sm:$0xf]
      %v3307 = vld [vmem:[%s3255 + $0xcc] sm:$0xf]
      %v3308 = vld [vmem:[%s3255 + $0xd0] sm:$0xf]
      %v3309 = vld [vmem:[%s3255 + $0xd4] sm:$0xf]
      %v3310 = vld [vmem:[%s3255 + $0xd8] sm:$0xf]
      %v3311 = vld [vmem:[%s3255 + $0xdc] sm:$0xf]
      %v3312 = vld [vmem:[%s3255 + $0xe0] sm:$0xf]
      %v3313 = vld [vmem:[%s3255 + $0xe4] sm:$0xf]
      %v3314 = vld [vmem:[%s3255 + $0xe8] sm:$0xf]
      %v3315 = vld [vmem:[%s3255 + $0xec] sm:$0xf]
      %v3316 = vld [vmem:[%s3255 + $0xf0] sm:$0xf]
      %v3317 = vld [vmem:[%s3255 + $0xf4] sm:$0xf]
      %v3318 = vld [vmem:[%s3255 + $0xf8] sm:$0xf]
      %v3319 = vld [vmem:[%s3255 + $0xfc] sm:$0xf]
      %v3320 = vld [vmem:[%s3255 + $0x100] sm:$0xf]
      %v3321 = vld [vmem:[%s3255 + $0x104] sm:$0xf]
      %v3322 = vld [vmem:[%s3255 + $0x108] sm:$0xf]
      %v3323 = vld [vmem:[%s3255 + $0x10c] sm:$0xf]
      %v3324 = vld [vmem:[%s3255 + $0x110] sm:$0xf]
      %v3325 = vld [vmem:[%s3255 + $0x114] sm:$0xf]
      %v3326 = vld [vmem:[%s3255 + $0x118] sm:$0xf]
      %v3327 = vld [vmem:[%s3255 + $0x11c] sm:$0xf]
      %v3328 = vld [vmem:[%s3255 + $0x120] sm:$0xf]
      %v3329 = vld [vmem:[%s3255 + $0x124] sm:$0xf]
      %v3330 = vld [vmem:[%s3255 + $0x128] sm:$0xf]
      %v3331 = vld [vmem:[%s3255 + $0x12c] sm:$0xf]
      %v3332 = vld [vmem:[%s3255 + $0x130] sm:$0xf]
      %v3333 = vld [vmem:[%s3255 + $0x134] sm:$0xf]
      %v3334 = vld [vmem:[%s3255 + $0x138] sm:$0xf]
      %v3335 = vld [vmem:[%s3255 + $0x13c] sm:$0xf]
      %v3336 = vld [vmem:[%s3255 + $0x140] sm:$0xf]
      %v3337 = vld [vmem:[%s3255 + $0x144] sm:$0xf]
      %v3338 = vld [vmem:[%s3255 + $0x148] sm:$0xf]
      %v3339 = vld [vmem:[%s3255 + $0x14c] sm:$0xf]
      %v3340 = vld [vmem:[%s3255 + $0x150] sm:$0xf]
      %v3341 = vld [vmem:[%s3255 + $0x154] sm:$0xf]
      %v3342 = vld [vmem:[%s3255 + $0x158] sm:$0xf]
      %v3343 = vld [vmem:[%s3255 + $0x15c] sm:$0xf]
      %v3344 = vld [vmem:[%s3255 + $0x160] sm:$0xf]
      %v3345 = vld [vmem:[%s3255 + $0x164] sm:$0xf]
      %v3346 = vld [vmem:[%s3255 + $0x168] sm:$0xf]
      %v3347 = vld [vmem:[%s3255 + $0x16c] sm:$0xf]
      %v3348 = vld [vmem:[%s3255 + $0x170] sm:$0xf]
      %v3349 = vld [vmem:[%s3255 + $0x174] sm:$0xf]
      %v3350 = vld [vmem:[%s3255 + $0x178] sm:$0xf]
      %v3351 = vld [vmem:[%s3255 + $0x17c] sm:$0xf]
      %v3352 = vld [vmem:[%s3255 + $0x180] sm:$0xf]
      %v3353 = vld [vmem:[%s3255 + $0x184] sm:$0xf]
      %v3354 = vld [vmem:[%s3255 + $0x188] sm:$0xf]
      %v3355 = vld [vmem:[%s3255 + $0x18c] sm:$0xf]
      %v3356 = vld [vmem:[%s3255 + $0x190] sm:$0xf]
      %v3357 = vld [vmem:[%s3255 + $0x194] sm:$0xf]
      %v3358 = vld [vmem:[%s3255 + $0x198] sm:$0xf]
      %v3359 = vld [vmem:[%s3255 + $0x19c] sm:$0xf]
      %v3360 = vld [vmem:[%s3255 + $0x1a0] sm:$0xf]
      %v3361 = vld [vmem:[%s3255 + $0x1a4] sm:$0xf]
      %v3362 = vld [vmem:[%s3255 + $0x1a8] sm:$0xf]
      %v3363 = vld [vmem:[%s3255 + $0x1ac] sm:$0xf]
      %v3364 = vld [vmem:[%s3255 + $0x1b0] sm:$0xf]
      %v3365 = vld [vmem:[%s3255 + $0x1b4] sm:$0xf]
      %v3366 = vld [vmem:[%s3255 + $0x1b8] sm:$0xf]
      %v3367 = vld [vmem:[%s3255 + $0x1bc] sm:$0xf]
      %v3368 = vld [vmem:[%s3255 + $0x1c0] sm:$0xf]
      %v3369 = vld [vmem:[%s3255 + $0x1c4] sm:$0xf]
      %v3370 = vld [vmem:[%s3255 + $0x1c8] sm:$0xf]
      %v3371 = vld [vmem:[%s3255 + $0x1cc] sm:$0xf]
      %v3372 = vld [vmem:[%s3255 + $0x1d0] sm:$0xf]
      %v3373 = vld [vmem:[%s3255 + $0x1d4] sm:$0xf]
      %v3374 = vld [vmem:[%s3255 + $0x1d8] sm:$0xf]
      %v3375 = vld [vmem:[%s3255 + $0x1dc] sm:$0xf]
      %v3376 = vld [vmem:[%s3255 + $0x1e0] sm:$0xf]
      %v3377 = vld [vmem:[%s3255 + $0x1e4] sm:$0xf]
      %v3378 = vld [vmem:[%s3255 + $0x1e8] sm:$0xf]
      %v3379 = vld [vmem:[%s3255 + $0x1ec] sm:$0xf]
      %v3380 = vld [vmem:[%s3255 + $0x1f0] sm:$0xf]
      %v3381 = vld [vmem:[%s3255 + $0x1f4] sm:$0xf]
      %v3382 = vld [vmem:[%s3255 + $0x1f8] sm:$0xf]
      %v3383 = vld [vmem:[%s3255 + $0x1fc] sm:$0xf]
      %v3384 = vld [vmem:[%s3255 + $0x200] sm:$0xf]
      %v3385 = vld [vmem:[%s3255 + $0x204] sm:$0xf]
      %v3386 = vld [vmem:[%s3255 + $0x208] sm:$0xf]
      %v3387 = vld [vmem:[%s3255 + $0x20c] sm:$0xf]
      %v3388 = vld [vmem:[%s3255 + $0x210] sm:$0xf]
      %v3389 = vld [vmem:[%s3255 + $0x214] sm:$0xf]
      %v3390 = vld [vmem:[%s3255 + $0x218] sm:$0xf]
      %v3391 = vld [vmem:[%s3255 + $0x21c] sm:$0xf]
      %v3392 = vld [vmem:[%s3255 + $0x220] sm:$0xf]
      %v3393 = vld [vmem:[%s3255 + $0x224] sm:$0xf]
      %v3394 = vld [vmem:[%s3255 + $0x228] sm:$0xf]
      %v3395 = vld [vmem:[%s3255 + $0x22c] sm:$0xf]
      %v3396 = vld [vmem:[%s3255 + $0x230] sm:$0xf]
      %v3397 = vld [vmem:[%s3255 + $0x234] sm:$0xf]
      %v3398 = vld [vmem:[%s3255 + $0x238] sm:$0xf]
      %v3399 = vld [vmem:[%s3255 + $0x23c] sm:$0xf]
      %v3400 = vld [vmem:[%s3255 + $0x240] sm:$0xf]
      %v3401 = vld [vmem:[%s3255 + $0x244] sm:$0xf]
      %v3402 = vld [vmem:[%s3255 + $0x248] sm:$0xf]
      %v3403 = vld [vmem:[%s3255 + $0x24c] sm:$0xf]
      %v3404 = vld [vmem:[%s3255 + $0x250] sm:$0xf]
      %v3405 = vld [vmem:[%s3255 + $0x254] sm:$0xf]
      %v3406 = vld [vmem:[%s3255 + $0x258] sm:$0xf]
      %v3407 = vld [vmem:[%s3255 + $0x25c] sm:$0xf]
      %v3408 = vld [vmem:[%s3255 + $0x260] sm:$0xf]
      %v3409 = vld [vmem:[%s3255 + $0x264] sm:$0xf]
      %v3410 = vld [vmem:[%s3255 + $0x268] sm:$0xf]
      %v3411 = vld [vmem:[%s3255 + $0x26c] sm:$0xf]
      %v3412 = vld [vmem:[%s3255 + $0x270] sm:$0xf]
      %v3413 = vld [vmem:[%s3255 + $0x274] sm:$0xf]
      %v3414 = vld [vmem:[%s3255 + $0x278] sm:$0xf]
      %v3415 = vld [vmem:[%s3255 + $0x27c] sm:$0xf]
      %v3416 = vld [vmem:[%s3255 + $0x280] sm:$0xf]
      %v3417 = vld [vmem:[%s3255 + $0x284] sm:$0xf]
      %v3418 = vld [vmem:[%s3255 + $0x288] sm:$0xf]
      %v3419 = vld [vmem:[%s3255 + $0x28c] sm:$0xf]
      %v3420 = vld [vmem:[%s3255 + $0x290] sm:$0xf]
      %v3421 = vld [vmem:[%s3255 + $0x294] sm:$0xf]
      %v3422 = vld [vmem:[%s3255 + $0x298] sm:$0xf]
      %v3423 = vld [vmem:[%s3255 + $0x29c] sm:$0xf]
      %v3424 = vld [vmem:[%s3255 + $0x2a0] sm:$0xf]
      %v3425 = vld [vmem:[%s3255 + $0x2a4] sm:$0xf]
      %v3426 = vld [vmem:[%s3255 + $0x2a8] sm:$0xf]
      %v3427 = vld [vmem:[%s3255 + $0x2ac] sm:$0xf]
      %v3428 = vld [vmem:[%s3255 + $0x2b0] sm:$0xf]
      %v3429 = vld [vmem:[%s3255 + $0x2b4] sm:$0xf]
      %v3430 = vld [vmem:[%s3255 + $0x2b8] sm:$0xf]
      %v3431 = vld [vmem:[%s3255 + $0x2bc] sm:$0xf]
      %v3432 = vld [vmem:[%s3255 + $0x2c0] sm:$0xf]
      %v3433 = vld [vmem:[%s3255 + $0x2c4] sm:$0xf]
      %v3434 = vld [vmem:[%s3255 + $0x2c8] sm:$0xf]
      %v3435 = vld [vmem:[%s3255 + $0x2cc] sm:$0xf]
      %v3436 = vld [vmem:[%s3255 + $0x2d0] sm:$0xf]
      %v3437 = vld [vmem:[%s3255 + $0x2d4] sm:$0xf]
      %v3438 = vld [vmem:[%s3255 + $0x2d8] sm:$0xf]
      %v3439 = vld [vmem:[%s3255 + $0x2dc] sm:$0xf]
      %v3440 = vld [vmem:[%s3255 + $0x2e0] sm:$0xf]
      %v3441 = vld [vmem:[%s3255 + $0x2e4] sm:$0xf]
      %v3442 = vld [vmem:[%s3255 + $0x2e8] sm:$0xf]
      %v3443 = vld [vmem:[%s3255 + $0x2ec] sm:$0xf]
      %v3444 = vld [vmem:[%s3255 + $0x2f0] sm:$0xf]
      %v3445 = vld [vmem:[%s3255 + $0x2f4] sm:$0xf]
      %v3446 = vld [vmem:[%s3255 + $0x2f8] sm:$0xf]
      %v3447 = vld [vmem:[%s3255 + $0x2fc] sm:$0xf]
      %s3448 = scalar_lea.vmem %s3, 12
      %v3449 = vld [vmem:[%s3448] sm:$0x1]
      %v3450 = vld [vmem:[%s3448 + $0x1] sm:$0x1]
      %v3451 = vld [vmem:[%s3448 + $0x2] sm:$0x1]
      %v3452 = vld [vmem:[%s3448 + $0x3] sm:$0x1]
      %v3453 = vld [vmem:[%s3448 + $0x4] sm:$0x1]
      %v3454 = vld [vmem:[%s3448 + $0x5] sm:$0x1]
      %v3455 = vld [vmem:[%s3448 + $0x6] sm:$0x1]
      %v3456 = vld [vmem:[%s3448 + $0x7] sm:$0x1]
      %v3457 = vld [vmem:[%s3448 + $0x8] sm:$0x1]
      %v3458 = vld [vmem:[%s3448 + $0x9] sm:$0x1]
      %v3459 = vld [vmem:[%s3448 + $0xa] sm:$0x1]
      %v3460 = vld [vmem:[%s3448 + $0xb] sm:$0x1]
      %v3473 = vlaneseq
      %v3474 = vshrl.u32 %v3473, 7
      %v3475 = vsub.s32 0, %v3474
      %v3476 = vrot.slane %v3449, %v3475
      %v3477 = vlaneseq
      %v3478 = vshrl.u32 %v3477, 7
      %v3479 = vsub.s32 0, %v3478
      %v3480 = vrot.slane %v3450, %v3479
      %v3481 = vlaneseq
      %v3482 = vshrl.u32 %v3481, 7
      %v3483 = vsub.s32 0, %v3482
      %v3484 = vrot.slane %v3451, %v3483
      %v3485 = vlaneseq
      %v3486 = vshrl.u32 %v3485, 7
      %v3487 = vsub.s32 0, %v3486
      %v3488 = vrot.slane %v3452, %v3487
      %v3489 = vlaneseq
      %v3490 = vshrl.u32 %v3489, 7
      %v3491 = vsub.s32 0, %v3490
      %v3492 = vrot.slane %v3453, %v3491
      %v3493 = vlaneseq
      %v3494 = vshrl.u32 %v3493, 7
      %v3495 = vsub.s32 0, %v3494
      %v3496 = vrot.slane %v3454, %v3495
      %v3497 = vlaneseq
      %v3498 = vshrl.u32 %v3497, 7
      %v3499 = vsub.s32 0, %v3498
      %v3500 = vrot.slane %v3455, %v3499
      %v3501 = vlaneseq
      %v3502 = vshrl.u32 %v3501, 7
      %v3503 = vsub.s32 0, %v3502
      %v3504 = vrot.slane %v3456, %v3503
      %v3505 = vlaneseq
      %v3506 = vshrl.u32 %v3505, 7
      %v3507 = vsub.s32 0, %v3506
      %v3508 = vrot.slane %v3457, %v3507
      %v3509 = vlaneseq
      %v3510 = vshrl.u32 %v3509, 7
      %v3511 = vsub.s32 0, %v3510
      %v3512 = vrot.slane %v3458, %v3511
      %v3513 = vlaneseq
      %v3514 = vshrl.u32 %v3513, 7
      %v3515 = vsub.s32 0, %v3514
      %v3516 = vrot.slane %v3459, %v3515
      %v3517 = vlaneseq
      %v3518 = vshrl.u32 %v3517, 7
      %v3519 = vsub.s32 0, %v3518
      %v3520 = vrot.slane %v3460, %v3519
      %v3549 = vunpack.c.l.b16 %v3256
      %v3550 = vunpack.c.l.b16 %v3257
      %v3551 = vunpack.c.l.b16 %v3258
      %v3552 = vunpack.c.l.b16 %v3259
      %v3553 = vunpack.c.l.b16 %v3260
      %v3554 = vunpack.c.l.b16 %v3261
      %v3555 = vunpack.c.l.b16 %v3262
      %v3556 = vunpack.c.l.b16 %v3263
      %v3557 = vunpack.c.l.b16 %v3264
      %v3558 = vunpack.c.l.b16 %v3265
      %v3559 = vunpack.c.l.b16 %v3266
      %v3560 = vunpack.c.l.b16 %v3267
      %v3561 = vunpack.c.l.b16 %v3268
      %v3562 = vunpack.c.l.b16 %v3269
      %v3563 = vunpack.c.l.b16 %v3270
      %v3564 = vunpack.c.l.b16 %v3271
      %v3565 = vpack.c.b16 %v3550, %v3549
      %v3566 = vpack.c.b16 %v3552, %v3551
      %v3567 = vpack.c.b16 %v3554, %v3553
      %v3568 = vpack.c.b16 %v3556, %v3555
      %v3569 = vpack.c.b16 %v3558, %v3557
      %v3570 = vpack.c.b16 %v3560, %v3559
      %v3571 = vpack.c.b16 %v3562, %v3561
      %v3572 = vpack.c.b16 %v3564, %v3563
      %3581 = vmatprep.subr.bf16.mxu0 0
      %3582 = vmatpush1.bf16.msra.mxu0 %v3565
      %3583 = vmatprep.subr.bf16.mxu0 0
      %3584 = vmatpush1.bf16.msra.mxu0 %v3566
      %3585 = vmatprep.subr.bf16.mxu0 0
      %3586 = vmatpush1.bf16.msra.mxu0 %v3567
      %3587 = vmatprep.subr.bf16.mxu0 0
      %3588 = vmatpush1.bf16.msra.mxu0 %v3568
      %3589 = vmatprep.subr.bf16.mxu0 0
      %3590 = vmatpush1.bf16.msra.mxu0 %v3569
      %3591 = vmatprep.subr.bf16.mxu0 0
      %3592 = vmatpush1.bf16.msra.mxu0 %v3570
      %3593 = vmatprep.subr.bf16.mxu0 0
      %3594 = vmatpush1.bf16.msra.mxu0 %v3571
      %3595 = vmatprep.subr.bf16.mxu0 0
      %3596 = vmatpush1.bf16.msra.mxu0 %v3572
      %3597 = vmatprep.subr.bf16.mxu0 0
      %3598 = vmatpush1.bf16.msra.mxu0 0
      %3599 = vmatprep.subr.bf16.mxu0 0
      %3600 = vmatpush1.bf16.msra.mxu0 0
      %3601 = vmatprep.subr.bf16.mxu0 0
      %3602 = vmatpush1.bf16.msra.mxu0 0
      %3603 = vmatprep.subr.bf16.mxu0 0
      %3604 = vmatpush1.bf16.msra.mxu0 0
      %3605 = vmatprep.subr.bf16.mxu0 0
      %3606 = vmatpush1.bf16.msra.mxu0 0
      %3607 = vmatprep.subr.bf16.mxu0 0
      %3608 = vmatpush1.bf16.msra.mxu0 0
      %3609 = vmatprep.subr.bf16.mxu0 0
      %3610 = vmatpush1.bf16.msra.mxu0 0
      %3611 = vmatprep.subr.bf16.mxu0 0
      %3612 = vmatpush1.bf16.msra.mxu0 0
      %3613 = vmatprep.mubr.bf16.mxu0 0
      %3614 = vmatmul.mubr.bf16.gmra.mrb[0].mxu0 %v3254
      %v3615 = vpop.f32.mrb[0].mxu0
      %v3616 = vadd.f32 %v3476, %v3615
      %v3617 = vpop.f32.mrb[0].mxu0
      %v3618 = vpop.f32.mrb[0].mxu0
      %v3619 = vpop.f32.mrb[0].mxu0
      %3620 = vdwg.mxu0
      %v3637 = vunpack.c.l.b16 %v3272
      %v3638 = vunpack.c.l.b16 %v3273
      %v3639 = vunpack.c.l.b16 %v3274
      %v3640 = vunpack.c.l.b16 %v3275
      %v3641 = vunpack.c.l.b16 %v3276
      %v3642 = vunpack.c.l.b16 %v3277
      %v3643 = vunpack.c.l.b16 %v3278
      %v3644 = vunpack.c.l.b16 %v3279
      %v3645 = vunpack.c.l.b16 %v3280
      %v3646 = vunpack.c.l.b16 %v3281
      %v3647 = vunpack.c.l.b16 %v3282
      %v3648 = vunpack.c.l.b16 %v3283
      %v3649 = vunpack.c.l.b16 %v3284
      %v3650 = vunpack.c.l.b16 %v3285
      %v3651 = vunpack.c.l.b16 %v3286
      %v3652 = vunpack.c.l.b16 %v3287
      %v3653 = vpack.c.b16 %v3638, %v3637
      %v3654 = vpack.c.b16 %v3640, %v3639
      %v3655 = vpack.c.b16 %v3642, %v3641
      %v3656 = vpack.c.b16 %v3644, %v3643
      %v3657 = vpack.c.b16 %v3646, %v3645
      %v3658 = vpack.c.b16 %v3648, %v3647
      %v3659 = vpack.c.b16 %v3650, %v3649
      %v3660 = vpack.c.b16 %v3652, %v3651
      %3669 = vmatprep.subr.bf16.mxu0 0
      %3670 = vmatpush1.bf16.msra.mxu0 %v3653
      %3671 = vmatprep.subr.bf16.mxu0 0
      %3672 = vmatpush1.bf16.msra.mxu0 %v3654
      %3673 = vmatprep.subr.bf16.mxu0 0
      %3674 = vmatpush1.bf16.msra.mxu0 %v3655
      %3675 = vmatprep.subr.bf16.mxu0 0
      %3676 = vmatpush1.bf16.msra.mxu0 %v3656
      %3677 = vmatprep.subr.bf16.mxu0 0
      %3678 = vmatpush1.bf16.msra.mxu0 %v3657
      %3679 = vmatprep.subr.bf16.mxu0 0
      %3680 = vmatpush1.bf16.msra.mxu0 %v3658
      %3681 = vmatprep.subr.bf16.mxu0 0
      %3682 = vmatpush1.bf16.msra.mxu0 %v3659
      %3683 = vmatprep.subr.bf16.mxu0 0
      %3684 = vmatpush1.bf16.msra.mxu0 %v3660
      %3685 = vmatprep.subr.bf16.mxu0 0
      %3686 = vmatpush1.bf16.msra.mxu0 0
      %3687 = vmatprep.subr.bf16.mxu0 0
      %3688 = vmatpush1.bf16.msra.mxu0 0
      %3689 = vmatprep.subr.bf16.mxu0 0
      %3690 = vmatpush1.bf16.msra.mxu0 0
      %3691 = vmatprep.subr.bf16.mxu0 0
      %3692 = vmatpush1.bf16.msra.mxu0 0
      %3693 = vmatprep.subr.bf16.mxu0 0
      %3694 = vmatpush1.bf16.msra.mxu0 0
      %3695 = vmatprep.subr.bf16.mxu0 0
      %3696 = vmatpush1.bf16.msra.mxu0 0
      %3697 = vmatprep.subr.bf16.mxu0 0
      %3698 = vmatpush1.bf16.msra.mxu0 0
      %3699 = vmatprep.subr.bf16.mxu0 0
      %3700 = vmatpush1.bf16.msra.mxu0 0
      %3701 = vmatprep.mubr.bf16.mxu0 0
      %3702 = vmatmul.mubr.bf16.gmra.mrb[0].mxu0 %v3254
      %v3703 = vpop.f32.mrb[0].mxu0
      %v3704 = vadd.f32 %v3480, %v3703
      %v3705 = vpop.f32.mrb[0].mxu0
      %v3706 = vpop.f32.mrb[0].mxu0
      %v3707 = vpop.f32.mrb[0].mxu0
      %3708 = vdwg.mxu0
      %v3725 = vunpack.c.l.b16 %v3288
      %v3726 = vunpack.c.l.b16 %v3289
      %v3727 = vunpack.c.l.b16 %v3290
      %v3728 = vunpack.c.l.b16 %v3291
      %v3729 = vunpack.c.l.b16 %v3292
      %v3730 = vunpack.c.l.b16 %v3293
      %v3731 = vunpack.c.l.b16 %v3294
      %v3732 = vunpack.c.l.b16 %v3295
      %v3733 = vunpack.c.l.b16 %v3296
      %v3734 = vunpack.c.l.b16 %v3297
      %v3735 = vunpack.c.l.b16 %v3298
      %v3736 = vunpack.c.l.b16 %v3299
      %v3737 = vunpack.c.l.b16 %v3300
      %v3738 = vunpack.c.l.b16 %v3301
      %v3739 = vunpack.c.l.b16 %v3302
      %v3740 = vunpack.c.l.b16 %v3303
      %v3741 = vpack.c.b16 %v3726, %v3725
      %v3742 = vpack.c.b16 %v3728, %v3727
      %v3743 = vpack.c.b16 %v3730, %v3729
      %v3744 = vpack.c.b16 %v3732, %v3731
      %v3745 = vpack.c.b16 %v3734, %v3733
      %v3746 = vpack.c.b16 %v3736, %v3735
      %v3747 = vpack.c.b16 %v3738, %v3737
      %v3748 = vpack.c.b16 %v3740, %v3739
      %3757 = vmatprep.subr.bf16.mxu0 0
      %3758 = vmatpush1.bf16.msra.mxu0 %v3741
      %3759 = vmatprep.subr.bf16.mxu0 0
      %3760 = vmatpush1.bf16.msra.mxu0 %v3742
      %3761 = vmatprep.subr.bf16.mxu0 0
      %3762 = vmatpush1.bf16.msra.mxu0 %v3743
      %3763 = vmatprep.subr.bf16.mxu0 0
      %3764 = vmatpush1.bf16.msra.mxu0 %v3744
      %3765 = vmatprep.subr.bf16.mxu0 0
      %3766 = vmatpush1.bf16.msra.mxu0 %v3745
      %3767 = vmatprep.subr.bf16.mxu0 0
      %3768 = vmatpush1.bf16.msra.mxu0 %v3746
      %3769 = vmatprep.subr.bf16.mxu0 0
      %3770 = vmatpush1.bf16.msra.mxu0 %v3747
      %3771 = vmatprep.subr.bf16.mxu0 0
      %3772 = vmatpush1.bf16.msra.mxu0 %v3748
      %3773 = vmatprep.subr.bf16.mxu0 0
      %3774 = vmatpush1.bf16.msra.mxu0 0
      %3775 = vmatprep.subr.bf16.mxu0 0
      %3776 = vmatpush1.bf16.msra.mxu0 0
      %3777 = vmatprep.subr.bf16.mxu0 0
      %3778 = vmatpush1.bf16.msra.mxu0 0
      %3779 = vmatprep.subr.bf16.mxu0 0
      %3780 = vmatpush1.bf16.msra.mxu0 0
      %3781 = vmatprep.subr.bf16.mxu0 0
      %3782 = vmatpush1.bf16.msra.mxu0 0
      %3783 = vmatprep.subr.bf16.mxu0 0
      %3784 = vmatpush1.bf16.msra.mxu0 0
      %3785 = vmatprep.subr.bf16.mxu0 0
      %3786 = vmatpush1.bf16.msra.mxu0 0
      %3787 = vmatprep.subr.bf16.mxu0 0
      %3788 = vmatpush1.bf16.msra.mxu0 0
      %3789 = vmatprep.mubr.bf16.mxu0 0
      %3790 = vmatmul.mubr.bf16.gmra.mrb[0].mxu0 %v3254
      %v3791 = vpop.f32.mrb[0].mxu0
      %v3792 = vadd.f32 %v3484, %v3791
      %v3793 = vpop.f32.mrb[0].mxu0
      %v3794 = vpop.f32.mrb[0].mxu0
      %v3795 = vpop.f32.mrb[0].mxu0
      %3796 = vdwg.mxu0
      %v3813 = vunpack.c.l.b16 %v3304
      %v3814 = vunpack.c.l.b16 %v3305
      %v3815 = vunpack.c.l.b16 %v3306
      %v3816 = vunpack.c.l.b16 %v3307
      %v3817 = vunpack.c.l.b16 %v3308
      %v3818 = vunpack.c.l.b16 %v3309
      %v3819 = vunpack.c.l.b16 %v3310
      %v3820 = vunpack.c.l.b16 %v3311
      %v3821 = vunpack.c.l.b16 %v3312
      %v3822 = vunpack.c.l.b16 %v3313
      %v3823 = vunpack.c.l.b16 %v3314
      %v3824 = vunpack.c.l.b16 %v3315
      %v3825 = vunpack.c.l.b16 %v3316
      %v3826 = vunpack.c.l.b16 %v3317
      %v3827 = vunpack.c.l.b16 %v3318
      %v3828 = vunpack.c.l.b16 %v3319
      %v3829 = vpack.c.b16 %v3814, %v3813
      %v3830 = vpack.c.b16 %v3816, %v3815
      %v3831 = vpack.c.b16 %v3818, %v3817
      %v3832 = vpack.c.b16 %v3820, %v3819
      %v3833 = vpack.c.b16 %v3822, %v3821
      %v3834 = vpack.c.b16 %v3824, %v3823
      %v3835 = vpack.c.b16 %v3826, %v3825
      %v3836 = vpack.c.b16 %v3828, %v3827
      %3845 = vmatprep.subr.bf16.mxu0 0
      %3846 = vmatpush1.bf16.msra.mxu0 %v3829
      %3847 = vmatprep.subr.bf16.mxu0 0
      %3848 = vmatpush1.bf16.msra.mxu0 %v3830
      %3849 = vmatprep.subr.bf16.mxu0 0
      %3850 = vmatpush1.bf16.msra.mxu0 %v3831
      %3851 = vmatprep.subr.bf16.mxu0 0
      %3852 = vmatpush1.bf16.msra.mxu0 %v3832
      %3853 = vmatprep.subr.bf16.mxu0 0
      %3854 = vmatpush1.bf16.msra.mxu0 %v3833
      %3855 = vmatprep.subr.bf16.mxu0 0
      %3856 = vmatpush1.bf16.msra.mxu0 %v3834
      %3857 = vmatprep.subr.bf16.mxu0 0
      %3858 = vmatpush1.bf16.msra.mxu0 %v3835
      %3859 = vmatprep.subr.bf16.mxu0 0
      %3860 = vmatpush1.bf16.msra.mxu0 %v3836
      %3861 = vmatprep.subr.bf16.mxu0 0
      %3862 = vmatpush1.bf16.msra.mxu0 0
      %3863 = vmatprep.subr.bf16.mxu0 0
      %3864 = vmatpush1.bf16.msra.mxu0 0
      %3865 = vmatprep.subr.bf16.mxu0 0
      %3866 = vmatpush1.bf16.msra.mxu0 0
      %3867 = vmatprep.subr.bf16.mxu0 0
      %3868 = vmatpush1.bf16.msra.mxu0 0
      %3869 = vmatprep.subr.bf16.mxu0 0
      %3870 = vmatpush1.bf16.msra.mxu0 0
      %3871 = vmatprep.subr.bf16.mxu0 0
      %3872 = vmatpush1.bf16.msra.mxu0 0
      %3873 = vmatprep.subr.bf16.mxu0 0
      %3874 = vmatpush1.bf16.msra.mxu0 0
      %3875 = vmatprep.subr.bf16.mxu0 0
      %3876 = vmatpush1.bf16.msra.mxu0 0
      %3877 = vmatprep.mubr.bf16.mxu0 0
      %3878 = vmatmul.mubr.bf16.gmra.mrb[0].mxu0 %v3254
      %v3879 = vpop.f32.mrb[0].mxu0
      %v3880 = vadd.f32 %v3488, %v3879
      %v3881 = vpop.f32.mrb[0].mxu0
      %v3882 = vpop.f32.mrb[0].mxu0
      %v3883 = vpop.f32.mrb[0].mxu0
      %3884 = vdwg.mxu0
      %v3901 = vunpack.c.l.b16 %v3320
      %v3902 = vunpack.c.l.b16 %v3321
      %v3903 = vunpack.c.l.b16 %v3322
      %v3904 = vunpack.c.l.b16 %v3323
      %v3905 = vunpack.c.l.b16 %v3324
      %v3906 = vunpack.c.l.b16 %v3325
      %v3907 = vunpack.c.l.b16 %v3326
      %v3908 = vunpack.c.l.b16 %v3327
      %v3909 = vunpack.c.l.b16 %v3328
      %v3910 = vunpack.c.l.b16 %v3329
      %v3911 = vunpack.c.l.b16 %v3330
      %v3912 = vunpack.c.l.b16 %v3331
      %v3913 = vunpack.c.l.b16 %v3332
      %v3914 = vunpack.c.l.b16 %v3333
      %v3915 = vunpack.c.l.b16 %v3334
      %v3916 = vunpack.c.l.b16 %v3335
      %v3917 = vpack.c.b16 %v3902, %v3901
      %v3918 = vpack.c.b16 %v3904, %v3903
      %v3919 = vpack.c.b16 %v3906, %v3905
      %v3920 = vpack.c.b16 %v3908, %v3907
      %v3921 = vpack.c.b16 %v3910, %v3909
      %v3922 = vpack.c.b16 %v3912, %v3911
      %v3923 = vpack.c.b16 %v3914, %v3913
      %v3924 = vpack.c.b16 %v3916, %v3915
      %3933 = vmatprep.subr.bf16.mxu0 0
      %3934 = vmatpush1.bf16.msra.mxu0 %v3917
      %3935 = vmatprep.subr.bf16.mxu0 0
      %3936 = vmatpush1.bf16.msra.mxu0 %v3918
      %3937 = vmatprep.subr.bf16.mxu0 0
      %3938 = vmatpush1.bf16.msra.mxu0 %v3919
      %3939 = vmatprep.subr.bf16.mxu0 0
      %3940 = vmatpush1.bf16.msra.mxu0 %v3920
      %3941 = vmatprep.subr.bf16.mxu0 0
      %3942 = vmatpush1.bf16.msra.mxu0 %v3921
      %3943 = vmatprep.subr.bf16.mxu0 0
      %3944 = vmatpush1.bf16.msra.mxu0 %v3922
      %3945 = vmatprep.subr.bf16.mxu0 0
      %3946 = vmatpush1.bf16.msra.mxu0 %v3923
      %3947 = vmatprep.subr.bf16.mxu0 0
      %3948 = vmatpush1.bf16.msra.mxu0 %v3924
      %3949 = vmatprep.subr.bf16.mxu0 0
      %3950 = vmatpush1.bf16.msra.mxu0 0
      %3951 = vmatprep.subr.bf16.mxu0 0
      %3952 = vmatpush1.bf16.msra.mxu0 0
      %3953 = vmatprep.subr.bf16.mxu0 0
      %3954 = vmatpush1.bf16.msra.mxu0 0
      %3955 = vmatprep.subr.bf16.mxu0 0
      %3956 = vmatpush1.bf16.msra.mxu0 0
      %3957 = vmatprep.subr.bf16.mxu0 0
      %3958 = vmatpush1.bf16.msra.mxu0 0
      %3959 = vmatprep.subr.bf16.mxu0 0
      %3960 = vmatpush1.bf16.msra.mxu0 0
      %3961 = vmatprep.subr.bf16.mxu0 0
      %3962 = vmatpush1.bf16.msra.mxu0 0
      %3963 = vmatprep.subr.bf16.mxu0 0
      %3964 = vmatpush1.bf16.msra.mxu0 0
      %3965 = vmatprep.mubr.bf16.mxu0 0
      %3966 = vmatmul.mubr.bf16.gmra.mrb[0].mxu0 %v3254
      %v3967 = vpop.f32.mrb[0].mxu0
      %v3968 = vadd.f32 %v3492, %v3967
      %v3969 = vpop.f32.mrb[0].mxu0
      %v3970 = vpop.f32.mrb[0].mxu0
      %v3971 = vpop.f32.mrb[0].mxu0
      %3972 = vdwg.mxu0
      %v3989 = vunpack.c.l.b16 %v3336
      %v3990 = vunpack.c.l.b16 %v3337
      %v3991 = vunpack.c.l.b16 %v3338
      %v3992 = vunpack.c.l.b16 %v3339
      %v3993 = vunpack.c.l.b16 %v3340
      %v3994 = vunpack.c.l.b16 %v3341
      %v3995 = vunpack.c.l.b16 %v3342
      %v3996 = vunpack.c.l.b16 %v3343
      %v3997 = vunpack.c.l.b16 %v3344
      %v3998 = vunpack.c.l.b16 %v3345
      %v3999 = vunpack.c.l.b16 %v3346
      %v4000 = vunpack.c.l.b16 %v3347
      %v4001 = vunpack.c.l.b16 %v3348
      %v4002 = vunpack.c.l.b16 %v3349
      %v4003 = vunpack.c.l.b16 %v3350
      %v4004 = vunpack.c.l.b16 %v3351
      %v4005 = vpack.c.b16 %v3990, %v3989
      %v4006 = vpack.c.b16 %v3992, %v3991
      %v4007 = vpack.c.b16 %v3994, %v3993
      %v4008 = vpack.c.b16 %v3996, %v3995
      %v4009 = vpack.c.b16 %v3998, %v3997
      %v4010 = vpack.c.b16 %v4000, %v3999
      %v4011 = vpack.c.b16 %v4002, %v4001
      %v4012 = vpack.c.b16 %v4004, %v4003
      %4021 = vmatprep.subr.bf16.mxu0 0
      %4022 = vmatpush1.bf16.msra.mxu0 %v4005
      %4023 = vmatprep.subr.bf16.mxu0 0
      %4024 = vmatpush1.bf16.msra.mxu0 %v4006
      %4025 = vmatprep.subr.bf16.mxu0 0
      %4026 = vmatpush1.bf16.msra.mxu0 %v4007
      %4027 = vmatprep.subr.bf16.mxu0 0
      %4028 = vmatpush1.bf16.msra.mxu0 %v4008
      %4029 = vmatprep.subr.bf16.mxu0 0
      %4030 = vmatpush1.bf16.msra.mxu0 %v4009
      %4031 = vmatprep.subr.bf16.mxu0 0
      %4032 = vmatpush1.bf16.msra.mxu0 %v4010
      %4033 = vmatprep.subr.bf16.mxu0 0
      %4034 = vmatpush1.bf16.msra.mxu0 %v4011
      %4035 = vmatprep.subr.bf16.mxu0 0
      %4036 = vmatpush1.bf16.msra.mxu0 %v4012
      %4037 = vmatprep.subr.bf16.mxu0 0
      %4038 = vmatpush1.bf16.msra.mxu0 0
      %4039 = vmatprep.subr.bf16.mxu0 0
      %4040 = vmatpush1.bf16.msra.mxu0 0
      %4041 = vmatprep.subr.bf16.mxu0 0
      %4042 = vmatpush1.bf16.msra.mxu0 0
      %4043 = vmatprep.subr.bf16.mxu0 0
      %4044 = vmatpush1.bf16.msra.mxu0 0
      %4045 = vmatprep.subr.bf16.mxu0 0
      %4046 = vmatpush1.bf16.msra.mxu0 0
      %4047 = vmatprep.subr.bf16.mxu0 0
      %4048 = vmatpush1.bf16.msra.mxu0 0
      %4049 = vmatprep.subr.bf16.mxu0 0
      %4050 = vmatpush1.bf16.msra.mxu0 0
      %4051 = vmatprep.subr.bf16.mxu0 0
      %4052 = vmatpush1.bf16.msra.mxu0 0
      %4053 = vmatprep.mubr.bf16.mxu0 0
      %4054 = vmatmul.mubr.bf16.gmra.mrb[0].mxu0 %v3254
      %v4055 = vpop.f32.mrb[0].mxu0
      %v4056 = vadd.f32 %v3496, %v4055
      %v4057 = vpop.f32.mrb[0].mxu0
      %v4058 = vpop.f32.mrb[0].mxu0
      %v4059 = vpop.f32.mrb[0].mxu0
      %4060 = vdwg.mxu0
      %v4077 = vunpack.c.l.b16 %v3352
      %v4078 = vunpack.c.l.b16 %v3353
      %v4079 = vunpack.c.l.b16 %v3354
      %v4080 = vunpack.c.l.b16 %v3355
      %v4081 = vunpack.c.l.b16 %v3356
      %v4082 = vunpack.c.l.b16 %v3357
      %v4083 = vunpack.c.l.b16 %v3358
      %v4084 = vunpack.c.l.b16 %v3359
      %v4085 = vunpack.c.l.b16 %v3360
      %v4086 = vunpack.c.l.b16 %v3361
      %v4087 = vunpack.c.l.b16 %v3362
      %v4088 = vunpack.c.l.b16 %v3363
      %v4089 = vunpack.c.l.b16 %v3364
      %v4090 = vunpack.c.l.b16 %v3365
      %v4091 = vunpack.c.l.b16 %v3366
      %v4092 = vunpack.c.l.b16 %v3367
      %v4093 = vpack.c.b16 %v4078, %v4077
      %v4094 = vpack.c.b16 %v4080, %v4079
      %v4095 = vpack.c.b16 %v4082, %v4081
      %v4096 = vpack.c.b16 %v4084, %v4083
      %v4097 = vpack.c.b16 %v4086, %v4085
      %v4098 = vpack.c.b16 %v4088, %v4087
      %v4099 = vpack.c.b16 %v4090, %v4089
      %v4100 = vpack.c.b16 %v4092, %v4091
      %4109 = vmatprep.subr.bf16.mxu0 0
      %4110 = vmatpush1.bf16.msra.mxu0 %v4093
      %4111 = vmatprep.subr.bf16.mxu0 0
      %4112 = vmatpush1.bf16.msra.mxu0 %v4094
      %4113 = vmatprep.subr.bf16.mxu0 0
      %4114 = vmatpush1.bf16.msra.mxu0 %v4095
      %4115 = vmatprep.subr.bf16.mxu0 0
      %4116 = vmatpush1.bf16.msra.mxu0 %v4096
      %4117 = vmatprep.subr.bf16.mxu0 0
      %4118 = vmatpush1.bf16.msra.mxu0 %v4097
      %4119 = vmatprep.subr.bf16.mxu0 0
      %4120 = vmatpush1.bf16.msra.mxu0 %v4098
      %4121 = vmatprep.subr.bf16.mxu0 0
      %4122 = vmatpush1.bf16.msra.mxu0 %v4099
      %4123 = vmatprep.subr.bf16.mxu0 0
      %4124 = vmatpush1.bf16.msra.mxu0 %v4100
      %4125 = vmatprep.subr.bf16.mxu0 0
      %4126 = vmatpush1.bf16.msra.mxu0 0
      %4127 = vmatprep.subr.bf16.mxu0 0
      %4128 = vmatpush1.bf16.msra.mxu0 0
      %4129 = vmatprep.subr.bf16.mxu0 0
      %4130 = vmatpush1.bf16.msra.mxu0 0
      %4131 = vmatprep.subr.bf16.mxu0 0
      %4132 = vmatpush1.bf16.msra.mxu0 0
      %4133 = vmatprep.subr.bf16.mxu0 0
      %4134 = vmatpush1.bf16.msra.mxu0 0
      %4135 = vmatprep.subr.bf16.mxu0 0
      %4136 = vmatpush1.bf16.msra.mxu0 0
      %4137 = vmatprep.subr.bf16.mxu0 0
      %4138 = vmatpush1.bf16.msra.mxu0 0
      %4139 = vmatprep.subr.bf16.mxu0 0
      %4140 = vmatpush1.bf16.msra.mxu0 0
      %4141 = vmatprep.mubr.bf16.mxu0 0
      %4142 = vmatmul.mubr.bf16.gmra.mrb[0].mxu0 %v3254
      %v4143 = vpop.f32.mrb[0].mxu0
      %v4144 = vadd.f32 %v3500, %v4143
      %v4145 = vpop.f32.mrb[0].mxu0
      %v4146 = vpop.f32.mrb[0].mxu0
      %v4147 = vpop.f32.mrb[0].mxu0
      %4148 = vdwg.mxu0
      %v4165 = vunpack.c.l.b16 %v3368
      %v4166 = vunpack.c.l.b16 %v3369
      %v4167 = vunpack.c.l.b16 %v3370
      %v4168 = vunpack.c.l.b16 %v3371
      %v4169 = vunpack.c.l.b16 %v3372
      %v4170 = vunpack.c.l.b16 %v3373
      %v4171 = vunpack.c.l.b16 %v3374
      %v4172 = vunpack.c.l.b16 %v3375
      %v4173 = vunpack.c.l.b16 %v3376
      %v4174 = vunpack.c.l.b16 %v3377
      %v4175 = vunpack.c.l.b16 %v3378
      %v4176 = vunpack.c.l.b16 %v3379
      %v4177 = vunpack.c.l.b16 %v3380
      %v4178 = vunpack.c.l.b16 %v3381
      %v4179 = vunpack.c.l.b16 %v3382
      %v4180 = vunpack.c.l.b16 %v3383
      %v4181 = vpack.c.b16 %v4166, %v4165
      %v4182 = vpack.c.b16 %v4168, %v4167
      %v4183 = vpack.c.b16 %v4170, %v4169
      %v4184 = vpack.c.b16 %v4172, %v4171
      %v4185 = vpack.c.b16 %v4174, %v4173
      %v4186 = vpack.c.b16 %v4176, %v4175
      %v4187 = vpack.c.b16 %v4178, %v4177
      %v4188 = vpack.c.b16 %v4180, %v4179
      %4197 = vmatprep.subr.bf16.mxu0 0
      %4198 = vmatpush1.bf16.msra.mxu0 %v4181
      %4199 = vmatprep.subr.bf16.mxu0 0
      %4200 = vmatpush1.bf16.msra.mxu0 %v4182
      %4201 = vmatprep.subr.bf16.mxu0 0
      %4202 = vmatpush1.bf16.msra.mxu0 %v4183
      %4203 = vmatprep.subr.bf16.mxu0 0
      %4204 = vmatpush1.bf16.msra.mxu0 %v4184
      %4205 = vmatprep.subr.bf16.mxu0 0
      %4206 = vmatpush1.bf16.msra.mxu0 %v4185
      %4207 = vmatprep.subr.bf16.mxu0 0
      %4208 = vmatpush1.bf16.msra.mxu0 %v4186
      %4209 = vmatprep.subr.bf16.mxu0 0
      %4210 = vmatpush1.bf16.msra.mxu0 %v4187
      %4211 = vmatprep.subr.bf16.mxu0 0
      %4212 = vmatpush1.bf16.msra.mxu0 %v4188
      %4213 = vmatprep.subr.bf16.mxu0 0
      %4214 = vmatpush1.bf16.msra.mxu0 0
      %4215 = vmatprep.subr.bf16.mxu0 0
      %4216 = vmatpush1.bf16.msra.mxu0 0
      %4217 = vmatprep.subr.bf16.mxu0 0
      %4218 = vmatpush1.bf16.msra.mxu0 0
      %4219 = vmatprep.subr.bf16.mxu0 0
      %4220 = vmatpush1.bf16.msra.mxu0 0
      %4221 = vmatprep.subr.bf16.mxu0 0
      %4222 = vmatpush1.bf16.msra.mxu0 0
      %4223 = vmatprep.subr.bf16.mxu0 0
      %4224 = vmatpush1.bf16.msra.mxu0 0
      %4225 = vmatprep.subr.bf16.mxu0 0
      %4226 = vmatpush1.bf16.msra.mxu0 0
      %4227 = vmatprep.subr.bf16.mxu0 0
      %4228 = vmatpush1.bf16.msra.mxu0 0
      %4229 = vmatprep.mubr.bf16.mxu0 0
      %4230 = vmatmul.mubr.bf16.gmra.mrb[0].mxu0 %v3254
      %v4231 = vpop.f32.mrb[0].mxu0
      %v4232 = vadd.f32 %v3504, %v4231
      %v4233 = vpop.f32.mrb[0].mxu0
      %v4234 = vpop.f32.mrb[0].mxu0
      %v4235 = vpop.f32.mrb[0].mxu0
      %4236 = vdwg.mxu0
      %v4253 = vunpack.c.l.b16 %v3384
      %v4254 = vunpack.c.l.b16 %v3385
      %v4255 = vunpack.c.l.b16 %v3386
      %v4256 = vunpack.c.l.b16 %v3387
      %v4257 = vunpack.c.l.b16 %v3388
      %v4258 = vunpack.c.l.b16 %v3389
      %v4259 = vunpack.c.l.b16 %v3390
      %v4260 = vunpack.c.l.b16 %v3391
      %v4261 = vunpack.c.l.b16 %v3392
      %v4262 = vunpack.c.l.b16 %v3393
      %v4263 = vunpack.c.l.b16 %v3394
      %v4264 = vunpack.c.l.b16 %v3395
      %v4265 = vunpack.c.l.b16 %v3396
      %v4266 = vunpack.c.l.b16 %v3397
      %v4267 = vunpack.c.l.b16 %v3398
      %v4268 = vunpack.c.l.b16 %v3399
      %v4269 = vpack.c.b16 %v4254, %v4253
      %v4270 = vpack.c.b16 %v4256, %v4255
      %v4271 = vpack.c.b16 %v4258, %v4257
      %v4272 = vpack.c.b16 %v4260, %v4259
      %v4273 = vpack.c.b16 %v4262, %v4261
      %v4274 = vpack.c.b16 %v4264, %v4263
      %v4275 = vpack.c.b16 %v4266, %v4265
      %v4276 = vpack.c.b16 %v4268, %v4267
      %4285 = vmatprep.subr.bf16.mxu0 0
      %4286 = vmatpush1.bf16.msra.mxu0 %v4269
      %4287 = vmatprep.subr.bf16.mxu0 0
      %4288 = vmatpush1.bf16.msra.mxu0 %v4270
      %4289 = vmatprep.subr.bf16.mxu0 0
      %4290 = vmatpush1.bf16.msra.mxu0 %v4271
      %4291 = vmatprep.subr.bf16.mxu0 0
      %4292 = vmatpush1.bf16.msra.mxu0 %v4272
      %4293 = vmatprep.subr.bf16.mxu0 0
      %4294 = vmatpush1.bf16.msra.mxu0 %v4273
      %4295 = vmatprep.subr.bf16.mxu0 0
      %4296 = vmatpush1.bf16.msra.mxu0 %v4274
      %4297 = vmatprep.subr.bf16.mxu0 0
      %4298 = vmatpush1.bf16.msra.mxu0 %v4275
      %4299 = vmatprep.subr.bf16.mxu0 0
      %4300 = vmatpush1.bf16.msra.mxu0 %v4276
      %4301 = vmatprep.subr.bf16.mxu0 0
      %4302 = vmatpush1.bf16.msra.mxu0 0
      %4303 = vmatprep.subr.bf16.mxu0 0
      %4304 = vmatpush1.bf16.msra.mxu0 0
      %4305 = vmatprep.subr.bf16.mxu0 0
      %4306 = vmatpush1.bf16.msra.mxu0 0
      %4307 = vmatprep.subr.bf16.mxu0 0
      %4308 = vmatpush1.bf16.msra.mxu0 0
      %4309 = vmatprep.subr.bf16.mxu0 0
      %4310 = vmatpush1.bf16.msra.mxu0 0
      %4311 = vmatprep.subr.bf16.mxu0 0
      %4312 = vmatpush1.bf16.msra.mxu0 0
      %4313 = vmatprep.subr.bf16.mxu0 0
      %4314 = vmatpush1.bf16.msra.mxu0 0
      %4315 = vmatprep.subr.bf16.mxu0 0
      %4316 = vmatpush1.bf16.msra.mxu0 0
      %4317 = vmatprep.mubr.bf16.mxu0 0
      %4318 = vmatmul.mubr.bf16.gmra.mrb[0].mxu0 %v3254
      %v4319 = vpop.f32.mrb[0].mxu0
      %v4320 = vadd.f32 %v3508, %v4319
      %v4321 = vpop.f32.mrb[0].mxu0
      %v4322 = vpop.f32.mrb[0].mxu0
      %v4323 = vpop.f32.mrb[0].mxu0
      %4324 = vdwg.mxu0
      %v4341 = vunpack.c.l.b16 %v3400
      %v4342 = vunpack.c.l.b16 %v3401
      %v4343 = vunpack.c.l.b16 %v3402
      %v4344 = vunpack.c.l.b16 %v3403
      %v4345 = vunpack.c.l.b16 %v3404
      %v4346 = vunpack.c.l.b16 %v3405
      %v4347 = vunpack.c.l.b16 %v3406
      %v4348 = vunpack.c.l.b16 %v3407
      %v4349 = vunpack.c.l.b16 %v3408
      %v4350 = vunpack.c.l.b16 %v3409
      %v4351 = vunpack.c.l.b16 %v3410
      %v4352 = vunpack.c.l.b16 %v3411
      %v4353 = vunpack.c.l.b16 %v3412
      %v4354 = vunpack.c.l.b16 %v3413
      %v4355 = vunpack.c.l.b16 %v3414
      %v4356 = vunpack.c.l.b16 %v3415
      %v4357 = vpack.c.b16 %v4342, %v4341
      %v4358 = vpack.c.b16 %v4344, %v4343
      %v4359 = vpack.c.b16 %v4346, %v4345
      %v4360 = vpack.c.b16 %v4348, %v4347
      %v4361 = vpack.c.b16 %v4350, %v4349
      %v4362 = vpack.c.b16 %v4352, %v4351
      %v4363 = vpack.c.b16 %v4354, %v4353
      %v4364 = vpack.c.b16 %v4356, %v4355
      %4373 = vmatprep.subr.bf16.mxu0 0
      %4374 = vmatpush1.bf16.msra.mxu0 %v4357
      %4375 = vmatprep.subr.bf16.mxu0 0
      %4376 = vmatpush1.bf16.msra.mxu0 %v4358
      %4377 = vmatprep.subr.bf16.mxu0 0
      %4378 = vmatpush1.bf16.msra.mxu0 %v4359
      %4379 = vmatprep.subr.bf16.mxu0 0
      %4380 = vmatpush1.bf16.msra.mxu0 %v4360
      %4381 = vmatprep.subr.bf16.mxu0 0
      %4382 = vmatpush1.bf16.msra.mxu0 %v4361
      %4383 = vmatprep.subr.bf16.mxu0 0
      %4384 = vmatpush1.bf16.msra.mxu0 %v4362
      %4385 = vmatprep.subr.bf16.mxu0 0
      %4386 = vmatpush1.bf16.msra.mxu0 %v4363
      %4387 = vmatprep.subr.bf16.mxu0 0
      %4388 = vmatpush1.bf16.msra.mxu0 %v4364
      %4389 = vmatprep.subr.bf16.mxu0 0
      %4390 = vmatpush1.bf16.msra.mxu0 0
      %4391 = vmatprep.subr.bf16.mxu0 0
      %4392 = vmatpush1.bf16.msra.mxu0 0
      %4393 = vmatprep.subr.bf16.mxu0 0
      %4394 = vmatpush1.bf16.msra.mxu0 0
      %4395 = vmatprep.subr.bf16.mxu0 0
      %4396 = vmatpush1.bf16.msra.mxu0 0
      %4397 = vmatprep.subr.bf16.mxu0 0
      %4398 = vmatpush1.bf16.msra.mxu0 0
      %4399 = vmatprep.subr.bf16.mxu0 0
      %4400 = vmatpush1.bf16.msra.mxu0 0
      %4401 = vmatprep.subr.bf16.mxu0 0
      %4402 = vmatpush1.bf16.msra.mxu0 0
      %4403 = vmatprep.subr.bf16.mxu0 0
      %4404 = vmatpush1.bf16.msra.mxu0 0
      %4405 = vmatprep.mubr.bf16.mxu0 0
      %4406 = vmatmul.mubr.bf16.gmra.mrb[0].mxu0 %v3254
      %v4407 = vpop.f32.mrb[0].mxu0
      %v4408 = vadd.f32 %v3512, %v4407
      %v4409 = vpop.f32.mrb[0].mxu0
      %v4410 = vpop.f32.mrb[0].mxu0
      %v4411 = vpop.f32.mrb[0].mxu0
      %4412 = vdwg.mxu0
      %v4429 = vunpack.c.l.b16 %v3416
      %v4430 = vunpack.c.l.b16 %v3417
      %v4431 = vunpack.c.l.b16 %v3418
      %v4432 = vunpack.c.l.b16 %v3419
      %v4433 = vunpack.c.l.b16 %v3420
      %v4434 = vunpack.c.l.b16 %v3421
      %v4435 = vunpack.c.l.b16 %v3422
      %v4436 = vunpack.c.l.b16 %v3423
      %v4437 = vunpack.c.l.b16 %v3424
      %v4438 = vunpack.c.l.b16 %v3425
      %v4439 = vunpack.c.l.b16 %v3426
      %v4440 = vunpack.c.l.b16 %v3427
      %v4441 = vunpack.c.l.b16 %v3428
      %v4442 = vunpack.c.l.b16 %v3429
      %v4443 = vunpack.c.l.b16 %v3430
      %v4444 = vunpack.c.l.b16 %v3431
      %v4445 = vpack.c.b16 %v4430, %v4429
      %v4446 = vpack.c.b16 %v4432, %v4431
      %v4447 = vpack.c.b16 %v4434, %v4433
      %v4448 = vpack.c.b16 %v4436, %v4435
      %v4449 = vpack.c.b16 %v4438, %v4437
      %v4450 = vpack.c.b16 %v4440, %v4439
      %v4451 = vpack.c.b16 %v4442, %v4441
      %v4452 = vpack.c.b16 %v4444, %v4443
      %4461 = vmatprep.subr.bf16.mxu0 0
      %4462 = vmatpush1.bf16.msra.mxu0 %v4445
      %4463 = vmatprep.subr.bf16.mxu0 0
      %4464 = vmatpush1.bf16.msra.mxu0 %v4446
      %4465 = vmatprep.subr.bf16.mxu0 0
      %4466 = vmatpush1.bf16.msra.mxu0 %v4447
      %4467 = vmatprep.subr.bf16.mxu0 0
      %4468 = vmatpush1.bf16.msra.mxu0 %v4448
      %4469 = vmatprep.subr.bf16.mxu0 0
      %4470 = vmatpush1.bf16.msra.mxu0 %v4449
      %4471 = vmatprep.subr.bf16.mxu0 0
      %4472 = vmatpush1.bf16.msra.mxu0 %v4450
      %4473 = vmatprep.subr.bf16.mxu0 0
      %4474 = vmatpush1.bf16.msra.mxu0 %v4451
      %4475 = vmatprep.subr.bf16.mxu0 0
      %4476 = vmatpush1.bf16.msra.mxu0 %v4452
      %4477 = vmatprep.subr.bf16.mxu0 0
      %4478 = vmatpush1.bf16.msra.mxu0 0
      %4479 = vmatprep.subr.bf16.mxu0 0
      %4480 = vmatpush1.bf16.msra.mxu0 0
      %4481 = vmatprep.subr.bf16.mxu0 0
      %4482 = vmatpush1.bf16.msra.mxu0 0
      %4483 = vmatprep.subr.bf16.mxu0 0
      %4484 = vmatpush1.bf16.msra.mxu0 0
      %4485 = vmatprep.subr.bf16.mxu0 0
      %4486 = vmatpush1.bf16.msra.mxu0 0
      %4487 = vmatprep.subr.bf16.mxu0 0
      %4488 = vmatpush1.bf16.msra.mxu0 0
      %4489 = vmatprep.subr.bf16.mxu0 0
      %4490 = vmatpush1.bf16.msra.mxu0 0
      %4491 = vmatprep.subr.bf16.mxu0 0
      %4492 = vmatpush1.bf16.msra.mxu0 0
      %4493 = vmatprep.mubr.bf16.mxu0 0
      %4494 = vmatmul.mubr.bf16.gmra.mrb[0].mxu0 %v3254
      %v4495 = vpop.f32.mrb[0].mxu0
      %v4496 = vadd.f32 %v3516, %v4495
      %v4497 = vpop.f32.mrb[0].mxu0
      %v4498 = vpop.f32.mrb[0].mxu0
      %v4499 = vpop.f32.mrb[0].mxu0
      %4500 = vdwg.mxu0
      %v4517 = vunpack.c.l.b16 %v3432
      %v4518 = vunpack.c.l.b16 %v3433
      %v4519 = vunpack.c.l.b16 %v3434
      %v4520 = vunpack.c.l.b16 %v3435
      %v4521 = vunpack.c.l.b16 %v3436
      %v4522 = vunpack.c.l.b16 %v3437
      %v4523 = vunpack.c.l.b16 %v3438
      %v4524 = vunpack.c.l.b16 %v3439
      %v4525 = vunpack.c.l.b16 %v3440
      %v4526 = vunpack.c.l.b16 %v3441
      %v4527 = vunpack.c.l.b16 %v3442
      %v4528 = vunpack.c.l.b16 %v3443
      %v4529 = vunpack.c.l.b16 %v3444
      %v4530 = vunpack.c.l.b16 %v3445
      %v4531 = vunpack.c.l.b16 %v3446
      %v4532 = vunpack.c.l.b16 %v3447
      %v4533 = vpack.c.b16 %v4518, %v4517
      %v4534 = vpack.c.b16 %v4520, %v4519
      %v4535 = vpack.c.b16 %v4522, %v4521
      %v4536 = vpack.c.b16 %v4524, %v4523
      %v4537 = vpack.c.b16 %v4526, %v4525
      %v4538 = vpack.c.b16 %v4528, %v4527
      %v4539 = vpack.c.b16 %v4530, %v4529
      %v4540 = vpack.c.b16 %v4532, %v4531
      %4549 = vmatprep.subr.bf16.mxu0 0
      %4550 = vmatpush1.bf16.msra.mxu0 %v4533
      %4551 = vmatprep.subr.bf16.mxu0 0
      %4552 = vmatpush1.bf16.msra.mxu0 %v4534
      %4553 = vmatprep.subr.bf16.mxu0 0
      %4554 = vmatpush1.bf16.msra.mxu0 %v4535
      %4555 = vmatprep.subr.bf16.mxu0 0
      %4556 = vmatpush1.bf16.msra.mxu0 %v4536
      %4557 = vmatprep.subr.bf16.mxu0 0
      %4558 = vmatpush1.bf16.msra.mxu0 %v4537
      %4559 = vmatprep.subr.bf16.mxu0 0
      %4560 = vmatpush1.bf16.msra.mxu0 %v4538
      %4561 = vmatprep.subr.bf16.mxu0 0
      %4562 = vmatpush1.bf16.msra.mxu0 %v4539
      %4563 = vmatprep.subr.bf16.mxu0 0
      %4564 = vmatpush1.bf16.msra.mxu0 %v4540
      %4565 = vmatprep.subr.bf16.mxu0 0
      %4566 = vmatpush1.bf16.msra.mxu0 0
      %4567 = vmatprep.subr.bf16.mxu0 0
      %4568 = vmatpush1.bf16.msra.mxu0 0
      %4569 = vmatprep.subr.bf16.mxu0 0
      %4570 = vmatpush1.bf16.msra.mxu0 0
      %4571 = vmatprep.subr.bf16.mxu0 0
      %4572 = vmatpush1.bf16.msra.mxu0 0
      %4573 = vmatprep.subr.bf16.mxu0 0
      %4574 = vmatpush1.bf16.msra.mxu0 0
      %4575 = vmatprep.subr.bf16.mxu0 0
      %4576 = vmatpush1.bf16.msra.mxu0 0
      %4577 = vmatprep.subr.bf16.mxu0 0
      %4578 = vmatpush1.bf16.msra.mxu0 0
      %4579 = vmatprep.subr.bf16.mxu0 0
      %4580 = vmatpush1.bf16.msra.mxu0 0
      %4581 = vmatprep.mubr.bf16.mxu0 0
      %4582 = vmatmul.mubr.bf16.gmra.mrb[0].mxu0 %v3254
      %v4583 = vpop.f32.mrb[0].mxu0
      %v4584 = vadd.f32 %v3520, %v4583
      %v4585 = vpop.f32.mrb[0].mxu0
      %v4586 = vpop.f32.mrb[0].mxu0
      %v4587 = vpop.f32.mrb[0].mxu0
      %4588 = vdwg.mxu0
      %v4589 = vpack.c.bf16 %v3616, %v3616
      %v4590 = vpack.c.bf16 %v3704, %v3704
      %v4591 = vpack.c.bf16 %v3792, %v3792
      %v4592 = vpack.c.bf16 %v3880, %v3880
      %v4593 = vpack.c.bf16 %v3968, %v3968
      %v4594 = vpack.c.bf16 %v4056, %v4056
      %v4595 = vpack.c.bf16 %v4144, %v4144
      %v4596 = vpack.c.bf16 %v4232, %v4232
      %v4598 = vsel %vm1869, %v4589, 0
      %v4601 = vsel %vm1869, %v4593, 0
      %4603 = vmatprep.subr.bf16.mxu0 0
      %4604 = vmatpush1.bf16.xpose.msra.mxu0 %v4601
      %4605 = vmatprep.subr.bf16.mxu0 0
      %4606 = vmatpush1.bf16.xpose.msra.mxu0 0
      %4607 = vmatprep.subr.bf16.mxu0 0
      %4608 = vmatpush1.bf16.xpose.msra.mxu0 0
      %4609 = vmatprep.subr.bf16.mxu0 0
      %4610 = vmatpush1.bf16.xpose.msra.mxu0 0
      %4611 = vmatprep.subr.bf16.mxu0 0
      %4612 = vmatpush1.bf16.xpose.msra.mxu0 0
      %4613 = vmatprep.subr.bf16.mxu0 0
      %4614 = vmatpush1.bf16.xpose.msra.mxu0 0
      %4615 = vmatprep.subr.bf16.mxu0 0
      %4616 = vmatpush1.bf16.xpose.msra.mxu0 0
      %4617 = vmatprep.subr.bf16.mxu0 0
      %4618 = vmatpush1.bf16.xpose.msra.mxu0 0
      %4619 = vmatprep.subr.bf16.mxu0 0
      %4620 = vmatpush1.bf16.xpose.msra.mxu0 0
      %4621 = vmatprep.subr.bf16.mxu0 0
      %4622 = vmatpush1.bf16.xpose.msra.mxu0 0
      %4623 = vmatprep.subr.bf16.mxu0 0
      %4624 = vmatpush1.bf16.xpose.msra.mxu0 0
      %4625 = vmatprep.subr.bf16.mxu0 0
      %4626 = vmatpush1.bf16.xpose.msra.mxu0 0
      %4627 = vmatprep.subr.bf16.mxu0 0
      %4628 = vmatpush1.bf16.xpose.msra.mxu0 0
      %4629 = vmatprep.subr.bf16.mxu0 0
      %4630 = vmatpush1.bf16.xpose.msra.mxu0 0
      %4631 = vmatprep.subr.bf16.mxu0 0
      %4632 = vmatpush1.bf16.xpose.msra.mxu0 0
      %4633 = vmatprep.subr.bf16.mxu0 0
      %4634 = vmatpush1.bf16.xpose.msra.mxu0 0
      %4635 = vmatprep.mubr.bf16.mxu0 0
      %4636 = vmatmul.mubr.bf16.gmra.mrb[0].mxu0 %v4598
      %v4637 = vpop.f32.mrb[0].mxu0
      %v4638 = vadd.f32 0.0, %v4637
      %v4639 = vpop.f32.mrb[0].mxu0
      %v4640 = vpop.f32.mrb[0].mxu0
      %v4641 = vpop.f32.mrb[0].mxu0
      %4642 = vdwg.mxu0
      %v4644 = vsel %vm1869, %v4590, 0
      %v4647 = vsel %vm1869, %v4594, 0
      %4649 = vmatprep.subr.bf16.mxu0 0
      %4650 = vmatpush1.bf16.xpose.msra.mxu0 %v4647
      %4651 = vmatprep.subr.bf16.mxu0 0
      %4652 = vmatpush1.bf16.xpose.msra.mxu0 0
      %4653 = vmatprep.subr.bf16.mxu0 0
      %4654 = vmatpush1.bf16.xpose.msra.mxu0 0
      %4655 = vmatprep.subr.bf16.mxu0 0
      %4656 = vmatpush1.bf16.xpose.msra.mxu0 0
      %4657 = vmatprep.subr.bf16.mxu0 0
      %4658 = vmatpush1.bf16.xpose.msra.mxu0 0
      %4659 = vmatprep.subr.bf16.mxu0 0
      %4660 = vmatpush1.bf16.xpose.msra.mxu0 0
      %4661 = vmatprep.subr.bf16.mxu0 0
      %4662 = vmatpush1.bf16.xpose.msra.mxu0 0
      %4663 = vmatprep.subr.bf16.mxu0 0
      %4664 = vmatpush1.bf16.xpose.msra.mxu0 0
      %4665 = vmatprep.subr.bf16.mxu0 0
      %4666 = vmatpush1.bf16.xpose.msra.mxu0 0
      %4667 = vmatprep.subr.bf16.mxu0 0
      %4668 = vmatpush1.bf16.xpose.msra.mxu0 0
      %4669 = vmatprep.subr.bf16.mxu0 0
      %4670 = vmatpush1.bf16.xpose.msra.mxu0 0
      %4671 = vmatprep.subr.bf16.mxu0 0
      %4672 = vmatpush1.bf16.xpose.msra.mxu0 0
      %4673 = vmatprep.subr.bf16.mxu0 0
      %4674 = vmatpush1.bf16.xpose.msra.mxu0 0
      %4675 = vmatprep.subr.bf16.mxu0 0
      %4676 = vmatpush1.bf16.xpose.msra.mxu0 0
      %4677 = vmatprep.subr.bf16.mxu0 0
      %4678 = vmatpush1.bf16.xpose.msra.mxu0 0
      %4679 = vmatprep.subr.bf16.mxu0 0
      %4680 = vmatpush1.bf16.xpose.msra.mxu0 0
      %4681 = vmatprep.mubr.bf16.mxu0 0
      %4682 = vmatmul.mubr.bf16.gmra.mrb[0].mxu0 %v4644
      %v4683 = vpop.f32.mrb[0].mxu0
      %v4684 = vadd.f32 0.0, %v4683
      %v4685 = vpop.f32.mrb[0].mxu0
      %v4686 = vpop.f32.mrb[0].mxu0
      %v4687 = vpop.f32.mrb[0].mxu0
      %4688 = vdwg.mxu0
      %v4690 = vsel %vm1869, %v4591, 0
      %v4693 = vsel %vm1869, %v4595, 0
      %4695 = vmatprep.subr.bf16.mxu0 0
      %4696 = vmatpush1.bf16.xpose.msra.mxu0 %v4693
      %4697 = vmatprep.subr.bf16.mxu0 0
      %4698 = vmatpush1.bf16.xpose.msra.mxu0 0
      %4699 = vmatprep.subr.bf16.mxu0 0
      %4700 = vmatpush1.bf16.xpose.msra.mxu0 0
      %4701 = vmatprep.subr.bf16.mxu0 0
      %4702 = vmatpush1.bf16.xpose.msra.mxu0 0
      %4703 = vmatprep.subr.bf16.mxu0 0
      %4704 = vmatpush1.bf16.xpose.msra.mxu0 0
      %4705 = vmatprep.subr.bf16.mxu0 0
      %4706 = vmatpush1.bf16.xpose.msra.mxu0 0
      %4707 = vmatprep.subr.bf16.mxu0 0
      %4708 = vmatpush1.bf16.xpose.msra.mxu0 0
      %4709 = vmatprep.subr.bf16.mxu0 0
      %4710 = vmatpush1.bf16.xpose.msra.mxu0 0
      %4711 = vmatprep.subr.bf16.mxu0 0
      %4712 = vmatpush1.bf16.xpose.msra.mxu0 0
      %4713 = vmatprep.subr.bf16.mxu0 0
      %4714 = vmatpush1.bf16.xpose.msra.mxu0 0
      %4715 = vmatprep.subr.bf16.mxu0 0
      %4716 = vmatpush1.bf16.xpose.msra.mxu0 0
      %4717 = vmatprep.subr.bf16.mxu0 0
      %4718 = vmatpush1.bf16.xpose.msra.mxu0 0
      %4719 = vmatprep.subr.bf16.mxu0 0
      %4720 = vmatpush1.bf16.xpose.msra.mxu0 0
      %4721 = vmatprep.subr.bf16.mxu0 0
      %4722 = vmatpush1.bf16.xpose.msra.mxu0 0
      %4723 = vmatprep.subr.bf16.mxu0 0
      %4724 = vmatpush1.bf16.xpose.msra.mxu0 0
      %4725 = vmatprep.subr.bf16.mxu0 0
      %4726 = vmatpush1.bf16.xpose.msra.mxu0 0
      %4727 = vmatprep.mubr.bf16.mxu0 0
      %4728 = vmatmul.mubr.bf16.gmra.mrb[0].mxu0 %v4690
      %v4729 = vpop.f32.mrb[0].mxu0
      %v4730 = vadd.f32 0.0, %v4729
      %v4731 = vpop.f32.mrb[0].mxu0
      %v4732 = vpop.f32.mrb[0].mxu0
      %v4733 = vpop.f32.mrb[0].mxu0
      %4734 = vdwg.mxu0
      %v4736 = vsel %vm1869, %v4592, 0
      %v4739 = vsel %vm1869, %v4596, 0
      %4741 = vmatprep.subr.bf16.mxu0 0
      %4742 = vmatpush1.bf16.xpose.msra.mxu0 %v4739
      %4743 = vmatprep.subr.bf16.mxu0 0
      %4744 = vmatpush1.bf16.xpose.msra.mxu0 0
      %4745 = vmatprep.subr.bf16.mxu0 0
      %4746 = vmatpush1.bf16.xpose.msra.mxu0 0
      %4747 = vmatprep.subr.bf16.mxu0 0
      %4748 = vmatpush1.bf16.xpose.msra.mxu0 0
      %4749 = vmatprep.subr.bf16.mxu0 0
      %4750 = vmatpush1.bf16.xpose.msra.mxu0 0
      %4751 = vmatprep.subr.bf16.mxu0 0
      %4752 = vmatpush1.bf16.xpose.msra.mxu0 0
      %4753 = vmatprep.subr.bf16.mxu0 0
      %4754 = vmatpush1.bf16.xpose.msra.mxu0 0
      %4755 = vmatprep.subr.bf16.mxu0 0
      %4756 = vmatpush1.bf16.xpose.msra.mxu0 0
      %4757 = vmatprep.subr.bf16.mxu0 0
      %4758 = vmatpush1.bf16.xpose.msra.mxu0 0
      %4759 = vmatprep.subr.bf16.mxu0 0
      %4760 = vmatpush1.bf16.xpose.msra.mxu0 0
      %4761 = vmatprep.subr.bf16.mxu0 0
      %4762 = vmatpush1.bf16.xpose.msra.mxu0 0
      %4763 = vmatprep.subr.bf16.mxu0 0
      %4764 = vmatpush1.bf16.xpose.msra.mxu0 0
      %4765 = vmatprep.subr.bf16.mxu0 0
      %4766 = vmatpush1.bf16.xpose.msra.mxu0 0
      %4767 = vmatprep.subr.bf16.mxu0 0
      %4768 = vmatpush1.bf16.xpose.msra.mxu0 0
      %4769 = vmatprep.subr.bf16.mxu0 0
      %4770 = vmatpush1.bf16.xpose.msra.mxu0 0
      %4771 = vmatprep.subr.bf16.mxu0 0
      %4772 = vmatpush1.bf16.xpose.msra.mxu0 0
      %4773 = vmatprep.mubr.bf16.mxu0 0
      %4774 = vmatmul.mubr.bf16.gmra.mrb[0].mxu0 %v4736
      %v4775 = vpop.f32.mrb[0].mxu0
      %v4776 = vadd.f32 0.0, %v4775
      %v4777 = vpop.f32.mrb[0].mxu0
      %v4778 = vpop.f32.mrb[0].mxu0
      %v4779 = vpop.f32.mrb[0].mxu0
      %4780 = vdwg.mxu0
      %v4781 = vsel %vm2055, %v4638, -1e+30
      %v4782 = vsel %vm2055, %v4684, -1e+30
      %v4783 = vsel %vm2055, %v4730, -1e+30
      %v4784 = vsel %vm2055, %v4776, -1e+30
      %v4785 = vsel %vm2060, %v4781, -inf
      %4786 = vmax.xlane.f32.xlu0 %v4785
      %v4787 = vpop.xlane.xlu0 %4786
      %v4788 = vsel %vm2060, %v4782, -inf
      %4789 = vmax.xlane.f32.xlu0 %v4788
      %v4790 = vpop.xlane.xlu0 %4789
      %v4791 = vsel %vm2060, %v4783, -inf
      %4792 = vmax.xlane.f32.xlu0 %v4791
      %v4793 = vpop.xlane.xlu0 %4792
      %v4794 = vsel %vm2060, %v4784, -inf
      %4795 = vmax.xlane.f32.xlu0 %v4794
      %v4796 = vpop.xlane.xlu0 %4795
      %v4797 = vsub.f32 %v4781, %v4787
      %v4798 = vsub.f32 %v4782, %v4790
      %v4799 = vsub.f32 %v4783, %v4793
      %v4800 = vsub.f32 %v4784, %v4796
      %v4801 = vmul.f32 %v4797, 1.442695
      %v4802 = vpow.pop %v4801
      %v4803 = vmul.f32 %v4798, 1.442695
      %v4804 = vpow.pop %v4803
      %v4805 = vmul.f32 %v4799, 1.442695
      %v4806 = vpow.pop %v4805
      %v4807 = vmul.f32 %v4800, 1.442695
      %v4808 = vpow.pop %v4807
      %v4809 = vsel %vm2060, %v4802, 0.0
      %4810 = vadd.xlane.f32.xlu0 %v4809
      %v4811 = vpop.xlane.xlu0 %4810
      %v4812 = vsel %vm2060, %v4804, 0.0
      %4813 = vadd.xlane.f32.xlu0 %v4812
      %v4814 = vpop.xlane.xlu0 %4813
      %v4815 = vsel %vm2060, %v4806, 0.0
      %4816 = vadd.xlane.f32.xlu0 %v4815
      %v4817 = vpop.xlane.xlu0 %4816
      %v4818 = vsel %vm2060, %v4808, 0.0
      %4819 = vadd.xlane.f32.xlu0 %v4818
      %v4820 = vpop.xlane.xlu0 %4819
      %v4821 = vrcp.pop %v4811
      %v4822 = vrcp.pop %v4814
      %v4823 = vrcp.pop %v4817
      %v4824 = vrcp.pop %v4820
      %v4825 = vmul.f32 %v4802, %v4821
      %v4826 = vmul.f32 %v4804, %v4822
      %v4827 = vmul.f32 %v4806, %v4823
      %v4828 = vmul.f32 %v4808, %v4824
      %v4829 = vpack.c.bf16 %v4825, %v4825
      %v4830 = vpack.c.bf16 %v4826, %v4826
      %v4831 = vpack.c.bf16 %v4827, %v4827
      %v4832 = vpack.c.bf16 %v4828, %v4828
      %v4833 = vpack.c.bf16 %v4320, %v4320
      %v4834 = vpack.c.bf16 %v4408, %v4408
      %v4835 = vpack.c.bf16 %v4496, %v4496
      %v4836 = vpack.c.bf16 %v4584, %v4584
      %v4838 = vsel %vm2060, %v4829, 0
      %v4841 = vsel %vm2116, %v4833, 0
      %4843 = vmatprep.subr.bf16.mxu0 0
      %4844 = vmatpush1.bf16.msra.mxu0 %v4841
      %4845 = vmatprep.subr.bf16.mxu0 0
      %4846 = vmatpush1.bf16.msra.mxu0 0
      %4847 = vmatprep.subr.bf16.mxu0 0
      %4848 = vmatpush1.bf16.msra.mxu0 0
      %4849 = vmatprep.subr.bf16.mxu0 0
      %4850 = vmatpush1.bf16.msra.mxu0 0
      %4851 = vmatprep.subr.bf16.mxu0 0
      %4852 = vmatpush1.bf16.msra.mxu0 0
      %4853 = vmatprep.subr.bf16.mxu0 0
      %4854 = vmatpush1.bf16.msra.mxu0 0
      %4855 = vmatprep.subr.bf16.mxu0 0
      %4856 = vmatpush1.bf16.msra.mxu0 0
      %4857 = vmatprep.subr.bf16.mxu0 0
      %4858 = vmatpush1.bf16.msra.mxu0 0
      %4859 = vmatprep.subr.bf16.mxu0 0
      %4860 = vmatpush1.bf16.msra.mxu0 0
      %4861 = vmatprep.subr.bf16.mxu0 0
      %4862 = vmatpush1.bf16.msra.mxu0 0
      %4863 = vmatprep.subr.bf16.mxu0 0
      %4864 = vmatpush1.bf16.msra.mxu0 0
      %4865 = vmatprep.subr.bf16.mxu0 0
      %4866 = vmatpush1.bf16.msra.mxu0 0
      %4867 = vmatprep.subr.bf16.mxu0 0
      %4868 = vmatpush1.bf16.msra.mxu0 0
      %4869 = vmatprep.subr.bf16.mxu0 0
      %4870 = vmatpush1.bf16.msra.mxu0 0
      %4871 = vmatprep.subr.bf16.mxu0 0
      %4872 = vmatpush1.bf16.msra.mxu0 0
      %4873 = vmatprep.subr.bf16.mxu0 0
      %4874 = vmatpush1.bf16.msra.mxu0 0
      %4875 = vmatprep.mubr.bf16.mxu0 0
      %4876 = vmatmul.mubr.bf16.gmra.mrb[0].mxu0 %v4838
      %v4877 = vpop.f32.mrb[0].mxu0
      %v4878 = vadd.f32 0.0, %v4877
      %v4879 = vpop.f32.mrb[0].mxu0
      %v4880 = vpop.f32.mrb[0].mxu0
      %v4881 = vpop.f32.mrb[0].mxu0
      %4882 = vdwg.mxu0
      %v4884 = vsel %vm2060, %v4830, 0
      %v4887 = vsel %vm2116, %v4834, 0
      %4889 = vmatprep.subr.bf16.mxu0 0
      %4890 = vmatpush1.bf16.msra.mxu0 %v4887
      %4891 = vmatprep.subr.bf16.mxu0 0
      %4892 = vmatpush1.bf16.msra.mxu0 0
      %4893 = vmatprep.subr.bf16.mxu0 0
      %4894 = vmatpush1.bf16.msra.mxu0 0
      %4895 = vmatprep.subr.bf16.mxu0 0
      %4896 = vmatpush1.bf16.msra.mxu0 0
      %4897 = vmatprep.subr.bf16.mxu0 0
      %4898 = vmatpush1.bf16.msra.mxu0 0
      %4899 = vmatprep.subr.bf16.mxu0 0
      %4900 = vmatpush1.bf16.msra.mxu0 0
      %4901 = vmatprep.subr.bf16.mxu0 0
      %4902 = vmatpush1.bf16.msra.mxu0 0
      %4903 = vmatprep.subr.bf16.mxu0 0
      %4904 = vmatpush1.bf16.msra.mxu0 0
      %4905 = vmatprep.subr.bf16.mxu0 0
      %4906 = vmatpush1.bf16.msra.mxu0 0
      %4907 = vmatprep.subr.bf16.mxu0 0
      %4908 = vmatpush1.bf16.msra.mxu0 0
      %4909 = vmatprep.subr.bf16.mxu0 0
      %4910 = vmatpush1.bf16.msra.mxu0 0
      %4911 = vmatprep.subr.bf16.mxu0 0
      %4912 = vmatpush1.bf16.msra.mxu0 0
      %4913 = vmatprep.subr.bf16.mxu0 0
      %4914 = vmatpush1.bf16.msra.mxu0 0
      %4915 = vmatprep.subr.bf16.mxu0 0
      %4916 = vmatpush1.bf16.msra.mxu0 0
      %4917 = vmatprep.subr.bf16.mxu0 0
      %4918 = vmatpush1.bf16.msra.mxu0 0
      %4919 = vmatprep.subr.bf16.mxu0 0
      %4920 = vmatpush1.bf16.msra.mxu0 0
      %4921 = vmatprep.mubr.bf16.mxu0 0
      %4922 = vmatmul.mubr.bf16.gmra.mrb[0].mxu0 %v4884
      %v4923 = vpop.f32.mrb[0].mxu0
      %v4924 = vadd.f32 0.0, %v4923
      %v4925 = vpop.f32.mrb[0].mxu0
      %v4926 = vpop.f32.mrb[0].mxu0
      %v4927 = vpop.f32.mrb[0].mxu0
      %4928 = vdwg.mxu0
      %v4930 = vsel %vm2060, %v4831, 0
      %v4933 = vsel %vm2116, %v4835, 0
      %4935 = vmatprep.subr.bf16.mxu0 0
      %4936 = vmatpush1.bf16.msra.mxu0 %v4933
      %4937 = vmatprep.subr.bf16.mxu0 0
      %4938 = vmatpush1.bf16.msra.mxu0 0
      %4939 = vmatprep.subr.bf16.mxu0 0
      %4940 = vmatpush1.bf16.msra.mxu0 0
      %4941 = vmatprep.subr.bf16.mxu0 0
      %4942 = vmatpush1.bf16.msra.mxu0 0
      %4943 = vmatprep.subr.bf16.mxu0 0
      %4944 = vmatpush1.bf16.msra.mxu0 0
      %4945 = vmatprep.subr.bf16.mxu0 0
      %4946 = vmatpush1.bf16.msra.mxu0 0
      %4947 = vmatprep.subr.bf16.mxu0 0
      %4948 = vmatpush1.bf16.msra.mxu0 0
      %4949 = vmatprep.subr.bf16.mxu0 0
      %4950 = vmatpush1.bf16.msra.mxu0 0
      %4951 = vmatprep.subr.bf16.mxu0 0
      %4952 = vmatpush1.bf16.msra.mxu0 0
      %4953 = vmatprep.subr.bf16.mxu0 0
      %4954 = vmatpush1.bf16.msra.mxu0 0
      %4955 = vmatprep.subr.bf16.mxu0 0
      %4956 = vmatpush1.bf16.msra.mxu0 0
      %4957 = vmatprep.subr.bf16.mxu0 0
      %4958 = vmatpush1.bf16.msra.mxu0 0
      %4959 = vmatprep.subr.bf16.mxu0 0
      %4960 = vmatpush1.bf16.msra.mxu0 0
      %4961 = vmatprep.subr.bf16.mxu0 0
      %4962 = vmatpush1.bf16.msra.mxu0 0
      %4963 = vmatprep.subr.bf16.mxu0 0
      %4964 = vmatpush1.bf16.msra.mxu0 0
      %4965 = vmatprep.subr.bf16.mxu0 0
      %4966 = vmatpush1.bf16.msra.mxu0 0
      %4967 = vmatprep.mubr.bf16.mxu0 0
      %4968 = vmatmul.mubr.bf16.gmra.mrb[0].mxu0 %v4930
      %v4969 = vpop.f32.mrb[0].mxu0
      %v4970 = vadd.f32 0.0, %v4969
      %v4971 = vpop.f32.mrb[0].mxu0
      %v4972 = vpop.f32.mrb[0].mxu0
      %v4973 = vpop.f32.mrb[0].mxu0
      %4974 = vdwg.mxu0
      %v4976 = vsel %vm2060, %v4832, 0
      %v4979 = vsel %vm2116, %v4836, 0
      %4981 = vmatprep.subr.bf16.mxu0 0
      %4982 = vmatpush1.bf16.msra.mxu0 %v4979
      %4983 = vmatprep.subr.bf16.mxu0 0
      %4984 = vmatpush1.bf16.msra.mxu0 0
      %4985 = vmatprep.subr.bf16.mxu0 0
      %4986 = vmatpush1.bf16.msra.mxu0 0
      %4987 = vmatprep.subr.bf16.mxu0 0
      %4988 = vmatpush1.bf16.msra.mxu0 0
      %4989 = vmatprep.subr.bf16.mxu0 0
      %4990 = vmatpush1.bf16.msra.mxu0 0
      %4991 = vmatprep.subr.bf16.mxu0 0
      %4992 = vmatpush1.bf16.msra.mxu0 0
      %4993 = vmatprep.subr.bf16.mxu0 0
      %4994 = vmatpush1.bf16.msra.mxu0 0
      %4995 = vmatprep.subr.bf16.mxu0 0
      %4996 = vmatpush1.bf16.msra.mxu0 0
      %4997 = vmatprep.subr.bf16.mxu0 0
      %4998 = vmatpush1.bf16.msra.mxu0 0
      %4999 = vmatprep.subr.bf16.mxu0 0
      %5000 = vmatpush1.bf16.msra.mxu0 0
      %5001 = vmatprep.subr.bf16.mxu0 0
      %5002 = vmatpush1.bf16.msra.mxu0 0
      %5003 = vmatprep.subr.bf16.mxu0 0
      %5004 = vmatpush1.bf16.msra.mxu0 0
      %5005 = vmatprep.subr.bf16.mxu0 0
      %5006 = vmatpush1.bf16.msra.mxu0 0
      %5007 = vmatprep.subr.bf16.mxu0 0
      %5008 = vmatpush1.bf16.msra.mxu0 0
      %5009 = vmatprep.subr.bf16.mxu0 0
      %5010 = vmatpush1.bf16.msra.mxu0 0
      %5011 = vmatprep.subr.bf16.mxu0 0
      %5012 = vmatpush1.bf16.msra.mxu0 0
      %5013 = vmatprep.mubr.bf16.mxu0 0
      %5014 = vmatmul.mubr.bf16.gmra.mrb[0].mxu0 %v4976
      %v5015 = vpop.f32.mrb[0].mxu0
      %v5016 = vadd.f32 0.0, %v5015
      %v5017 = vpop.f32.mrb[0].mxu0
      %v5018 = vpop.f32.mrb[0].mxu0
      %v5019 = vpop.f32.mrb[0].mxu0
      %5020 = vdwg.mxu0
      %v5021 = vpack.c.bf16 %v4878, %v4878
      %v5022 = vpack.c.bf16 %v4924, %v4924
      %v5023 = vpack.c.bf16 %v4970, %v4970
      %v5024 = vpack.c.bf16 %v5016, %v5016
      %s5025 = scalar_lea.vmem %s4, 64
      %v5026 = vld [vmem:[%s5025] sm:$0xf]
      %v5027 = vld [vmem:[%s5025 + $0x4] sm:$0xf]
      %v5028 = vld [vmem:[%s5025 + $0x8] sm:$0xf]
      %v5029 = vld [vmem:[%s5025 + $0xc] sm:$0xf]
      %v5030 = vld [vmem:[%s5025 + $0x10] sm:$0xf]
      %v5031 = vld [vmem:[%s5025 + $0x14] sm:$0xf]
      %v5032 = vld [vmem:[%s5025 + $0x18] sm:$0xf]
      %v5033 = vld [vmem:[%s5025 + $0x1c] sm:$0xf]
      %v5034 = vld [vmem:[%s5025 + $0x20] sm:$0xf]
      %v5035 = vld [vmem:[%s5025 + $0x24] sm:$0xf]
      %v5036 = vld [vmem:[%s5025 + $0x28] sm:$0xf]
      %v5037 = vld [vmem:[%s5025 + $0x2c] sm:$0xf]
      %v5038 = vld [vmem:[%s5025 + $0x30] sm:$0xf]
      %v5039 = vld [vmem:[%s5025 + $0x34] sm:$0xf]
      %v5040 = vld [vmem:[%s5025 + $0x38] sm:$0xf]
      %v5041 = vld [vmem:[%s5025 + $0x3c] sm:$0xf]
      %v5046 = vunpack.c.l.b16 %v5026
      %v5047 = vunpack.c.l.b16 %v5027
      %v5048 = vunpack.c.l.b16 %v5028
      %v5049 = vunpack.c.l.b16 %v5029
      %v5050 = vpack.c.b16 %v5047, %v5046
      %v5051 = vpack.c.b16 %v5049, %v5048
      %v5055 = vsel %vm1869, %v5021, 0
      %5057 = vmatprep.subr.bf16.mxu0 0
      %5058 = vmatpush1.bf16.msra.mxu0 %v5050
      %5059 = vmatprep.subr.bf16.mxu0 0
      %5060 = vmatpush1.bf16.msra.mxu0 %v5051
      %5061 = vmatprep.subr.bf16.mxu0 0
      %5062 = vmatpush1.bf16.msra.mxu0 0
      %5063 = vmatprep.subr.bf16.mxu0 0
      %5064 = vmatpush1.bf16.msra.mxu0 0
      %5065 = vmatprep.subr.bf16.mxu0 0
      %5066 = vmatpush1.bf16.msra.mxu0 0
      %5067 = vmatprep.subr.bf16.mxu0 0
      %5068 = vmatpush1.bf16.msra.mxu0 0
      %5069 = vmatprep.subr.bf16.mxu0 0
      %5070 = vmatpush1.bf16.msra.mxu0 0
      %5071 = vmatprep.subr.bf16.mxu0 0
      %5072 = vmatpush1.bf16.msra.mxu0 0
      %5073 = vmatprep.subr.bf16.mxu0 0
      %5074 = vmatpush1.bf16.msra.mxu0 0
      %5075 = vmatprep.subr.bf16.mxu0 0
      %5076 = vmatpush1.bf16.msra.mxu0 0
      %5077 = vmatprep.subr.bf16.mxu0 0
      %5078 = vmatpush1.bf16.msra.mxu0 0
      %5079 = vmatprep.subr.bf16.mxu0 0
      %5080 = vmatpush1.bf16.msra.mxu0 0
      %5081 = vmatprep.subr.bf16.mxu0 0
      %5082 = vmatpush1.bf16.msra.mxu0 0
      %5083 = vmatprep.subr.bf16.mxu0 0
      %5084 = vmatpush1.bf16.msra.mxu0 0
      %5085 = vmatprep.subr.bf16.mxu0 0
      %5086 = vmatpush1.bf16.msra.mxu0 0
      %5087 = vmatprep.subr.bf16.mxu0 0
      %5088 = vmatpush1.bf16.msra.mxu0 0
      %5089 = vmatprep.mubr.bf16.mxu0 0
      %5090 = vmatmul.mubr.bf16.gmra.mrb[0].mxu0 %v5055
      %v5091 = vpop.f32.mrb[0].mxu0
      %v5092 = vadd.f32 0.0, %v5091
      %v5093 = vpop.f32.mrb[0].mxu0
      %v5094 = vpop.f32.mrb[0].mxu0
      %v5095 = vpop.f32.mrb[0].mxu0
      %5096 = vdwg.mxu0
      %v5101 = vunpack.c.l.b16 %v5030
      %v5102 = vunpack.c.l.b16 %v5031
      %v5103 = vunpack.c.l.b16 %v5032
      %v5104 = vunpack.c.l.b16 %v5033
      %v5105 = vpack.c.b16 %v5102, %v5101
      %v5106 = vpack.c.b16 %v5104, %v5103
      %v5110 = vsel %vm1869, %v5022, 0
      %5112 = vmatprep.subr.bf16.mxu0 0
      %5113 = vmatpush1.bf16.msra.mxu0 %v5105
      %5114 = vmatprep.subr.bf16.mxu0 0
      %5115 = vmatpush1.bf16.msra.mxu0 %v5106
      %5116 = vmatprep.subr.bf16.mxu0 0
      %5117 = vmatpush1.bf16.msra.mxu0 0
      %5118 = vmatprep.subr.bf16.mxu0 0
      %5119 = vmatpush1.bf16.msra.mxu0 0
      %5120 = vmatprep.subr.bf16.mxu0 0
      %5121 = vmatpush1.bf16.msra.mxu0 0
      %5122 = vmatprep.subr.bf16.mxu0 0
      %5123 = vmatpush1.bf16.msra.mxu0 0
      %5124 = vmatprep.subr.bf16.mxu0 0
      %5125 = vmatpush1.bf16.msra.mxu0 0
      %5126 = vmatprep.subr.bf16.mxu0 0
      %5127 = vmatpush1.bf16.msra.mxu0 0
      %5128 = vmatprep.subr.bf16.mxu0 0
      %5129 = vmatpush1.bf16.msra.mxu0 0
      %5130 = vmatprep.subr.bf16.mxu0 0
      %5131 = vmatpush1.bf16.msra.mxu0 0
      %5132 = vmatprep.subr.bf16.mxu0 0
      %5133 = vmatpush1.bf16.msra.mxu0 0
      %5134 = vmatprep.subr.bf16.mxu0 0
      %5135 = vmatpush1.bf16.msra.mxu0 0
      %5136 = vmatprep.subr.bf16.mxu0 0
      %5137 = vmatpush1.bf16.msra.mxu0 0
      %5138 = vmatprep.subr.bf16.mxu0 0
      %5139 = vmatpush1.bf16.msra.mxu0 0
      %5140 = vmatprep.subr.bf16.mxu0 0
      %5141 = vmatpush1.bf16.msra.mxu0 0
      %5142 = vmatprep.subr.bf16.mxu0 0
      %5143 = vmatpush1.bf16.msra.mxu0 0
      %5144 = vmatprep.mubr.bf16.mxu0 0
      %5145 = vmatmul.mubr.bf16.gmra.mrb[0].mxu0 %v5110
      %v5146 = vpop.f32.mrb[0].mxu0
      %v5147 = vadd.f32 0.0, %v5146
      %v5148 = vpop.f32.mrb[0].mxu0
      %v5149 = vpop.f32.mrb[0].mxu0
      %v5150 = vpop.f32.mrb[0].mxu0
      %5151 = vdwg.mxu0
      %v5156 = vunpack.c.l.b16 %v5034
      %v5157 = vunpack.c.l.b16 %v5035
      %v5158 = vunpack.c.l.b16 %v5036
      %v5159 = vunpack.c.l.b16 %v5037
      %v5160 = vpack.c.b16 %v5157, %v5156
      %v5161 = vpack.c.b16 %v5159, %v5158
      %v5165 = vsel %vm1869, %v5023, 0
      %5167 = vmatprep.subr.bf16.mxu0 0
      %5168 = vmatpush1.bf16.msra.mxu0 %v5160
      %5169 = vmatprep.subr.bf16.mxu0 0
      %5170 = vmatpush1.bf16.msra.mxu0 %v5161
      %5171 = vmatprep.subr.bf16.mxu0 0
      %5172 = vmatpush1.bf16.msra.mxu0 0
      %5173 = vmatprep.subr.bf16.mxu0 0
      %5174 = vmatpush1.bf16.msra.mxu0 0
      %5175 = vmatprep.subr.bf16.mxu0 0
      %5176 = vmatpush1.bf16.msra.mxu0 0
      %5177 = vmatprep.subr.bf16.mxu0 0
      %5178 = vmatpush1.bf16.msra.mxu0 0
      %5179 = vmatprep.subr.bf16.mxu0 0
      %5180 = vmatpush1.bf16.msra.mxu0 0
      %5181 = vmatprep.subr.bf16.mxu0 0
      %5182 = vmatpush1.bf16.msra.mxu0 0
      %5183 = vmatprep.subr.bf16.mxu0 0
      %5184 = vmatpush1.bf16.msra.mxu0 0
      %5185 = vmatprep.subr.bf16.mxu0 0
      %5186 = vmatpush1.bf16.msra.mxu0 0
      %5187 = vmatprep.subr.bf16.mxu0 0
      %5188 = vmatpush1.bf16.msra.mxu0 0
      %5189 = vmatprep.subr.bf16.mxu0 0
      %5190 = vmatpush1.bf16.msra.mxu0 0
      %5191 = vmatprep.subr.bf16.mxu0 0
      %5192 = vmatpush1.bf16.msra.mxu0 0
      %5193 = vmatprep.subr.bf16.mxu0 0
      %5194 = vmatpush1.bf16.msra.mxu0 0
      %5195 = vmatprep.subr.bf16.mxu0 0
      %5196 = vmatpush1.bf16.msra.mxu0 0
      %5197 = vmatprep.subr.bf16.mxu0 0
      %5198 = vmatpush1.bf16.msra.mxu0 0
      %5199 = vmatprep.mubr.bf16.mxu0 0
      %5200 = vmatmul.mubr.bf16.gmra.mrb[0].mxu0 %v5165
      %v5201 = vpop.f32.mrb[0].mxu0
      %v5202 = vadd.f32 0.0, %v5201
      %v5203 = vpop.f32.mrb[0].mxu0
      %v5204 = vpop.f32.mrb[0].mxu0
      %v5205 = vpop.f32.mrb[0].mxu0
      %5206 = vdwg.mxu0
      %v5211 = vunpack.c.l.b16 %v5038
      %v5212 = vunpack.c.l.b16 %v5039
      %v5213 = vunpack.c.l.b16 %v5040
      %v5214 = vunpack.c.l.b16 %v5041
      %v5215 = vpack.c.b16 %v5212, %v5211
      %v5216 = vpack.c.b16 %v5214, %v5213
      %v5220 = vsel %vm1869, %v5024, 0
      %5222 = vmatprep.subr.bf16.mxu0 0
      %5223 = vmatpush1.bf16.msra.mxu0 %v5215
      %5224 = vmatprep.subr.bf16.mxu0 0
      %5225 = vmatpush1.bf16.msra.mxu0 %v5216
      %5226 = vmatprep.subr.bf16.mxu0 0
      %5227 = vmatpush1.bf16.msra.mxu0 0
      %5228 = vmatprep.subr.bf16.mxu0 0
      %5229 = vmatpush1.bf16.msra.mxu0 0
      %5230 = vmatprep.subr.bf16.mxu0 0
      %5231 = vmatpush1.bf16.msra.mxu0 0
      %5232 = vmatprep.subr.bf16.mxu0 0
      %5233 = vmatpush1.bf16.msra.mxu0 0
      %5234 = vmatprep.subr.bf16.mxu0 0
      %5235 = vmatpush1.bf16.msra.mxu0 0
      %5236 = vmatprep.subr.bf16.mxu0 0
      %5237 = vmatpush1.bf16.msra.mxu0 0
      %5238 = vmatprep.subr.bf16.mxu0 0
      %5239 = vmatpush1.bf16.msra.mxu0 0
      %5240 = vmatprep.subr.bf16.mxu0 0
      %5241 = vmatpush1.bf16.msra.mxu0 0
      %5242 = vmatprep.subr.bf16.mxu0 0
      %5243 = vmatpush1.bf16.msra.mxu0 0
      %5244 = vmatprep.subr.bf16.mxu0 0
      %5245 = vmatpush1.bf16.msra.mxu0 0
      %5246 = vmatprep.subr.bf16.mxu0 0
      %5247 = vmatpush1.bf16.msra.mxu0 0
      %5248 = vmatprep.subr.bf16.mxu0 0
      %5249 = vmatpush1.bf16.msra.mxu0 0
      %5250 = vmatprep.subr.bf16.mxu0 0
      %5251 = vmatpush1.bf16.msra.mxu0 0
      %5252 = vmatprep.subr.bf16.mxu0 0
      %5253 = vmatpush1.bf16.msra.mxu0 0
      %5254 = vmatprep.mubr.bf16.mxu0 0
      %5255 = vmatmul.mubr.bf16.gmra.mrb[0].mxu0 %v5220
      %v5256 = vpop.f32.mrb[0].mxu0
      %v5257 = vadd.f32 0.0, %v5256
      %v5258 = vpop.f32.mrb[0].mxu0
      %v5259 = vpop.f32.mrb[0].mxu0
      %v5260 = vpop.f32.mrb[0].mxu0
      %5261 = vdwg.mxu0
      %v5262 = vadd.f32 %v5092, %v5147
      %v5263 = vadd.f32 %v5262, %v5202
      %v5264 = vadd.f32 %v5263, %v5257
      %s5265 = scalar_lea.vmem %s5, 1
      %v5266 = vld [vmem:[%s5265] sm:$0x1]
      %v5268 = vlaneseq
      %v5269 = vshrl.u32 %v5268, 7
      %v5270 = vsub.s32 0, %v5269
      %v5271 = vrot.slane %v5266, %v5270
      %v5273 = vadd.f32 %v5264, %v5271
      %v5274 = vadd.f32 %v3253, %v5273
      %5275 = vadd.xlane.f32.xlu0 %v5274
      %v5276 = vpop.xlane.xlu0 %5275
      %v5277 = vmul.f32 %v5276, %v2552
      %v5278 = vsub.f32 %v5274, %v5277
      %v5279 = vmul.f32 %v5278, %v5278
      %5280 = vadd.xlane.f32.xlu0 %v5279
      %v5281 = vpop.xlane.xlu0 %5280
      %v5282 = vmul.f32 %v5281, %v2552
      %v5283 = vadd.f32 %v5282, 1e-05
      %v5284 = vrsqrt.pop %v5283
      %v5285 = vmul.f32 %v5278, %v5284
      %s5286 = scalar_lea.vmem %s10, 1
      %v5287 = vld [vmem:[%s5286] sm:$0x1]
      %v5289 = vlaneseq
      %v5290 = vshrl.u32 %v5289, 7
      %v5291 = vsub.s32 0, %v5290
      %v5292 = vrot.slane %v5287, %v5291
      %v5294 = vmul.f32 %v5285, %v5292
      %s5295 = scalar_lea.vmem %s11, 1
      %v5296 = vld [vmem:[%s5295] sm:$0x1]
      %v5298 = vlaneseq
      %v5299 = vshrl.u32 %v5298, 7
      %v5300 = vsub.s32 0, %v5299
      %v5301 = vrot.slane %v5296, %v5300
      %v5303 = vadd.f32 %v5294, %v5301
      %v5304 = vpack.c.bf16 %v5303, %v5303
      %s5305 = scalar_lea.vmem %s6, 256
      %v5306 = vld [vmem:[%s5305] sm:$0xff]
      %v5307 = vld [vmem:[%s5305 + $0x8] sm:$0xff]
      %v5308 = vld [vmem:[%s5305 + $0x10] sm:$0xff]
      %v5309 = vld [vmem:[%s5305 + $0x18] sm:$0xff]
      %v5310 = vld [vmem:[%s5305 + $0x20] sm:$0xff]
      %v5311 = vld [vmem:[%s5305 + $0x28] sm:$0xff]
      %v5312 = vld [vmem:[%s5305 + $0x30] sm:$0xff]
      %v5313 = vld [vmem:[%s5305 + $0x38] sm:$0xff]
      %v5314 = vld [vmem:[%s5305 + $0x40] sm:$0xff]
      %v5315 = vld [vmem:[%s5305 + $0x48] sm:$0xff]
      %v5316 = vld [vmem:[%s5305 + $0x50] sm:$0xff]
      %v5317 = vld [vmem:[%s5305 + $0x58] sm:$0xff]
      %v5318 = vld [vmem:[%s5305 + $0x60] sm:$0xff]
      %v5319 = vld [vmem:[%s5305 + $0x68] sm:$0xff]
      %v5320 = vld [vmem:[%s5305 + $0x70] sm:$0xff]
      %v5321 = vld [vmem:[%s5305 + $0x78] sm:$0xff]
      %v5322 = vld [vmem:[%s5305 + $0x80] sm:$0xff]
      %v5323 = vld [vmem:[%s5305 + $0x88] sm:$0xff]
      %v5324 = vld [vmem:[%s5305 + $0x90] sm:$0xff]
      %v5325 = vld [vmem:[%s5305 + $0x98] sm:$0xff]
      %v5326 = vld [vmem:[%s5305 + $0xa0] sm:$0xff]
      %v5327 = vld [vmem:[%s5305 + $0xa8] sm:$0xff]
      %v5328 = vld [vmem:[%s5305 + $0xb0] sm:$0xff]
      %v5329 = vld [vmem:[%s5305 + $0xb8] sm:$0xff]
      %v5330 = vld [vmem:[%s5305 + $0xc0] sm:$0xff]
      %v5331 = vld [vmem:[%s5305 + $0xc8] sm:$0xff]
      %v5332 = vld [vmem:[%s5305 + $0xd0] sm:$0xff]
      %v5333 = vld [vmem:[%s5305 + $0xd8] sm:$0xff]
      %v5334 = vld [vmem:[%s5305 + $0xe0] sm:$0xff]
      %v5335 = vld [vmem:[%s5305 + $0xe8] sm:$0xff]
      %v5336 = vld [vmem:[%s5305 + $0xf0] sm:$0xff]
      %v5337 = vld [vmem:[%s5305 + $0xf8] sm:$0xff]
      %s5338 = scalar_lea.vmem %s7, 4
      %v5339 = vld [vmem:[%s5338] sm:$0xf]
      %v5341 = vlaneseq
      %v5342 = vshrl.u32 %v5341, 7
      %v5343 = vsub.s32 0, %v5342
      %v5344 = vrot.slane %v5339, %v5343
      %v5345 = vlaneseq
      %v5346 = vshrl.u32 %v5345, 7
      %v5347 = vsub.s32 1, %v5346
      %v5348 = vrot.slane %v5339, %v5347
      %v5349 = vlaneseq
      %v5350 = vshrl.u32 %v5349, 7
      %v5351 = vsub.s32 2, %v5350
      %v5352 = vrot.slane %v5339, %v5351
      %v5353 = vlaneseq
      %v5354 = vshrl.u32 %v5353, 7
      %v5355 = vsub.s32 3, %v5354
      %v5356 = vrot.slane %v5339, %v5355
      %v5393 = vunpack.c.l.b16 %v5306
      %v5394 = vunpack.c.h.b16 %v5306
      %v5395 = vunpack.c.l.b16 %v5307
      %v5396 = vunpack.c.h.b16 %v5307
      %v5397 = vunpack.c.l.b16 %v5308
      %v5398 = vunpack.c.h.b16 %v5308
      %v5399 = vunpack.c.l.b16 %v5309
      %v5400 = vunpack.c.h.b16 %v5309
      %v5401 = vunpack.c.l.b16 %v5310
      %v5402 = vunpack.c.h.b16 %v5310
      %v5403 = vunpack.c.l.b16 %v5311
      %v5404 = vunpack.c.h.b16 %v5311
      %v5405 = vunpack.c.l.b16 %v5312
      %v5406 = vunpack.c.h.b16 %v5312
      %v5407 = vunpack.c.l.b16 %v5313
      %v5408 = vunpack.c.h.b16 %v5313
      %v5409 = vunpack.c.l.b16 %v5314
      %v5410 = vunpack.c.h.b16 %v5314
      %v5411 = vunpack.c.l.b16 %v5315
      %v5412 = vunpack.c.h.b16 %v5315
      %v5413 = vunpack.c.l.b16 %v5316
      %v5414 = vunpack.c.h.b16 %v5316
      %v5415 = vunpack.c.l.b16 %v5317
      %v5416 = vunpack.c.h.b16 %v5317
      %v5417 = vunpack.c.l.b16 %v5318
      %v5418 = vunpack.c.h.b16 %v5318
      %v5419 = vunpack.c.l.b16 %v5319
      %v5420 = vunpack.c.h.b16 %v5319
      %v5421 = vunpack.c.l.b16 %v5320
      %v5422 = vunpack.c.h.b16 %v5320
      %v5423 = vunpack.c.l.b16 %v5321
      %v5424 = vunpack.c.h.b16 %v5321
      %v5425 = vunpack.c.l.b16 %v5322
      %v5426 = vunpack.c.h.b16 %v5322
      %v5427 = vunpack.c.l.b16 %v5323
      %v5428 = vunpack.c.h.b16 %v5323
      %v5429 = vunpack.c.l.b16 %v5324
      %v5430 = vunpack.c.h.b16 %v5324
      %v5431 = vunpack.c.l.b16 %v5325
      %v5432 = vunpack.c.h.b16 %v5325
      %v5433 = vunpack.c.l.b16 %v5326
      %v5434 = vunpack.c.h.b16 %v5326
      %v5435 = vunpack.c.l.b16 %v5327
      %v5436 = vunpack.c.h.b16 %v5327
      %v5437 = vunpack.c.l.b16 %v5328
      %v5438 = vunpack.c.h.b16 %v5328
      %v5439 = vunpack.c.l.b16 %v5329
      %v5440 = vunpack.c.h.b16 %v5329
      %v5441 = vunpack.c.l.b16 %v5330
      %v5442 = vunpack.c.h.b16 %v5330
      %v5443 = vunpack.c.l.b16 %v5331
      %v5444 = vunpack.c.h.b16 %v5331
      %v5445 = vunpack.c.l.b16 %v5332
      %v5446 = vunpack.c.h.b16 %v5332
      %v5447 = vunpack.c.l.b16 %v5333
      %v5448 = vunpack.c.h.b16 %v5333
      %v5449 = vunpack.c.l.b16 %v5334
      %v5450 = vunpack.c.h.b16 %v5334
      %v5451 = vunpack.c.l.b16 %v5335
      %v5452 = vunpack.c.h.b16 %v5335
      %v5453 = vunpack.c.l.b16 %v5336
      %v5454 = vunpack.c.h.b16 %v5336
      %v5455 = vunpack.c.l.b16 %v5337
      %v5456 = vunpack.c.h.b16 %v5337
      %v5457 = vpack.c.b16 %v5397, %v5393
      %v5458 = vpack.c.b16 %v5398, %v5394
      %v5459 = vpack.c.b16 %v5399, %v5395
      %v5460 = vpack.c.b16 %v5400, %v5396
      %v5461 = vpack.c.b16 %v5405, %v5401
      %v5462 = vpack.c.b16 %v5406, %v5402
      %v5463 = vpack.c.b16 %v5407, %v5403
      %v5464 = vpack.c.b16 %v5408, %v5404
      %v5465 = vpack.c.b16 %v5413, %v5409
      %v5466 = vpack.c.b16 %v5414, %v5410
      %v5467 = vpack.c.b16 %v5415, %v5411
      %v5468 = vpack.c.b16 %v5416, %v5412
      %v5469 = vpack.c.b16 %v5421, %v5417
      %v5470 = vpack.c.b16 %v5422, %v5418
      %v5471 = vpack.c.b16 %v5423, %v5419
      %v5472 = vpack.c.b16 %v5424, %v5420
      %v5473 = vpack.c.b16 %v5429, %v5425
      %v5474 = vpack.c.b16 %v5430, %v5426
      %v5475 = vpack.c.b16 %v5431, %v5427
      %v5476 = vpack.c.b16 %v5432, %v5428
      %v5477 = vpack.c.b16 %v5437, %v5433
      %v5478 = vpack.c.b16 %v5438, %v5434
      %v5479 = vpack.c.b16 %v5439, %v5435
      %v5480 = vpack.c.b16 %v5440, %v5436
      %v5481 = vpack.c.b16 %v5445, %v5441
      %v5482 = vpack.c.b16 %v5446, %v5442
      %v5483 = vpack.c.b16 %v5447, %v5443
      %v5484 = vpack.c.b16 %v5448, %v5444
      %v5485 = vpack.c.b16 %v5453, %v5449
      %v5486 = vpack.c.b16 %v5454, %v5450
      %v5487 = vpack.c.b16 %v5455, %v5451
      %v5488 = vpack.c.b16 %v5456, %v5452
      %5521 = vmatprep.subr.bf16.mxu0 %v5458
      %5522 = vmatpush1.bf16.msra.mxu0 %v5457
      %5523 = vmatprep.subr.bf16.mxu0 %v5462
      %5524 = vmatpush1.bf16.msra.mxu0 %v5461
      %5525 = vmatprep.subr.bf16.mxu0 %v5466
      %5526 = vmatpush1.bf16.msra.mxu0 %v5465
      %5527 = vmatprep.subr.bf16.mxu0 %v5470
      %5528 = vmatpush1.bf16.msra.mxu0 %v5469
      %5529 = vmatprep.subr.bf16.mxu0 %v5474
      %5530 = vmatpush1.bf16.msra.mxu0 %v5473
      %5531 = vmatprep.subr.bf16.mxu0 %v5478
      %5532 = vmatpush1.bf16.msra.mxu0 %v5477
      %5533 = vmatprep.subr.bf16.mxu0 %v5482
      %5534 = vmatpush1.bf16.msra.mxu0 %v5481
      %5535 = vmatprep.subr.bf16.mxu0 %v5486
      %5536 = vmatpush1.bf16.msra.mxu0 %v5485
      %5537 = vmatprep.subr.bf16.mxu0 0
      %5538 = vmatpush1.bf16.msra.mxu0 0
      %5539 = vmatprep.subr.bf16.mxu0 0
      %5540 = vmatpush1.bf16.msra.mxu0 0
      %5541 = vmatprep.subr.bf16.mxu0 0
      %5542 = vmatpush1.bf16.msra.mxu0 0
      %5543 = vmatprep.subr.bf16.mxu0 0
      %5544 = vmatpush1.bf16.msra.mxu0 0
      %5545 = vmatprep.subr.bf16.mxu0 0
      %5546 = vmatpush1.bf16.msra.mxu0 0
      %5547 = vmatprep.subr.bf16.mxu0 0
      %5548 = vmatpush1.bf16.msra.mxu0 0
      %5549 = vmatprep.subr.bf16.mxu0 0
      %5550 = vmatpush1.bf16.msra.mxu0 0
      %5551 = vmatprep.subr.bf16.mxu0 0
      %5552 = vmatpush1.bf16.msra.mxu0 0
      %5553 = vmatprep.mubr.bf16.mxu0 0
      %5554 = vmatmul.mubr.bf16.gmra.mrb[0].mxu0 %v5304
      %v5555 = vpop.f32.mrb[0].mxu0
      %v5556 = vadd.f32 %v5344, %v5555
      %v5557 = vpop.f32.mrb[0].mxu0
      %v5558 = vadd.f32 %v5348, %v5557
      %v5559 = vpop.f32.mrb[0].mxu0
      %v5560 = vpop.f32.mrb[0].mxu0
      %5561 = vdwg.mxu0
      %5562 = vmatprep.subr.bf16.mxu0 %v5460
      %5563 = vmatpush1.bf16.msra.mxu0 %v5459
      %5564 = vmatprep.subr.bf16.mxu0 %v5464
      %5565 = vmatpush1.bf16.msra.mxu0 %v5463
      %5566 = vmatprep.subr.bf16.mxu0 %v5468
      %5567 = vmatpush1.bf16.msra.mxu0 %v5467
      %5568 = vmatprep.subr.bf16.mxu0 %v5472
      %5569 = vmatpush1.bf16.msra.mxu0 %v5471
      %5570 = vmatprep.subr.bf16.mxu0 %v5476
      %5571 = vmatpush1.bf16.msra.mxu0 %v5475
      %5572 = vmatprep.subr.bf16.mxu0 %v5480
      %5573 = vmatpush1.bf16.msra.mxu0 %v5479
      %5574 = vmatprep.subr.bf16.mxu0 %v5484
      %5575 = vmatpush1.bf16.msra.mxu0 %v5483
      %5576 = vmatprep.subr.bf16.mxu0 %v5488
      %5577 = vmatpush1.bf16.msra.mxu0 %v5487
      %5578 = vmatprep.subr.bf16.mxu0 0
      %5579 = vmatpush1.bf16.msra.mxu0 0
      %5580 = vmatprep.subr.bf16.mxu0 0
      %5581 = vmatpush1.bf16.msra.mxu0 0
      %5582 = vmatprep.subr.bf16.mxu0 0
      %5583 = vmatpush1.bf16.msra.mxu0 0
      %5584 = vmatprep.subr.bf16.mxu0 0
      %5585 = vmatpush1.bf16.msra.mxu0 0
      %5586 = vmatprep.subr.bf16.mxu0 0
      %5587 = vmatpush1.bf16.msra.mxu0 0
      %5588 = vmatprep.subr.bf16.mxu0 0
      %5589 = vmatpush1.bf16.msra.mxu0 0
      %5590 = vmatprep.subr.bf16.mxu0 0
      %5591 = vmatpush1.bf16.msra.mxu0 0
      %5592 = vmatprep.subr.bf16.mxu0 0
      %5593 = vmatpush1.bf16.msra.mxu0 0
      %5594 = vmatprep.mubr.bf16.mxu0 0
      %5595 = vmatmul.mubr.bf16.gmra.mrb[0].mxu0 %v5304
      %v5596 = vpop.f32.mrb[0].mxu0
      %v5597 = vadd.f32 %v5352, %v5596
      %v5598 = vpop.f32.mrb[0].mxu0
      %v5599 = vadd.f32 %v5356, %v5598
      %v5600 = vpop.f32.mrb[0].mxu0
      %v5601 = vpop.f32.mrb[0].mxu0
      %5602 = vdwg.mxu0
      %v5603 = vmax.f32 %v5556, 0.0
      %v5604 = vmax.f32 %v5558, 0.0
      %v5605 = vmax.f32 %v5597, 0.0
      %v5606 = vmax.f32 %v5599, 0.0
      %v5607 = vpack.c.bf16 %v5603, %v5603
      %v5608 = vpack.c.bf16 %v5604, %v5604
      %v5609 = vpack.c.bf16 %v5605, %v5605
      %v5610 = vpack.c.bf16 %v5606, %v5606
      %s5611 = scalar_lea.vmem %s8, 256
      %v5612 = vld [vmem:[%s5611] sm:$0xf]
      %v5613 = vld [vmem:[%s5611 + $0x4] sm:$0xf]
      %v5614 = vld [vmem:[%s5611 + $0x8] sm:$0xf]
      %v5615 = vld [vmem:[%s5611 + $0xc] sm:$0xf]
      %v5616 = vld [vmem:[%s5611 + $0x10] sm:$0xf]
      %v5617 = vld [vmem:[%s5611 + $0x14] sm:$0xf]
      %v5618 = vld [vmem:[%s5611 + $0x18] sm:$0xf]
      %v5619 = vld [vmem:[%s5611 + $0x1c] sm:$0xf]
      %v5620 = vld [vmem:[%s5611 + $0x20] sm:$0xf]
      %v5621 = vld [vmem:[%s5611 + $0x24] sm:$0xf]
      %v5622 = vld [vmem:[%s5611 + $0x28] sm:$0xf]
      %v5623 = vld [vmem:[%s5611 + $0x2c] sm:$0xf]
      %v5624 = vld [vmem:[%s5611 + $0x30] sm:$0xf]
      %v5625 = vld [vmem:[%s5611 + $0x34] sm:$0xf]
      %v5626 = vld [vmem:[%s5611 + $0x38] sm:$0xf]
      %v5627 = vld [vmem:[%s5611 + $0x3c] sm:$0xf]
      %v5628 = vld [vmem:[%s5611 + $0x40] sm:$0xf]
      %v5629 = vld [vmem:[%s5611 + $0x44] sm:$0xf]
      %v5630 = vld [vmem:[%s5611 + $0x48] sm:$0xf]
      %v5631 = vld [vmem:[%s5611 + $0x4c] sm:$0xf]
      %v5632 = vld [vmem:[%s5611 + $0x50] sm:$0xf]
      %v5633 = vld [vmem:[%s5611 + $0x54] sm:$0xf]
      %v5634 = vld [vmem:[%s5611 + $0x58] sm:$0xf]
      %v5635 = vld [vmem:[%s5611 + $0x5c] sm:$0xf]
      %v5636 = vld [vmem:[%s5611 + $0x60] sm:$0xf]
      %v5637 = vld [vmem:[%s5611 + $0x64] sm:$0xf]
      %v5638 = vld [vmem:[%s5611 + $0x68] sm:$0xf]
      %v5639 = vld [vmem:[%s5611 + $0x6c] sm:$0xf]
      %v5640 = vld [vmem:[%s5611 + $0x70] sm:$0xf]
      %v5641 = vld [vmem:[%s5611 + $0x74] sm:$0xf]
      %v5642 = vld [vmem:[%s5611 + $0x78] sm:$0xf]
      %v5643 = vld [vmem:[%s5611 + $0x7c] sm:$0xf]
      %v5644 = vld [vmem:[%s5611 + $0x80] sm:$0xf]
      %v5645 = vld [vmem:[%s5611 + $0x84] sm:$0xf]
      %v5646 = vld [vmem:[%s5611 + $0x88] sm:$0xf]
      %v5647 = vld [vmem:[%s5611 + $0x8c] sm:$0xf]
      %v5648 = vld [vmem:[%s5611 + $0x90] sm:$0xf]
      %v5649 = vld [vmem:[%s5611 + $0x94] sm:$0xf]
      %v5650 = vld [vmem:[%s5611 + $0x98] sm:$0xf]
      %v5651 = vld [vmem:[%s5611 + $0x9c] sm:$0xf]
      %v5652 = vld [vmem:[%s5611 + $0xa0] sm:$0xf]
      %v5653 = vld [vmem:[%s5611 + $0xa4] sm:$0xf]
      %v5654 = vld [vmem:[%s5611 + $0xa8] sm:$0xf]
      %v5655 = vld [vmem:[%s5611 + $0xac] sm:$0xf]
      %v5656 = vld [vmem:[%s5611 + $0xb0] sm:$0xf]
      %v5657 = vld [vmem:[%s5611 + $0xb4] sm:$0xf]
      %v5658 = vld [vmem:[%s5611 + $0xb8] sm:$0xf]
      %v5659 = vld [vmem:[%s5611 + $0xbc] sm:$0xf]
      %v5660 = vld [vmem:[%s5611 + $0xc0] sm:$0xf]
      %v5661 = vld [vmem:[%s5611 + $0xc4] sm:$0xf]
      %v5662 = vld [vmem:[%s5611 + $0xc8] sm:$0xf]
      %v5663 = vld [vmem:[%s5611 + $0xcc] sm:$0xf]
      %v5664 = vld [vmem:[%s5611 + $0xd0] sm:$0xf]
      %v5665 = vld [vmem:[%s5611 + $0xd4] sm:$0xf]
      %v5666 = vld [vmem:[%s5611 + $0xd8] sm:$0xf]
      %v5667 = vld [vmem:[%s5611 + $0xdc] sm:$0xf]
      %v5668 = vld [vmem:[%s5611 + $0xe0] sm:$0xf]
      %v5669 = vld [vmem:[%s5611 + $0xe4] sm:$0xf]
      %v5670 = vld [vmem:[%s5611 + $0xe8] sm:$0xf]
      %v5671 = vld [vmem:[%s5611 + $0xec] sm:$0xf]
      %v5672 = vld [vmem:[%s5611 + $0xf0] sm:$0xf]
      %v5673 = vld [vmem:[%s5611 + $0xf4] sm:$0xf]
      %v5674 = vld [vmem:[%s5611 + $0xf8] sm:$0xf]
      %v5675 = vld [vmem:[%s5611 + $0xfc] sm:$0xf]
      %s5676 = scalar_lea.vmem %s9, 1
      %v5677 = vld [vmem:[%s5676] sm:$0x1]
      %v5679 = vlaneseq
      %v5680 = vshrl.u32 %v5679, 7
      %v5681 = vsub.s32 0, %v5680
      %v5682 = vrot.slane %v5677, %v5681
      %v5748 = vunpack.c.l.b16 %v5612
      %v5749 = vunpack.c.l.b16 %v5613
      %v5750 = vunpack.c.l.b16 %v5614
      %v5751 = vunpack.c.l.b16 %v5615
      %v5752 = vunpack.c.l.b16 %v5616
      %v5753 = vunpack.c.l.b16 %v5617
      %v5754 = vunpack.c.l.b16 %v5618
      %v5755 = vunpack.c.l.b16 %v5619
      %v5756 = vunpack.c.l.b16 %v5620
      %v5757 = vunpack.c.l.b16 %v5621
      %v5758 = vunpack.c.l.b16 %v5622
      %v5759 = vunpack.c.l.b16 %v5623
      %v5760 = vunpack.c.l.b16 %v5624
      %v5761 = vunpack.c.l.b16 %v5625
      %v5762 = vunpack.c.l.b16 %v5626
      %v5763 = vunpack.c.l.b16 %v5627
      %v5764 = vunpack.c.l.b16 %v5628
      %v5765 = vunpack.c.l.b16 %v5629
      %v5766 = vunpack.c.l.b16 %v5630
      %v5767 = vunpack.c.l.b16 %v5631
      %v5768 = vunpack.c.l.b16 %v5632
      %v5769 = vunpack.c.l.b16 %v5633
      %v5770 = vunpack.c.l.b16 %v5634
      %v5771 = vunpack.c.l.b16 %v5635
      %v5772 = vunpack.c.l.b16 %v5636
      %v5773 = vunpack.c.l.b16 %v5637
      %v5774 = vunpack.c.l.b16 %v5638
      %v5775 = vunpack.c.l.b16 %v5639
      %v5776 = vunpack.c.l.b16 %v5640
      %v5777 = vunpack.c.l.b16 %v5641
      %v5778 = vunpack.c.l.b16 %v5642
      %v5779 = vunpack.c.l.b16 %v5643
      %v5780 = vunpack.c.l.b16 %v5644
      %v5781 = vunpack.c.l.b16 %v5645
      %v5782 = vunpack.c.l.b16 %v5646
      %v5783 = vunpack.c.l.b16 %v5647
      %v5784 = vunpack.c.l.b16 %v5648
      %v5785 = vunpack.c.l.b16 %v5649
      %v5786 = vunpack.c.l.b16 %v5650
      %v5787 = vunpack.c.l.b16 %v5651
      %v5788 = vunpack.c.l.b16 %v5652
      %v5789 = vunpack.c.l.b16 %v5653
      %v5790 = vunpack.c.l.b16 %v5654
      %v5791 = vunpack.c.l.b16 %v5655
      %v5792 = vunpack.c.l.b16 %v5656
      %v5793 = vunpack.c.l.b16 %v5657
      %v5794 = vunpack.c.l.b16 %v5658
      %v5795 = vunpack.c.l.b16 %v5659
      %v5796 = vunpack.c.l.b16 %v5660
      %v5797 = vunpack.c.l.b16 %v5661
      %v5798 = vunpack.c.l.b16 %v5662
      %v5799 = vunpack.c.l.b16 %v5663
      %v5800 = vunpack.c.l.b16 %v5664
      %v5801 = vunpack.c.l.b16 %v5665
      %v5802 = vunpack.c.l.b16 %v5666
      %v5803 = vunpack.c.l.b16 %v5667
      %v5804 = vunpack.c.l.b16 %v5668
      %v5805 = vunpack.c.l.b16 %v5669
      %v5806 = vunpack.c.l.b16 %v5670
      %v5807 = vunpack.c.l.b16 %v5671
      %v5808 = vunpack.c.l.b16 %v5672
      %v5809 = vunpack.c.l.b16 %v5673
      %v5810 = vunpack.c.l.b16 %v5674
      %v5811 = vunpack.c.l.b16 %v5675
      %v5812 = vpack.c.b16 %v5749, %v5748
      %v5813 = vpack.c.b16 %v5751, %v5750
      %v5814 = vpack.c.b16 %v5753, %v5752
      %v5815 = vpack.c.b16 %v5755, %v5754
      %v5816 = vpack.c.b16 %v5757, %v5756
      %v5817 = vpack.c.b16 %v5759, %v5758
      %v5818 = vpack.c.b16 %v5761, %v5760
      %v5819 = vpack.c.b16 %v5763, %v5762
      %v5820 = vpack.c.b16 %v5765, %v5764
      %v5821 = vpack.c.b16 %v5767, %v5766
      %v5822 = vpack.c.b16 %v5769, %v5768
      %v5823 = vpack.c.b16 %v5771, %v5770
      %v5824 = vpack.c.b16 %v5773, %v5772
      %v5825 = vpack.c.b16 %v5775, %v5774
      %v5826 = vpack.c.b16 %v5777, %v5776
      %v5827 = vpack.c.b16 %v5779, %v5778
      %v5828 = vpack.c.b16 %v5781, %v5780
      %v5829 = vpack.c.b16 %v5783, %v5782
      %v5830 = vpack.c.b16 %v5785, %v5784
      %v5831 = vpack.c.b16 %v5787, %v5786
      %v5832 = vpack.c.b16 %v5789, %v5788
      %v5833 = vpack.c.b16 %v5791, %v5790
      %v5834 = vpack.c.b16 %v5793, %v5792
      %v5835 = vpack.c.b16 %v5795, %v5794
      %v5836 = vpack.c.b16 %v5797, %v5796
      %v5837 = vpack.c.b16 %v5799, %v5798
      %v5838 = vpack.c.b16 %v5801, %v5800
      %v5839 = vpack.c.b16 %v5803, %v5802
      %v5840 = vpack.c.b16 %v5805, %v5804
      %v5841 = vpack.c.b16 %v5807, %v5806
      %v5842 = vpack.c.b16 %v5809, %v5808
      %v5843 = vpack.c.b16 %v5811, %v5810
      %5876 = vmatprep.subr.bf16.mxu0 0
      %5877 = vmatpush1.bf16.msra.mxu0 %v5812
      %5878 = vmatprep.subr.bf16.mxu0 0
      %5879 = vmatpush1.bf16.msra.mxu0 %v5813
      %5880 = vmatprep.subr.bf16.mxu0 0
      %5881 = vmatpush1.bf16.msra.mxu0 %v5814
      %5882 = vmatprep.subr.bf16.mxu0 0
      %5883 = vmatpush1.bf16.msra.mxu0 %v5815
      %5884 = vmatprep.subr.bf16.mxu0 0
      %5885 = vmatpush1.bf16.msra.mxu0 %v5816
      %5886 = vmatprep.subr.bf16.mxu0 0
      %5887 = vmatpush1.bf16.msra.mxu0 %v5817
      %5888 = vmatprep.subr.bf16.mxu0 0
      %5889 = vmatpush1.bf16.msra.mxu0 %v5818
      %5890 = vmatprep.subr.bf16.mxu0 0
      %5891 = vmatpush1.bf16.msra.mxu0 %v5819
      %5892 = vmatprep.subr.bf16.mxu0 0
      %5893 = vmatpush1.bf16.msra.mxu0 %v5820
      %5894 = vmatprep.subr.bf16.mxu0 0
      %5895 = vmatpush1.bf16.msra.mxu0 %v5821
      %5896 = vmatprep.subr.bf16.mxu0 0
      %5897 = vmatpush1.bf16.msra.mxu0 %v5822
      %5898 = vmatprep.subr.bf16.mxu0 0
      %5899 = vmatpush1.bf16.msra.mxu0 %v5823
      %5900 = vmatprep.subr.bf16.mxu0 0
      %5901 = vmatpush1.bf16.msra.mxu0 %v5824
      %5902 = vmatprep.subr.bf16.mxu0 0
      %5903 = vmatpush1.bf16.msra.mxu0 %v5825
      %5904 = vmatprep.subr.bf16.mxu0 0
      %5905 = vmatpush1.bf16.msra.mxu0 %v5826
      %5906 = vmatprep.subr.bf16.mxu0 0
      %5907 = vmatpush1.bf16.msra.mxu0 %v5827
      %5908 = vmatprep.mubr.bf16.mxu0 %v5608
      %5909 = vmatmul.mubr.bf16.gmra.mrb[0].mxu0 %v5607
      %v5910 = vpop.f32.mrb[0].mxu0
      %v5911 = vadd.f32 %v5682, %v5910
      %v5912 = vpop.f32.mrb[0].mxu0
      %v5913 = vpop.f32.mrb[0].mxu0
      %v5914 = vpop.f32.mrb[0].mxu0
      %5915 = vdwg.mxu0
      %5916 = vmatprep.subr.bf16.mxu0 0
      %5917 = vmatpush1.bf16.msra.mxu0 %v5828
      %5918 = vmatprep.subr.bf16.mxu0 0
      %5919 = vmatpush1.bf16.msra.mxu0 %v5829
      %5920 = vmatprep.subr.bf16.mxu0 0
      %5921 = vmatpush1.bf16.msra.mxu0 %v5830
      %5922 = vmatprep.subr.bf16.mxu0 0
      %5923 = vmatpush1.bf16.msra.mxu0 %v5831
      %5924 = vmatprep.subr.bf16.mxu0 0
      %5925 = vmatpush1.bf16.msra.mxu0 %v5832
      %5926 = vmatprep.subr.bf16.mxu0 0
      %5927 = vmatpush1.bf16.msra.mxu0 %v5833
      %5928 = vmatprep.subr.bf16.mxu0 0
      %5929 = vmatpush1.bf16.msra.mxu0 %v5834
      %5930 = vmatprep.subr.bf16.mxu0 0
      %5931 = vmatpush1.bf16.msra.mxu0 %v5835
      %5932 = vmatprep.subr.bf16.mxu0 0
      %5933 = vmatpush1.bf16.msra.mxu0 %v5836
      %5934 = vmatprep.subr.bf16.mxu0 0
      %5935 = vmatpush1.bf16.msra.mxu0 %v5837
      %5936 = vmatprep.subr.bf16.mxu0 0
      %5937 = vmatpush1.bf16.msra.mxu0 %v5838
      %5938 = vmatprep.subr.bf16.mxu0 0
      %5939 = vmatpush1.bf16.msra.mxu0 %v5839
      %5940 = vmatprep.subr.bf16.mxu0 0
      %5941 = vmatpush1.bf16.msra.mxu0 %v5840
      %5942 = vmatprep.subr.bf16.mxu0 0
      %5943 = vmatpush1.bf16.msra.mxu0 %v5841
      %5944 = vmatprep.subr.bf16.mxu0 0
      %5945 = vmatpush1.bf16.msra.mxu0 %v5842
      %5946 = vmatprep.subr.bf16.mxu0 0
      %5947 = vmatpush1.bf16.msra.mxu0 %v5843
      %5948 = vmatprep.mubr.bf16.mxu0 %v5610
      %5949 = vmatmul.mubr.bf16.gmra.mrb[0].mxu0 %v5609
      %v5950 = vpop.f32.mrb[0].mxu0
      %v5951 = vadd.f32 %v5911, %v5950
      %v5952 = vpop.f32.mrb[0].mxu0
      %v5953 = vpop.f32.mrb[0].mxu0
      %v5954 = vpop.f32.mrb[0].mxu0
      %5955 = vdwg.mxu0
      %v5956 = vadd.f32 %v5303, %v5951
      %5957 = vadd.xlane.f32.xlu0 %v5956
      %v5958 = vpop.xlane.xlu0 %5957
      %v5959 = vmul.f32 %v5958, %v2552
      %v5960 = vsub.f32 %v5956, %v5959
      %v5961 = vmul.f32 %v5960, %v5960
      %5962 = vadd.xlane.f32.xlu0 %v5961
      %v5963 = vpop.xlane.xlu0 %5962
      %v5964 = vmul.f32 %v5963, %v2552
      %v5965 = vadd.f32 %v5964, 1e-05
      %v5966 = vrsqrt.pop %v5965
      %v5967 = vmul.f32 %v5960, %v5966
      %s5968 = scalar_lea.vmem %s12, 1
      %v5969 = vld [vmem:[%s5968] sm:$0x1]
      %v5971 = vlaneseq
      %v5972 = vshrl.u32 %v5971, 7
      %v5973 = vsub.s32 0, %v5972
      %v5974 = vrot.slane %v5969, %v5973
      %v5976 = vmul.f32 %v5967, %v5974
      %s5977 = scalar_lea.vmem %s13, 1
      %v5978 = vld [vmem:[%s5977] sm:$0x1]
      %v5980 = vlaneseq
      %v5981 = vshrl.u32 %v5980, 7
      %v5982 = vsub.s32 0, %v5981
      %v5983 = vrot.slane %v5978, %v5982
      %v5985 = vadd.f32 %v5976, %v5983
      %v5986 = vpack.c.bf16 %v5985, %v5985
      %v5987 = vld [vmem:[%s14] sm:$0xff]
      %v5988 = vld [vmem:[%s14 + $0x8] sm:$0xff]
      %v5989 = vld [vmem:[%s14 + $0x10] sm:$0xff]
      %v5990 = vld [vmem:[%s14 + $0x18] sm:$0xff]
      %v5991 = vld [vmem:[%s14 + $0x20] sm:$0xff]
      %v5992 = vld [vmem:[%s14 + $0x28] sm:$0xff]
      %v5993 = vld [vmem:[%s14 + $0x30] sm:$0xff]
      %v5994 = vld [vmem:[%s14 + $0x38] sm:$0xff]
      %v5995 = vld [vmem:[%s14 + $0x40] sm:$0xff]
      %v5996 = vld [vmem:[%s14 + $0x48] sm:$0xff]
      %v5997 = vld [vmem:[%s14 + $0x50] sm:$0xff]
      %v5998 = vld [vmem:[%s14 + $0x58] sm:$0xff]
      %v5999 = vld [vmem:[%s14 + $0x60] sm:$0xff]
      %v6000 = vld [vmem:[%s14 + $0x68] sm:$0xff]
      %v6001 = vld [vmem:[%s14 + $0x70] sm:$0xff]
      %v6002 = vld [vmem:[%s14 + $0x78] sm:$0xff]
      %v6003 = vld [vmem:[%s15] sm:$0x3]
      %v6005 = vlaneseq
      %v6006 = vshrl.u32 %v6005, 7
      %v6007 = vsub.s32 0, %v6006
      %v6008 = vrot.slane %v6003, %v6007
      %v6009 = vlaneseq
      %v6010 = vshrl.u32 %v6009, 7
      %v6011 = vsub.s32 1, %v6010
      %v6012 = vrot.slane %v6003, %v6011
      %v6016 = vshrl.u32 %v5986, 16
      %v6018 = vrot.slane %v6016, 1
      %v6019 = vshll.u32 %v5986, 16
      %v6021 = vrot.slane %v6019, 2
      %v6022 = vor.u32 %v6018, %v6021
      %v6040 = vunpack.c.l.b16 %v5987
      %v6041 = vunpack.c.h.b16 %v5987
      %v6042 = vunpack.c.l.b16 %v5988
      %v6043 = vunpack.c.h.b16 %v5988
      %v6044 = vunpack.c.l.b16 %v5989
      %v6045 = vunpack.c.h.b16 %v5989
      %v6046 = vunpack.c.l.b16 %v5990
      %v6047 = vunpack.c.h.b16 %v5990
      %v6048 = vunpack.c.l.b16 %v5991
      %v6049 = vunpack.c.h.b16 %v5991
      %v6050 = vunpack.c.l.b16 %v5992
      %v6051 = vunpack.c.h.b16 %v5992
      %v6052 = vunpack.c.l.b16 %v5993
      %v6053 = vunpack.c.h.b16 %v5993
      %v6054 = vunpack.c.l.b16 %v5994
      %v6055 = vunpack.c.h.b16 %v5994
      %v6056 = vunpack.c.l.b16 %v5995
      %v6057 = vunpack.c.h.b16 %v5995
      %v6058 = vunpack.c.l.b16 %v5996
      %v6059 = vunpack.c.h.b16 %v5996
      %v6060 = vunpack.c.l.b16 %v5997
      %v6061 = vunpack.c.h.b16 %v5997
      %v6062 = vunpack.c.l.b16 %v5998
      %v6063 = vunpack.c.h.b16 %v5998
      %v6064 = vunpack.c.l.b16 %v5999
      %v6065 = vunpack.c.h.b16 %v5999
      %v6066 = vunpack.c.l.b16 %v6000
      %v6067 = vunpack.c.h.b16 %v6000
      %v6068 = vunpack.c.l.b16 %v6001
      %v6069 = vunpack.c.h.b16 %v6001
      %v6070 = vunpack.c.l.b16 %v6002
      %v6071 = vunpack.c.h.b16 %v6002
      %v6072 = vpack.c.b16 %v6042, %v6040
      %v6073 = vpack.c.b16 %v6043, %v6041
      %v6074 = vpack.c.b16 %v6046, %v6044
      %v6075 = vpack.c.b16 %v6047, %v6045
      %v6076 = vpack.c.b16 %v6050, %v6048
      %v6077 = vpack.c.b16 %v6051, %v6049
      %v6078 = vpack.c.b16 %v6054, %v6052
      %v6079 = vpack.c.b16 %v6055, %v6053
      %v6080 = vpack.c.b16 %v6058, %v6056
      %v6081 = vpack.c.b16 %v6059, %v6057
      %v6082 = vpack.c.b16 %v6062, %v6060
      %v6083 = vpack.c.b16 %v6063, %v6061
      %v6084 = vpack.c.b16 %v6066, %v6064
      %v6085 = vpack.c.b16 %v6067, %v6065
      %v6086 = vpack.c.b16 %v6070, %v6068
      %v6087 = vpack.c.b16 %v6071, %v6069
      %6104 = vmatprep.subr.bf16.mxu0 %v6073
      %6105 = vmatpush1.bf16.msra.mxu0 %v6072
      %6106 = vmatprep.subr.bf16.mxu0 %v6075
      %6107 = vmatpush1.bf16.msra.mxu0 %v6074
      %6108 = vmatprep.subr.bf16.mxu0 %v6077
      %6109 = vmatpush1.bf16.msra.mxu0 %v6076
      %6110 = vmatprep.subr.bf16.mxu0 %v6079
      %6111 = vmatpush1.bf16.msra.mxu0 %v6078
      %6112 = vmatprep.subr.bf16.mxu0 %v6081
      %6113 = vmatpush1.bf16.msra.mxu0 %v6080
      %6114 = vmatprep.subr.bf16.mxu0 %v6083
      %6115 = vmatpush1.bf16.msra.mxu0 %v6082
      %6116 = vmatprep.subr.bf16.mxu0 %v6085
      %6117 = vmatpush1.bf16.msra.mxu0 %v6084
      %6118 = vmatprep.subr.bf16.mxu0 %v6087
      %6119 = vmatpush1.bf16.msra.mxu0 %v6086
      %6120 = vmatprep.subr.bf16.mxu0 0
      %6121 = vmatpush1.bf16.msra.mxu0 0
      %6122 = vmatprep.subr.bf16.mxu0 0
      %6123 = vmatpush1.bf16.msra.mxu0 0
      %6124 = vmatprep.subr.bf16.mxu0 0
      %6125 = vmatpush1.bf16.msra.mxu0 0
      %6126 = vmatprep.subr.bf16.mxu0 0
      %6127 = vmatpush1.bf16.msra.mxu0 0
      %6128 = vmatprep.subr.bf16.mxu0 0
      %6129 = vmatpush1.bf16.msra.mxu0 0
      %6130 = vmatprep.subr.bf16.mxu0 0
      %6131 = vmatpush1.bf16.msra.mxu0 0
      %6132 = vmatprep.subr.bf16.mxu0 0
      %6133 = vmatpush1.bf16.msra.mxu0 0
      %6134 = vmatprep.subr.bf16.mxu0 0
      %6135 = vmatpush1.bf16.msra.mxu0 0
      %6136 = vmatprep.mubr.bf16.mxu0 0
      %6137 = vmatmul.mubr.bf16.gmra.mrb[0].mxu0 %v6022
      %v6138 = vpop.f32.mrb[0].mxu0
      %v6139 = vadd.f32 %v6008, %v6138
      %v6140 = vpop.f32.mrb[0].mxu0
      %v6141 = vadd.f32 %v6012, %v6140
      %v6142 = vpop.f32.mrb[0].mxu0
      %v6143 = vpop.f32.mrb[0].mxu0
      %6144 = vdwg.mxu0
      %6145 = vst [vmem:[%s518] sm:$0x1f] %v6139
      %6146 = vst [vmem:[%s518 + $0x8] sm:$0x1f] %v6141
      %p6147 = scmp.lt.s32.totalorder %s27, 1
      %s6148 = scalar_select %p6147, %s27, 1
      %s6149 = smul.addr %s6148, 2
      %s6150 = smul.addr %s6149, 8
      %s6151 = scalar_lea.vmem %s16, %s6150
      // Predicated region
      $region85: #{_lambda_.1} parent=83 // pred_check
        %p6152 = pneg %p386
      $region86: #{_lambda_.1} parent=83 // pred_check_branch
        %6154 = sbr.rel (%p6152) target = $region88
      $region87: #{_lambda_.1} parent=83 // pred_region
        _
      $region88: #{_lambda_.1} parent=83 // pred_fallthru
        _
    $region84: #{_lambda_.1} parent=5 // pred_fallthru
      _
    %p6155 = scmp.le.s32.totalorder 2, %s22
    // Predicated region
    $region89: #{_lambda_.1} parent=5 // pred_check
      %p6156 = pneg %p6155
    $region90: #{_lambda_.1} parent=5 // pred_check_branch
      %6158 = sbr.rel (%p6156) target = $region92
    $region91: #{_lambda_.1} parent=5 // pred_region
      %s6159 = ssub.s32 %s22, 2
      // Predicated region
      $region93: #{_lambda_.1} parent=91 // pred_check
        %p6160 = pneg %p392
      $region94: #{_lambda_.1} parent=91 // pred_check_branch
        %6162 = sbr.rel (%p6160) target = $region96
      $region95: #{_lambda_.1} parent=91 // pred_region
        %p6163 = scmp.lt.s32.totalorder %s28, 1
        %s6164 = scalar_select %p6163, %s28, 1
        %s6165 = smul.addr %s6164, 2
        %s6166 = smul.addr %s6165, 8
        %s6167 = scalar_lea.vmem %s16, %s6166
      $region96: #{_lambda_.1} parent=91 // pred_fallthru
        _
    $region92: #{_lambda_.1} parent=5 // pred_fallthru
      _
  $region6: #{_lambda_.1} parent=0 // loop_footer
    %s26 = sadd.s32 1, %s22
  $region7: #{_lambda_.1} parent=0 // loop_footer_branch
    %21 = sbr.rel target = $region3
  $region8: #{_lambda_.1} parent=0 // loop_exit
    _

</llo_original>
